<compile_context>
chip_gen: v6e
topology: v6e:2x2x1
jax: 0.10.0
libtpu: 0.0.40
codegen_flags: <defaults>
</compile_context>

<pallas_src>
import functools

import jax
import jax.numpy as jnp
from jax.experimental import pallas as pl
from jax.experimental.pallas import tpu as pltpu  # noqa: F401  (TPU backend)


# ----------------------------- helpers -----------------------------

def _whole(shape):
    nd = len(shape)
    return pl.BlockSpec(shape, lambda i: (0,) * nd)


# ------------------- fused matmul + epilogue kernel -------------------
# out = epilogue(A @ W + b)  with epilogue in {BN+LeakyReLU, 3*tanh, identity}

def _matmul_epilogue_kernel(a_ref, w_ref, b_ref, g_ref, be_ref, o_ref, *, activation):
    y = jnp.dot(a_ref[...].astype(jnp.bfloat16),
                w_ref[...].astype(jnp.bfloat16),
                preferred_element_type=jnp.float32) + b_ref[...]
    if activation == 'bn_lrelu':
        M = y.shape[0]
        inv_cnt = 1.0 / float(M)
        mean = jnp.sum(y, axis=0, keepdims=True) * inv_cnt
        var = jnp.maximum(jnp.sum(y * y, axis=0, keepdims=True) * inv_cnt - mean * mean, 0.0)
        scale = g_ref[...] * jax.lax.rsqrt(var + 1e-5)       # (1, C)
        shift = be_ref[...] - mean * scale
        yn = y * scale + shift
        o_ref[...] = jnp.where(yn > 0, yn, 0.01 * yn)        # LeakyReLU(0.01)
    elif activation == 'tanh3':
        o_ref[...] = 3.0 * jnp.tanh(y)
    else:
        o_ref[...] = y


def fused_matmul(a, w, b, gamma=None, beta=None, *, activation='none'):
    """epilogue(a @ w + b); a:(M,K), w:(K,C), b/gamma/beta:(C,)."""
    M, K = a.shape
    C = w.shape[1]
    if gamma is None:
        gamma = jnp.ones((C,), jnp.float32)
        beta = jnp.zeros((C,), jnp.float32)
    kernel = functools.partial(_matmul_epilogue_kernel, activation=activation)
    return pl.pallas_call(
        kernel,
        grid=(1,),
        out_shape=jax.ShapeDtypeStruct((M, C), jnp.float32),
        in_specs=[_whole((M, K)), _whole((K, C)), _whole((1, C)),
                  _whole((1, C)), _whole((1, C))],
        out_specs=_whole((M, C)),
    )(a.astype(jnp.float32), w.astype(jnp.float32),
      b.reshape(1, C).astype(jnp.float32),
      gamma.reshape(1, C).astype(jnp.float32),
      beta.reshape(1, C).astype(jnp.float32))


# --------------- fused latent head: mu / logvar / reparam / fc ---------------

def _latent_head_kernel(h_ref, mw_ref, mb_ref, lw_ref, lb_ref, eps_ref,
                        fw_ref, fb_ref, mu_ref, lv_ref, z_ref):
    h = h_ref[...].astype(jnp.bfloat16)
    mu = jnp.dot(h, mw_ref[...].astype(jnp.bfloat16),
                 preferred_element_type=jnp.float32) + mb_ref[...]
    lv = jnp.dot(h, lw_ref[...].astype(jnp.bfloat16),
                 preferred_element_type=jnp.float32) + lb_ref[...]
    mu_ref[...] = mu
    lv_ref[...] = lv
    z0 = mu + jnp.exp(0.5 * lv) * eps_ref[...]               # reparameterize
    z_ref[...] = jnp.dot(z0.astype(jnp.bfloat16), fw_ref[...].astype(jnp.bfloat16),
                         preferred_element_type=jnp.float32) + fb_ref[...]


def latent_head(hidden, mean_w, mean_b, logvar_w, logvar_b, eps, fc_w, fc_b):
    N, Ch = hidden.shape
    L = mean_w.shape[0]
    F = fc_w.shape[0]
    f32 = jnp.float32
    return pl.pallas_call(
        _latent_head_kernel,
        grid=(1,),
        out_shape=(jax.ShapeDtypeStruct((N, L), f32),
                   jax.ShapeDtypeStruct((N, L), f32),
                   jax.ShapeDtypeStruct((N, F), f32)),
        in_specs=[_whole((N, Ch)), _whole((Ch, L)), _whole((1, L)),
                  _whole((Ch, L)), _whole((1, L)), _whole((N, L)),
                  _whole((L, F)), _whole((1, F))],
        out_specs=(_whole((N, L)), _whole((N, L)), _whole((N, F))),
    )(hidden.astype(f32),
      mean_w.T.astype(f32), mean_b.reshape(1, L).astype(f32),
      logvar_w.T.astype(f32), logvar_b.reshape(1, L).astype(f32),
      eps.astype(f32),
      fc_w.T.astype(f32), fc_b.reshape(1, F).astype(f32))


# ------------- fused ConvTranspose2d(k3,s2,p1,op1) + BN + LeakyReLU -------------
# 4-phase pixel-shuffle decomposition (no zero-inserted intermediate).
# Output position (2i+r, 2j+s), phase p = 2r+s:
#   p=0: x(i,j)@W[1,1]
#   p=1: x(i,j)@W[1,2] + x(i,j+1)@W[1,0]
#   p=2: x(i,j)@W[2,1] + x(i+1,j)@W[0,1]
#   p=3: x(i,j)@W[2,2] + x(i,j+1)@W[2,0] + x(i+1,j)@W[0,2] + x(i+1,j+1)@W[0,0]

def _convt_bn_lrelu_kernel(a_ref, w_ref, b_ref, g_ref, be_ref, o_ref):
    # a_ref: (4, M, Cin) taps [x(i,j), x(i,j+1), x(i+1,j), x(i+1,j+1)]
    # w_ref: (9, Cin, Cout) with index ky*3+kx ;  o_ref: (4, M, Cout) phases
    b = b_ref[...]

    def tap(t, ky, kx):
        return jnp.dot(a_ref[t].astype(jnp.bfloat16),
                       w_ref[ky * 3 + kx].astype(jnp.bfloat16),
                       preferred_element_type=jnp.float32)

    y0 = tap(0, 1, 1) + b
    y1 = tap(0, 1, 2) + tap(1, 1, 0) + b
    y2 = tap(0, 2, 1) + tap(2, 0, 1) + b
    y3 = tap(0, 2, 2) + tap(1, 2, 0) + tap(2, 0, 2) + tap(3, 0, 0) + b
    ys = (y0, y1, y2, y3)

    # BatchNorm statistics over all rows and all 4 phases (== all spatial pos.)
    s = jnp.zeros_like(b)
    s2 = jnp.zeros_like(b)
    for y in ys:
        s = s + jnp.sum(y, axis=0, keepdims=True)
        s2 = s2 + jnp.sum(y * y, axis=0, keepdims=True)
    inv_cnt = 1.0 / float(4 * y0.shape[0])
    mean = s * inv_cnt
    var = jnp.maximum(s2 * inv_cnt - mean * mean, 0.0)
    scale = g_ref[...] * jax.lax.rsqrt(var + 1e-5)
    shift = be_ref[...] - mean * scale
    for p, y in enumerate(ys):
        yn = y * scale + shift
        o_ref[p] = jnp.where(yn > 0, yn, 0.01 * yn)


def conv_transpose2d_fused(x, w_iohw, bias, gamma, beta):
    """PyTorch ConvTranspose2d(k=3, s=2, p=1, output_padding=1) + BN + LeakyReLU."""
    Cin, Cout, kh, kw = w_iohw.shape
    assert (kh, kw) == (3, 3)
    N, H, W, _ = x.shape
    f32 = jnp.float32

    xp = jnp.pad(x, ((0, 0), (0, 1), (0, 1), (0, 0)))
    x00 = xp[:, :H, :W, :]
    x01 = xp[:, :H, 1:, :]
    x10 = xp[:, 1:, :W, :]
    x11 = xp[:, 1:, 1:, :]
    M = N * H * W
    taps = jnp.stack([x00, x01, x10, x11], axis=0).reshape(4, M, Cin)
    w9 = jnp.transpose(w_iohw, (2, 3, 0, 1)).reshape(9, Cin, Cout)   # (ky*3+kx, Cin, Cout)

    out = pl.pallas_call(
        _convt_bn_lrelu_kernel,
        grid=(1,),
        out_shape=jax.ShapeDtypeStruct((4, M, Cout), f32),
        in_specs=[_whole((4, M, Cin)), _whole((9, Cin, Cout)),
                  _whole((1, Cout)), _whole((1, Cout)), _whole((1, Cout))],
        out_specs=_whole((4, M, Cout)),
    )(taps.astype(f32), w9.astype(f32),
      bias.reshape(1, Cout).astype(f32),
      gamma.reshape(1, Cout).astype(f32),
      beta.reshape(1, Cout).astype(f32))

    # pixel shuffle: phase p = 2r+s -> output (2i+r, 2j+s)
    out = out.reshape(2, 2, N, H, W, Cout)                 # (r, s, n, i, j, c)
    out = jnp.transpose(out, (2, 3, 0, 4, 1, 5))           # (n, i, r, j, s, c)
    return out.reshape(N, 2 * H, 2 * W, Cout)


# --------------------------- conv glue (im2col) ----------------------------

def _im2col(x, kh, kw, stride, pad):
    """x: (N,H,W,C) -> (N*Ho*Wo, kh*kw*C), patch order (kh,kw,C)."""
    N, H, W, C = x.shape
    xp = jnp.pad(x, ((0, 0), (pad, pad), (pad, pad), (0, 0)))
    Ho = (H + 2 * pad - kh) // stride + 1
    Wo = (W + 2 * pad - kw) // stride + 1
    cols = []
    for i in range(kh):
        for j in range(kw):
            cols.append(xp[:, i:i + stride * Ho:stride, j:j + stride * Wo:stride, :])
    A = jnp.stack(cols, axis=3)                             # (N,Ho,Wo,kh*kw,C)
    return A.reshape(N * Ho * Wo, kh * kw * C), N, Ho, Wo


def conv2d_fused(x, w_oihw, bias, *, stride, pad, gamma=None, beta=None,
                 activation='bn_lrelu'):
    """PyTorch Conv2d (+ fused epilogue). w_oihw: (Cout, Cin, kh, kw)."""
    Cout, Cin, kh, kw = w_oihw.shape
    A, N, Ho, Wo = _im2col(x, kh, kw, stride, pad)
    Wm = jnp.transpose(w_oihw, (2, 3, 1, 0)).reshape(kh * kw * Cin, Cout)
    out = fused_matmul(A, Wm, bias, gamma, beta, activation=activation)
    return out.reshape(N, Ho, Wo, Cout)


# ------------------------------- parameters --------------------------------

def init_params(key, channels, latent_dim):
    keys = iter(jax.random.split(key, 64))

    def nrm(shape, scale=0.1):
        return scale * jax.random.normal(next(keys), shape, jnp.float32)

    c0, cl = channels[0], channels[-1]
    p = {
        # start_layer: Conv2d(3, c0, k=3, s=2, p=1) + BN + LeakyReLU
        'start_w': nrm((c0, 3, 3, 3)), 'start_b': nrm((c0,), 0.01),
        'start_g': jnp.ones((c0,), jnp.float32), 'start_be': jnp.zeros((c0,), jnp.float32),
        # heads
        'mean_w': nrm((latent_dim, cl)), 'mean_b': nrm((latent_dim,), 0.01),
        'logvar_w': nrm((latent_dim, cl)), 'logvar_b': nrm((latent_dim,), 0.01),
        'fc_w': nrm((cl * 2 * 2, latent_dim)), 'fc_b': nrm((cl * 2 * 2,), 0.01),
        # finnal_layer
        'fin_ct_w': nrm((c0, c0, 3, 3)), 'fin_ct_b': nrm((c0,), 0.01),
        'fin_g': jnp.ones((c0,), jnp.float32), 'fin_be': jnp.zeros((c0,), jnp.float32),
        'fin_conv_w': nrm((3, c0, 3, 3)), 'fin_conv_b': nrm((3,), 0.01),
    }
    # encoder: Conv2d(ci, co, k=7, s=4, p=3) + BN + LeakyReLU
    p['enc'] = []
    for i in range(len(channels) - 1):
        ci, co = channels[i], channels[i + 1]
        p['enc'].append(dict(w=nrm((co, ci, 7, 7)), b=nrm((co,), 0.01),
                             g=jnp.ones((co,), jnp.float32),
                             be=jnp.zeros((co,), jnp.float32)))
    # decoder: ConvTranspose2d(ci, co, k=3, s=2, p=1, op=1) + BN + LeakyReLU
    p['dec'] = []
    for i in range(len(channels) - 1, 0, -1):
        ci, co = channels[i], channels[i - 1]
        p['dec'].append(dict(w=nrm((ci, co, 3, 3)), b=nrm((co,), 0.01),
                             g=jnp.ones((co,), jnp.float32),
                             be=jnp.zeros((co,), jnp.float32)))
    return p


# --------------------------------- forward ---------------------------------

def vae_forward(x_nchw, params, eps, channels):
    x = jnp.transpose(x_nchw, (0, 2, 3, 1)).astype(jnp.float32)   # NCHW -> NHWC

    # start_layer (conv + BN + LeakyReLU fused)
    h = conv2d_fused(x, params['start_w'], params['start_b'], stride=2, pad=1,
                     gamma=params['start_g'], beta=params['start_be'])

    # encoder
    for lp in params['enc']:
        h = conv2d_fused(h, lp['w'], lp['b'], stride=4, pad=3,
                         gamma=lp['g'], beta=lp['be'])

    N = h.shape[0]
    hidden = jnp.transpose(h, (0, 3, 1, 2)).reshape(N, -1)        # torch.flatten on NCHW

    # fused: mean linear + logvar linear + reparameterize + fc linear
    mu, logvar, z = latent_head(hidden,
                                params['mean_w'], params['mean_b'],
                                params['logvar_w'], params['logvar_b'],
                                eps, params['fc_w'], params['fc_b'])

    r = z.reshape(N, channels[-1], 2, 2)                          # NCHW view, as in PyTorch
    r = jnp.transpose(r, (0, 2, 3, 1))                            # -> NHWC

    # decoder (pixel-shuffle transposed conv + BN + LeakyReLU fused)
    for lp in params['dec']:
        r = conv_transpose2d_fused(r, lp['w'], lp['b'], lp['g'], lp['be'])

    # finnal_layer + 3*tanh (tanh fused into the final conv's epilogue)
    r = conv_transpose2d_fused(r, params['fin_ct_w'], params['fin_ct_b'],
                               params['fin_g'], params['fin_be'])
    r = conv2d_fused(r, params['fin_conv_w'], params['fin_conv_b'], stride=1, pad=1,
                     activation='tanh3')

    r_image = jnp.transpose(r, (0, 3, 1, 2))                      # back to NCHW
    return r_image, z, mu, logvar


# ----------------------------------- main -----------------------------------

if __name__ == "__main__":
    channels = [8, 16]          # conf['channels'] already divided by channels_div
    latent_dim = 4

    key = jax.random.PRNGKey(0)
    pkey, xkey, ekey = jax.random.split(key, 3)
    params = init_params(pkey, channels, latent_dim)

    # input 8x8 so start(stride 2) + encoder stage (stride 4) -> 1x1 spatial,
    # matching Linear(channels[-1], latent_dim).
    x = jax.random.normal(xkey, (2, 3, 8, 8), jnp.float32)        # NCHW like PyTorch
    eps = jax.random.normal(ekey, (2, latent_dim), jnp.float32)   # replaces torch.randn_like

    fwd = jax.jit(functools.partial(vae_forward, channels=tuple(channels)))
    r_image, z, mu, logvar = fwd(x, params, eps)
    jax.block_until_ready((r_image, z, mu, logvar))

    assert r_image.shape == (2, 3, 8, 8)
    assert z.shape == (2, channels[-1] * 2 * 2)
    assert mu.shape == (2, latent_dim) and logvar.shape == (2, latent_dim)
    assert bool(jnp.all(jnp.isfinite(r_image)))
    print("KERNEL_OK")
</pallas_src>

<mosaic_0001>
module attributes {stable_mosaic.version = 11 : i64} {
  func.func @_matmul_epilogue_kernel(%arg0: i32, %arg1: memref<32x27xf32, #tpu.memory_space<vmem>>, %arg2: memref<27x8xf32, #tpu.memory_space<vmem>>, %arg3: memref<1x8xf32, #tpu.memory_space<vmem>>, %arg4: memref<1x8xf32, #tpu.memory_space<vmem>>, %arg5: memref<1x8xf32, #tpu.memory_space<vmem>>, %arg6: memref<32x8xf32, #tpu.memory_space<vmem>>) attributes {dimension_semantics = [#tpu.dimension_semantics<arbitrary>], iteration_bounds = array<i64: 1>, scalar_prefetch = 0 : i64, scratch_operands = 0 : i64, tpu.core_type = #tpu.core_type<tc>, window_params = [{pipeline_mode = #tpu.pipeline_mode<synchronous>, transform_indices = @transform_0, window_bounds = array<i64: 32, 27>}, {pipeline_mode = #tpu.pipeline_mode<synchronous>, transform_indices = @transform_1, window_bounds = array<i64: 27, 8>}, {pipeline_mode = #tpu.pipeline_mode<synchronous>, transform_indices = @transform_2, window_bounds = array<i64: 1, 8>}, {pipeline_mode = #tpu.pipeline_mode<synchronous>, transform_indices = @transform_3, window_bounds = array<i64: 1, 8>}, {pipeline_mode = #tpu.pipeline_mode<synchronous>, transform_indices = @transform_4, window_bounds = array<i64: 1, 8>}, {pipeline_mode = #tpu.pipeline_mode<synchronous>, transform_indices = @transform_5, window_bounds = array<i64: 32, 8>}]} {
    %c0 = arith.constant 0 : index
    %c0_0 = arith.constant 0 : index
    %0 = vector.load %arg1[%c0, %c0_0] : memref<32x27xf32, #tpu.memory_space<vmem>>, vector<32x27xf32>
    %1 = arith.truncf %0 : vector<32x27xf32> to vector<32x27xbf16>
    %c0_1 = arith.constant 0 : index
    %c0_2 = arith.constant 0 : index
    %2 = vector.load %arg2[%c0_1, %c0_2] : memref<27x8xf32, #tpu.memory_space<vmem>>, vector<27x8xf32>
    %3 = arith.truncf %2 : vector<27x8xf32> to vector<27x8xbf16>
    %cst = arith.constant dense<0.000000e+00> : vector<32x8xf32>
    %4 = tpu.matmul %1, %3, %cst {dimension_numbers = #tpu.dot_dimension_numbers<[1], [0], [0], [1], [0, 0, 1, 1], [], []>} : vector<32x27xbf16>, vector<27x8xbf16>, vector<32x8xf32> -> vector<32x8xf32>
    %c0_3 = arith.constant 0 : index
    %c0_4 = arith.constant 0 : index
    %5 = vector.load %arg3[%c0_3, %c0_4] : memref<1x8xf32, #tpu.memory_space<vmem>>, vector<1x8xf32>
    %6 = vector.broadcast %5 : vector<1x8xf32> to vector<32x8xf32>
    %7 = arith.addf %4, %6 : vector<32x8xf32>
    %cst_5 = arith.constant dense<0.000000e+00> : vector<8xf32>
    %8 = vector.multi_reduction <add>, %7, %cst_5 [0] : vector<32x8xf32> to vector<8xf32>
    %9 = vector.shape_cast %8 : vector<8xf32> to vector<1x8xf32>
    %cst_6 = arith.constant 3.125000e-02 : f32
    %10 = vector.broadcast %cst_6 : f32 to vector<1x8xf32>
    %11 = arith.mulf %9, %10 : vector<1x8xf32>
    %12 = arith.mulf %7, %7 : vector<32x8xf32>
    %cst_7 = arith.constant dense<0.000000e+00> : vector<8xf32>
    %13 = vector.multi_reduction <add>, %12, %cst_7 [0] : vector<32x8xf32> to vector<8xf32>
    %14 = vector.shape_cast %13 : vector<8xf32> to vector<1x8xf32>
    %cst_8 = arith.constant 3.125000e-02 : f32
    %15 = vector.broadcast %cst_8 : f32 to vector<1x8xf32>
    %16 = arith.mulf %14, %15 : vector<1x8xf32>
    %17 = arith.mulf %11, %11 : vector<1x8xf32>
    %18 = arith.subf %16, %17 : vector<1x8xf32>
    %cst_9 = arith.constant 0.000000e+00 : f32
    %19 = vector.broadcast %cst_9 : f32 to vector<1x8xf32>
    %20 = arith.maximumf %18, %19 : vector<1x8xf32>
    %c0_10 = arith.constant 0 : index
    %c0_11 = arith.constant 0 : index
    %21 = vector.load %arg4[%c0_10, %c0_11] : memref<1x8xf32, #tpu.memory_space<vmem>>, vector<1x8xf32>
    %cst_12 = arith.constant 9.99999974E-6 : f32
    %22 = vector.broadcast %cst_12 : f32 to vector<1x8xf32>
    %23 = arith.addf %20, %22 : vector<1x8xf32>
    %24 = math.rsqrt %23 : vector<1x8xf32>
    %25 = arith.mulf %21, %24 : vector<1x8xf32>
    %c0_13 = arith.constant 0 : index
    %c0_14 = arith.constant 0 : index
    %26 = vector.load %arg5[%c0_13, %c0_14] : memref<1x8xf32, #tpu.memory_space<vmem>>, vector<1x8xf32>
    %27 = arith.mulf %11, %25 : vector<1x8xf32>
    %28 = arith.subf %26, %27 : vector<1x8xf32>
    %29 = vector.broadcast %25 : vector<1x8xf32> to vector<32x8xf32>
    %30 = arith.mulf %7, %29 : vector<32x8xf32>
    %31 = vector.broadcast %28 : vector<1x8xf32> to vector<32x8xf32>
    %32 = arith.addf %30, %31 : vector<32x8xf32>
    %cst_15 = arith.constant 0.000000e+00 : f32
    %33 = vector.broadcast %cst_15 : f32 to vector<32x8xf32>
    %34 = arith.cmpf ogt, %32, %33 : vector<32x8xf32>
    %cst_16 = arith.constant 0.00999999977 : f32
    %35 = vector.broadcast %cst_16 : f32 to vector<32x8xf32>
    %36 = arith.mulf %35, %32 : vector<32x8xf32>
    %37 = arith.select %34, %32, %36 : vector<32x8xi1>, vector<32x8xf32>
    %c0_17 = arith.constant 0 : index
    %c0_18 = arith.constant 0 : index
    %38 = vector.load %arg6[%c0_17, %c0_18] : memref<32x8xf32, #tpu.memory_space<vmem>>, vector<32x8xf32>
    tpu.vector_store %arg6[%c0_17, %c0_18], %37 {strides = array<i32>} : memref<32x8xf32, #tpu.memory_space<vmem>>, vector<32x8xf32>,
    return
  }
  func.func @transform_0(%arg0: i32) -> (i32, i32) {
    %c0_i32 = arith.constant 0 : i32
    %c0_i32_0 = arith.constant 0 : i32
    %c0_i32_1 = arith.constant 0 : i32
    return %c0_i32, %c0_i32_0 : i32, i32
  }
  func.func @transform_1(%arg0: i32) -> (i32, i32) {
    %c0_i32 = arith.constant 0 : i32
    %c0_i32_0 = arith.constant 0 : i32
    %c0_i32_1 = arith.constant 0 : i32
    return %c0_i32, %c0_i32_0 : i32, i32
  }
  func.func @transform_2(%arg0: i32) -> (i32, i32) {
    %c0_i32 = arith.constant 0 : i32
    %c0_i32_0 = arith.constant 0 : i32
    %c0_i32_1 = arith.constant 0 : i32
    return %c0_i32, %c0_i32_0 : i32, i32
  }
  func.func @transform_3(%arg0: i32) -> (i32, i32) {
    %c0_i32 = arith.constant 0 : i32
    %c0_i32_0 = arith.constant 0 : i32
    %c0_i32_1 = arith.constant 0 : i32
    return %c0_i32, %c0_i32_0 : i32, i32
  }
  func.func @transform_4(%arg0: i32) -> (i32, i32) {
    %c0_i32 = arith.constant 0 : i32
    %c0_i32_0 = arith.constant 0 : i32
    %c0_i32_1 = arith.constant 0 : i32
    return %c0_i32, %c0_i32_0 : i32, i32
  }
  func.func @transform_5(%arg0: i32) -> (i32, i32) {
    %c0_i32 = arith.constant 0 : i32
    %c0_i32_0 = arith.constant 0 : i32
    %c0_i32_1 = arith.constant 0 : i32
    return %c0_i32, %c0_i32_0 : i32, i32
  }
}

module attributes {stable_mosaic.version = 11 : i64} {
  func.func @_latent_head_kernel(%arg0: i32, %arg1: memref<2x16xf32, #tpu.memory_space<vmem>>, %arg2: memref<16x4xf32, #tpu.memory_space<vmem>>, %arg3: memref<1x4xf32, #tpu.memory_space<vmem>>, %arg4: memref<16x4xf32, #tpu.memory_space<vmem>>, %arg5: memref<1x4xf32, #tpu.memory_space<vmem>>, %arg6: memref<2x4xf32, #tpu.memory_space<vmem>>, %arg7: memref<4x64xf32, #tpu.memory_space<vmem>>, %arg8: memref<1x64xf32, #tpu.memory_space<vmem>>, %arg9: memref<2x4xf32, #tpu.memory_space<vmem>>, %arg10: memref<2x4xf32, #tpu.memory_space<vmem>>, %arg11: memref<2x64xf32, #tpu.memory_space<vmem>>) attributes {dimension_semantics = [#tpu.dimension_semantics<arbitrary>], iteration_bounds = array<i64: 1>, scalar_prefetch = 0 : i64, scratch_operands = 0 : i64, tpu.core_type = #tpu.core_type<tc>, window_params = [{pipeline_mode = #tpu.pipeline_mode<synchronous>, transform_indices = @transform_0, window_bounds = array<i64: 2, 16>}, {pipeline_mode = #tpu.pipeline_mode<synchronous>, transform_indices = @transform_1, window_bounds = array<i64: 16, 4>}, {pipeline_mode = #tpu.pipeline_mode<synchronous>, transform_indices = @transform_2, window_bounds = array<i64: 1, 4>}, {pipeline_mode = #tpu.pipeline_mode<synchronous>, transform_indices = @transform_3, window_bounds = array<i64: 16, 4>}, {pipeline_mode = #tpu.pipeline_mode<synchronous>, transform_indices = @transform_4, window_bounds = array<i64: 1, 4>}, {pipeline_mode = #tpu.pipeline_mode<synchronous>, transform_indices = @transform_5, window_bounds = array<i64: 2, 4>}, {pipeline_mode = #tpu.pipeline_mode<synchronous>, transform_indices = @transform_6, window_bounds = array<i64: 4, 64>}, {pipeline_mode = #tpu.pipeline_mode<synchronous>, transform_indices = @transform_7, window_bounds = array<i64: 1, 64>}, {pipeline_mode = #tpu.pipeline_mode<synchronous>, transform_indices = @transform_8, window_bounds = array<i64: 2, 4>}, {pipeline_mode = #tpu.pipeline_mode<synchronous>, transform_indices = @transform_9, window_bounds = array<i64: 2, 4>}, {pipeline_mode = #tpu.pipeline_mode<synchronous>, transform_indices = @transform_10, window_bounds = array<i64: 2, 64>}]} {
    %c0 = arith.constant 0 : index
    %c0_0 = arith.constant 0 : index
    %0 = vector.load %arg1[%c0, %c0_0] : memref<2x16xf32, #tpu.memory_space<vmem>>, vector<2x16xf32>
    %1 = arith.truncf %0 : vector<2x16xf32> to vector<2x16xbf16>
    %c0_1 = arith.constant 0 : index
    %c0_2 = arith.constant 0 : index
    %2 = vector.load %arg2[%c0_1, %c0_2] : memref<16x4xf32, #tpu.memory_space<vmem>>, vector<16x4xf32>
    %3 = arith.truncf %2 : vector<16x4xf32> to vector<16x4xbf16>
    %cst = arith.constant dense<0.000000e+00> : vector<2x4xf32>
    %4 = tpu.matmul %1, %3, %cst {dimension_numbers = #tpu.dot_dimension_numbers<[1], [0], [0], [1], [0, 0, 1, 1], [], []>} : vector<2x16xbf16>, vector<16x4xbf16>, vector<2x4xf32> -> vector<2x4xf32>
    %c0_3 = arith.constant 0 : index
    %c0_4 = arith.constant 0 : index
    %5 = vector.load %arg3[%c0_3, %c0_4] : memref<1x4xf32, #tpu.memory_space<vmem>>, vector<1x4xf32>
    %6 = vector.broadcast %5 : vector<1x4xf32> to vector<2x4xf32>
    %7 = arith.addf %4, %6 : vector<2x4xf32>
    %c0_5 = arith.constant 0 : index
    %c0_6 = arith.constant 0 : index
    %8 = vector.load %arg4[%c0_5, %c0_6] : memref<16x4xf32, #tpu.memory_space<vmem>>, vector<16x4xf32>
    %9 = arith.truncf %8 : vector<16x4xf32> to vector<16x4xbf16>
    %cst_7 = arith.constant dense<0.000000e+00> : vector<2x4xf32>
    %10 = tpu.matmul %1, %9, %cst_7 {dimension_numbers = #tpu.dot_dimension_numbers<[1], [0], [0], [1], [0, 0, 1, 1], [], []>} : vector<2x16xbf16>, vector<16x4xbf16>, vector<2x4xf32> -> vector<2x4xf32>
    %c0_8 = arith.constant 0 : index
    %c0_9 = arith.constant 0 : index
    %11 = vector.load %arg5[%c0_8, %c0_9] : memref<1x4xf32, #tpu.memory_space<vmem>>, vector<1x4xf32>
    %12 = vector.broadcast %11 : vector<1x4xf32> to vector<2x4xf32>
    %13 = arith.addf %10, %12 : vector<2x4xf32>
    %c0_10 = arith.constant 0 : index
    %c0_11 = arith.constant 0 : index
    %14 = vector.load %arg9[%c0_10, %c0_11] : memref<2x4xf32, #tpu.memory_space<vmem>>, vector<2x4xf32>
    tpu.vector_store %arg9[%c0_10, %c0_11], %7 {strides = array<i32>} : memref<2x4xf32, #tpu.memory_space<vmem>>, vector<2x4xf32>,
    %c0_12 = arith.constant 0 : index
    %c0_13 = arith.constant 0 : index
    %15 = vector.load %arg10[%c0_12, %c0_13] : memref<2x4xf32, #tpu.memory_space<vmem>>, vector<2x4xf32>
    tpu.vector_store %arg10[%c0_12, %c0_13], %13 {strides = array<i32>} : memref<2x4xf32, #tpu.memory_space<vmem>>, vector<2x4xf32>,
    %cst_14 = arith.constant 5.000000e-01 : f32
    %16 = vector.broadcast %cst_14 : f32 to vector<2x4xf32>
    %17 = arith.mulf %16, %13 : vector<2x4xf32>
    %18 = math.exp %17 : vector<2x4xf32>
    %c0_15 = arith.constant 0 : index
    %c0_16 = arith.constant 0 : index
    %19 = vector.load %arg6[%c0_15, %c0_16] : memref<2x4xf32, #tpu.memory_space<vmem>>, vector<2x4xf32>
    %20 = arith.mulf %18, %19 : vector<2x4xf32>
    %21 = arith.addf %7, %20 : vector<2x4xf32>
    %22 = arith.truncf %21 : vector<2x4xf32> to vector<2x4xbf16>
    %c0_17 = arith.constant 0 : index
    %c0_18 = arith.constant 0 : index
    %23 = vector.load %arg7[%c0_17, %c0_18] : memref<4x64xf32, #tpu.memory_space<vmem>>, vector<4x64xf32>
    %24 = arith.truncf %23 : vector<4x64xf32> to vector<4x64xbf16>
    %cst_19 = arith.constant dense<0.000000e+00> : vector<2x64xf32>
    %25 = tpu.matmul %22, %24, %cst_19 {dimension_numbers = #tpu.dot_dimension_numbers<[1], [0], [0], [1], [0, 0, 1, 1], [], []>} : vector<2x4xbf16>, vector<4x64xbf16>, vector<2x64xf32> -> vector<2x64xf32>
    %c0_20 = arith.constant 0 : index
    %c0_21 = arith.constant 0 : index
    %26 = vector.load %arg8[%c0_20, %c0_21] : memref<1x64xf32, #tpu.memory_space<vmem>>, vector<1x64xf32>
    %27 = vector.broadcast %26 : vector<1x64xf32> to vector<2x64xf32>
    %28 = arith.addf %25, %27 : vector<2x64xf32>
    %c0_22 = arith.constant 0 : index
    %c0_23 = arith.constant 0 : index
    %29 = vector.load %arg11[%c0_22, %c0_23] : memref<2x64xf32, #tpu.memory_space<vmem>>, vector<2x64xf32>
    tpu.vector_store %arg11[%c0_22, %c0_23], %28 {strides = array<i32>} : memref<2x64xf32, #tpu.memory_space<vmem>>, vector<2x64xf32>,
    return
  }
  func.func @transform_0(%arg0: i32) -> (i32, i32) {
    %c0_i32 = arith.constant 0 : i32
    %c0_i32_0 = arith.constant 0 : i32
    %c0_i32_1 = arith.constant 0 : i32
    return %c0_i32, %c0_i32_0 : i32, i32
  }
  func.func @transform_1(%arg0: i32) -> (i32, i32) {
    %c0_i32 = arith.constant 0 : i32
    %c0_i32_0 = arith.constant 0 : i32
    %c0_i32_1 = arith.constant 0 : i32
    return %c0_i32, %c0_i32_0 : i32, i32
  }
  func.func @transform_2(%arg0: i32) -> (i32, i32) {
    %c0_i32 = arith.constant 0 : i32
    %c0_i32_0 = arith.constant 0 : i32
    %c0_i32_1 = arith.constant 0 : i32
    return %c0_i32, %c0_i32_0 : i32, i32
  }
  func.func @transform_3(%arg0: i32) -> (i32, i32) {
    %c0_i32 = arith.constant 0 : i32
    %c0_i32_0 = arith.constant 0 : i32
    %c0_i32_1 = arith.constant 0 : i32
    return %c0_i32, %c0_i32_0 : i32, i32
  }
  func.func @transform_4(%arg0: i32) -> (i32, i32) {
    %c0_i32 = arith.constant 0 : i32
    %c0_i32_0 = arith.constant 0 : i32
    %c0_i32_1 = arith.constant 0 : i32
    return %c0_i32, %c0_i32_0 : i32, i32
  }
  func.func @transform_5(%arg0: i32) -> (i32, i32) {
    %c0_i32 = arith.constant 0 : i32
    %c0_i32_0 = arith.constant 0 : i32
    %c0_i32_1 = arith.constant 0 : i32
    return %c0_i32, %c0_i32_0 : i32, i32
  }
  func.func @transform_6(%arg0: i32) -> (i32, i32) {
    %c0_i32 = arith.constant 0 : i32
    %c0_i32_0 = arith.constant 0 : i32
    %c0_i32_1 = arith.constant 0 : i32
    return %c0_i32, %c0_i32_0 : i32, i32
  }
  func.func @transform_7(%arg0: i32) -> (i32, i32) {
    %c0_i32 = arith.constant 0 : i32
    %c0_i32_0 = arith.constant 0 : i32
    %c0_i32_1 = arith.constant 0 : i32
    return %c0_i32, %c0_i32_0 : i32, i32
  }
  func.func @transform_8(%arg0: i32) -> (i32, i32) {
    %c0_i32 = arith.constant 0 : i32
    %c0_i32_0 = arith.constant 0 : i32
    %c0_i32_1 = arith.constant 0 : i32
    return %c0_i32, %c0_i32_0 : i32, i32
  }
  func.func @transform_9(%arg0: i32) -> (i32, i32) {
    %c0_i32 = arith.constant 0 : i32
    %c0_i32_0 = arith.constant 0 : i32
    %c0_i32_1 = arith.constant 0 : i32
    return %c0_i32, %c0_i32_0 : i32, i32
  }
  func.func @transform_10(%arg0: i32) -> (i32, i32) {
    %c0_i32 = arith.constant 0 : i32
    %c0_i32_0 = arith.constant 0 : i32
    %c0_i32_1 = arith.constant 0 : i32
    return %c0_i32, %c0_i32_0 : i32, i32
  }
}

module attributes {stable_mosaic.version = 11 : i64} {
  func.func @_matmul_epilogue_kernel(%arg0: i32, %arg1: memref<2x392xf32, #tpu.memory_space<vmem>>, %arg2: memref<392x16xf32, #tpu.memory_space<vmem>>, %arg3: memref<1x16xf32, #tpu.memory_space<vmem>>, %arg4: memref<1x16xf32, #tpu.memory_space<vmem>>, %arg5: memref<1x16xf32, #tpu.memory_space<vmem>>, %arg6: memref<2x16xf32, #tpu.memory_space<vmem>>) attributes {dimension_semantics = [#tpu.dimension_semantics<arbitrary>], iteration_bounds = array<i64: 1>, scalar_prefetch = 0 : i64, scratch_operands = 0 : i64, tpu.core_type = #tpu.core_type<tc>, window_params = [{pipeline_mode = #tpu.pipeline_mode<synchronous>, transform_indices = @transform_0, window_bounds = array<i64: 2, 392>}, {pipeline_mode = #tpu.pipeline_mode<synchronous>, transform_indices = @transform_1, window_bounds = array<i64: 392, 16>}, {pipeline_mode = #tpu.pipeline_mode<synchronous>, transform_indices = @transform_2, window_bounds = array<i64: 1, 16>}, {pipeline_mode = #tpu.pipeline_mode<synchronous>, transform_indices = @transform_3, window_bounds = array<i64: 1, 16>}, {pipeline_mode = #tpu.pipeline_mode<synchronous>, transform_indices = @transform_4, window_bounds = array<i64: 1, 16>}, {pipeline_mode = #tpu.pipeline_mode<synchronous>, transform_indices = @transform_5, window_bounds = array<i64: 2, 16>}]} {
    %c0 = arith.constant 0 : index
    %c0_0 = arith.constant 0 : index
    %0 = vector.load %arg1[%c0, %c0_0] : memref<2x392xf32, #tpu.memory_space<vmem>>, vector<2x392xf32>
    %1 = arith.truncf %0 : vector<2x392xf32> to vector<2x392xbf16>
    %c0_1 = arith.constant 0 : index
    %c0_2 = arith.constant 0 : index
    %2 = vector.load %arg2[%c0_1, %c0_2] : memref<392x16xf32, #tpu.memory_space<vmem>>, vector<392x16xf32>
    %3 = arith.truncf %2 : vector<392x16xf32> to vector<392x16xbf16>
    %cst = arith.constant dense<0.000000e+00> : vector<2x16xf32>
    %4 = tpu.matmul %1, %3, %cst {dimension_numbers = #tpu.dot_dimension_numbers<[1], [0], [0], [1], [0, 0, 1, 1], [], []>} : vector<2x392xbf16>, vector<392x16xbf16>, vector<2x16xf32> -> vector<2x16xf32>
    %c0_3 = arith.constant 0 : index
    %c0_4 = arith.constant 0 : index
    %5 = vector.load %arg3[%c0_3, %c0_4] : memref<1x16xf32, #tpu.memory_space<vmem>>, vector<1x16xf32>
    %6 = vector.broadcast %5 : vector<1x16xf32> to vector<2x16xf32>
    %7 = arith.addf %4, %6 : vector<2x16xf32>
    %cst_5 = arith.constant dense<0.000000e+00> : vector<16xf32>
    %8 = vector.multi_reduction <add>, %7, %cst_5 [0] : vector<2x16xf32> to vector<16xf32>
    %9 = vector.shape_cast %8 : vector<16xf32> to vector<1x16xf32>
    %cst_6 = arith.constant 5.000000e-01 : f32
    %10 = vector.broadcast %cst_6 : f32 to vector<1x16xf32>
    %11 = arith.mulf %9, %10 : vector<1x16xf32>
    %12 = arith.mulf %7, %7 : vector<2x16xf32>
    %cst_7 = arith.constant dense<0.000000e+00> : vector<16xf32>
    %13 = vector.multi_reduction <add>, %12, %cst_7 [0] : vector<2x16xf32> to vector<16xf32>
    %14 = vector.shape_cast %13 : vector<16xf32> to vector<1x16xf32>
    %cst_8 = arith.constant 5.000000e-01 : f32
    %15 = vector.broadcast %cst_8 : f32 to vector<1x16xf32>
    %16 = arith.mulf %14, %15 : vector<1x16xf32>
    %17 = arith.mulf %11, %11 : vector<1x16xf32>
    %18 = arith.subf %16, %17 : vector<1x16xf32>
    %cst_9 = arith.constant 0.000000e+00 : f32
    %19 = vector.broadcast %cst_9 : f32 to vector<1x16xf32>
    %20 = arith.maximumf %18, %19 : vector<1x16xf32>
    %c0_10 = arith.constant 0 : index
    %c0_11 = arith.constant 0 : index
    %21 = vector.load %arg4[%c0_10, %c0_11] : memref<1x16xf32, #tpu.memory_space<vmem>>, vector<1x16xf32>
    %cst_12 = arith.constant 9.99999974E-6 : f32
    %22 = vector.broadcast %cst_12 : f32 to vector<1x16xf32>
    %23 = arith.addf %20, %22 : vector<1x16xf32>
    %24 = math.rsqrt %23 : vector<1x16xf32>
    %25 = arith.mulf %21, %24 : vector<1x16xf32>
    %c0_13 = arith.constant 0 : index
    %c0_14 = arith.constant 0 : index
    %26 = vector.load %arg5[%c0_13, %c0_14] : memref<1x16xf32, #tpu.memory_space<vmem>>, vector<1x16xf32>
    %27 = arith.mulf %11, %25 : vector<1x16xf32>
    %28 = arith.subf %26, %27 : vector<1x16xf32>
    %29 = vector.broadcast %25 : vector<1x16xf32> to vector<2x16xf32>
    %30 = arith.mulf %7, %29 : vector<2x16xf32>
    %31 = vector.broadcast %28 : vector<1x16xf32> to vector<2x16xf32>
    %32 = arith.addf %30, %31 : vector<2x16xf32>
    %cst_15 = arith.constant 0.000000e+00 : f32
    %33 = vector.broadcast %cst_15 : f32 to vector<2x16xf32>
    %34 = arith.cmpf ogt, %32, %33 : vector<2x16xf32>
    %cst_16 = arith.constant 0.00999999977 : f32
    %35 = vector.broadcast %cst_16 : f32 to vector<2x16xf32>
    %36 = arith.mulf %35, %32 : vector<2x16xf32>
    %37 = arith.select %34, %32, %36 : vector<2x16xi1>, vector<2x16xf32>
    %c0_17 = arith.constant 0 : index
    %c0_18 = arith.constant 0 : index
    %38 = vector.load %arg6[%c0_17, %c0_18] : memref<2x16xf32, #tpu.memory_space<vmem>>, vector<2x16xf32>
    tpu.vector_store %arg6[%c0_17, %c0_18], %37 {strides = array<i32>} : memref<2x16xf32, #tpu.memory_space<vmem>>, vector<2x16xf32>,
    return
  }
  func.func @transform_0(%arg0: i32) -> (i32, i32) {
    %c0_i32 = arith.constant 0 : i32
    %c0_i32_0 = arith.constant 0 : i32
    %c0_i32_1 = arith.constant 0 : i32
    return %c0_i32, %c0_i32_0 : i32, i32
  }
  func.func @transform_1(%arg0: i32) -> (i32, i32) {
    %c0_i32 = arith.constant 0 : i32
    %c0_i32_0 = arith.constant 0 : i32
    %c0_i32_1 = arith.constant 0 : i32
    return %c0_i32, %c0_i32_0 : i32, i32
  }
  func.func @transform_2(%arg0: i32) -> (i32, i32) {
    %c0_i32 = arith.constant 0 : i32
    %c0_i32_0 = arith.constant 0 : i32
    %c0_i32_1 = arith.constant 0 : i32
    return %c0_i32, %c0_i32_0 : i32, i32
  }
  func.func @transform_3(%arg0: i32) -> (i32, i32) {
    %c0_i32 = arith.constant 0 : i32
    %c0_i32_0 = arith.constant 0 : i32
    %c0_i32_1 = arith.constant 0 : i32
    return %c0_i32, %c0_i32_0 : i32, i32
  }
  func.func @transform_4(%arg0: i32) -> (i32, i32) {
    %c0_i32 = arith.constant 0 : i32
    %c0_i32_0 = arith.constant 0 : i32
    %c0_i32_1 = arith.constant 0 : i32
    return %c0_i32, %c0_i32_0 : i32, i32
  }
  func.func @transform_5(%arg0: i32) -> (i32, i32) {
    %c0_i32 = arith.constant 0 : i32
    %c0_i32_0 = arith.constant 0 : i32
    %c0_i32_1 = arith.constant 0 : i32
    return %c0_i32, %c0_i32_0 : i32, i32
  }
}

module attributes {stable_mosaic.version = 11 : i64} {
  func.func @_convt_bn_lrelu_kernel(%arg0: i32, %arg1: memref<4x8x16xf32, #tpu.memory_space<vmem>>, %arg2: memref<9x16x8xf32, #tpu.memory_space<vmem>>, %arg3: memref<1x8xf32, #tpu.memory_space<vmem>>, %arg4: memref<1x8xf32, #tpu.memory_space<vmem>>, %arg5: memref<1x8xf32, #tpu.memory_space<vmem>>, %arg6: memref<4x8x8xf32, #tpu.memory_space<vmem>>) attributes {dimension_semantics = [#tpu.dimension_semantics<arbitrary>], iteration_bounds = array<i64: 1>, scalar_prefetch = 0 : i64, scratch_operands = 0 : i64, tpu.core_type = #tpu.core_type<tc>, window_params = [{pipeline_mode = #tpu.pipeline_mode<synchronous>, transform_indices = @transform_0, window_bounds = array<i64: 4, 8, 16>}, {pipeline_mode = #tpu.pipeline_mode<synchronous>, transform_indices = @transform_1, window_bounds = array<i64: 9, 16, 8>}, {pipeline_mode = #tpu.pipeline_mode<synchronous>, transform_indices = @transform_2, window_bounds = array<i64: 1, 8>}, {pipeline_mode = #tpu.pipeline_mode<synchronous>, transform_indices = @transform_3, window_bounds = array<i64: 1, 8>}, {pipeline_mode = #tpu.pipeline_mode<synchronous>, transform_indices = @transform_4, window_bounds = array<i64: 1, 8>}, {pipeline_mode = #tpu.pipeline_mode<synchronous>, transform_indices = @transform_5, window_bounds = array<i64: 4, 8, 8>}]} {
    %c0 = arith.constant 0 : index
    %c0_0 = arith.constant 0 : index
    %0 = vector.load %arg3[%c0, %c0_0] : memref<1x8xf32, #tpu.memory_space<vmem>>, vector<1x8xf32>
    %c0_1 = arith.constant 0 : index
    %c0_2 = arith.constant 0 : index
    %c0_3 = arith.constant 0 : index
    %1 = vector.load %arg1[%c0_1, %c0_2, %c0_3] : memref<4x8x16xf32, #tpu.memory_space<vmem>>, vector<1x8x16xf32>
    %2 = vector.shape_cast %1 : vector<1x8x16xf32> to vector<8x16xf32>
    %3 = arith.truncf %2 : vector<8x16xf32> to vector<8x16xbf16>
    %c4 = arith.constant 4 : index
    %c0_4 = arith.constant 0 : index
    %c0_5 = arith.constant 0 : index
    %4 = vector.load %arg2[%c4, %c0_4, %c0_5] : memref<9x16x8xf32, #tpu.memory_space<vmem>>, vector<1x16x8xf32>
    %5 = vector.shape_cast %4 : vector<1x16x8xf32> to vector<16x8xf32>
    %6 = arith.truncf %5 : vector<16x8xf32> to vector<16x8xbf16>
    %cst = arith.constant dense<0.000000e+00> : vector<8x8xf32>
    %7 = tpu.matmul %3, %6, %cst {dimension_numbers = #tpu.dot_dimension_numbers<[1], [0], [0], [1], [0, 0, 1, 1], [], []>} : vector<8x16xbf16>, vector<16x8xbf16>, vector<8x8xf32> -> vector<8x8xf32>
    %8 = vector.broadcast %0 : vector<1x8xf32> to vector<8x8xf32>
    %9 = arith.addf %7, %8 : vector<8x8xf32>
    %c0_6 = arith.constant 0 : index
    %c0_7 = arith.constant 0 : index
    %c0_8 = arith.constant 0 : index
    %10 = vector.load %arg1[%c0_6, %c0_7, %c0_8] : memref<4x8x16xf32, #tpu.memory_space<vmem>>, vector<1x8x16xf32>
    %11 = vector.shape_cast %10 : vector<1x8x16xf32> to vector<8x16xf32>
    %12 = arith.truncf %11 : vector<8x16xf32> to vector<8x16xbf16>
    %c5 = arith.constant 5 : index
    %c0_9 = arith.constant 0 : index
    %c0_10 = arith.constant 0 : index
    %13 = vector.load %arg2[%c5, %c0_9, %c0_10] : memref<9x16x8xf32, #tpu.memory_space<vmem>>, vector<1x16x8xf32>
    %14 = vector.shape_cast %13 : vector<1x16x8xf32> to vector<16x8xf32>
    %15 = arith.truncf %14 : vector<16x8xf32> to vector<16x8xbf16>
    %cst_11 = arith.constant dense<0.000000e+00> : vector<8x8xf32>
    %16 = tpu.matmul %12, %15, %cst_11 {dimension_numbers = #tpu.dot_dimension_numbers<[1], [0], [0], [1], [0, 0, 1, 1], [], []>} : vector<8x16xbf16>, vector<16x8xbf16>, vector<8x8xf32> -> vector<8x8xf32>
    %c1 = arith.constant 1 : index
    %c0_12 = arith.constant 0 : index
    %c0_13 = arith.constant 0 : index
    %17 = vector.load %arg1[%c1, %c0_12, %c0_13] : memref<4x8x16xf32, #tpu.memory_space<vmem>>, vector<1x8x16xf32>
    %18 = vector.shape_cast %17 : vector<1x8x16xf32> to vector<8x16xf32>
    %19 = arith.truncf %18 : vector<8x16xf32> to vector<8x16xbf16>
    %c3 = arith.constant 3 : index
    %c0_14 = arith.constant 0 : index
    %c0_15 = arith.constant 0 : index
    %20 = vector.load %arg2[%c3, %c0_14, %c0_15] : memref<9x16x8xf32, #tpu.memory_space<vmem>>, vector<1x16x8xf32>
    %21 = vector.shape_cast %20 : vector<1x16x8xf32> to vector<16x8xf32>
    %22 = arith.truncf %21 : vector<16x8xf32> to vector<16x8xbf16>
    %cst_16 = arith.constant dense<0.000000e+00> : vector<8x8xf32>
    %23 = tpu.matmul %19, %22, %cst_16 {dimension_numbers = #tpu.dot_dimension_numbers<[1], [0], [0], [1], [0, 0, 1, 1], [], []>} : vector<8x16xbf16>, vector<16x8xbf16>, vector<8x8xf32> -> vector<8x8xf32>
    %24 = arith.addf %16, %23 : vector<8x8xf32>
    %25 = vector.broadcast %0 : vector<1x8xf32> to vector<8x8xf32>
    %26 = arith.addf %24, %25 : vector<8x8xf32>
    %c0_17 = arith.constant 0 : index
    %c0_18 = arith.constant 0 : index
    %c0_19 = arith.constant 0 : index
    %27 = vector.load %arg1[%c0_17, %c0_18, %c0_19] : memref<4x8x16xf32, #tpu.memory_space<vmem>>, vector<1x8x16xf32>
    %28 = vector.shape_cast %27 : vector<1x8x16xf32> to vector<8x16xf32>
    %29 = arith.truncf %28 : vector<8x16xf32> to vector<8x16xbf16>
    %c7 = arith.constant 7 : index
    %c0_20 = arith.constant 0 : index
    %c0_21 = arith.constant 0 : index
    %30 = vector.load %arg2[%c7, %c0_20, %c0_21] : memref<9x16x8xf32, #tpu.memory_space<vmem>>, vector<1x16x8xf32>
    %31 = vector.shape_cast %30 : vector<1x16x8xf32> to vector<16x8xf32>
    %32 = arith.truncf %31 : vector<16x8xf32> to vector<16x8xbf16>
    %cst_22 = arith.constant dense<0.000000e+00> : vector<8x8xf32>
    %33 = tpu.matmul %29, %32, %cst_22 {dimension_numbers = #tpu.dot_dimension_numbers<[1], [0], [0], [1], [0, 0, 1, 1], [], []>} : vector<8x16xbf16>, vector<16x8xbf16>, vector<8x8xf32> -> vector<8x8xf32>
    %c2 = arith.constant 2 : index
    %c0_23 = arith.constant 0 : index
    %c0_24 = arith.constant 0 : index
    %34 = vector.load %arg1[%c2, %c0_23, %c0_24] : memref<4x8x16xf32, #tpu.memory_space<vmem>>, vector<1x8x16xf32>
    %35 = vector.shape_cast %34 : vector<1x8x16xf32> to vector<8x16xf32>
    %36 = arith.truncf %35 : vector<8x16xf32> to vector<8x16xbf16>
    %c1_25 = arith.constant 1 : index
    %c0_26 = arith.constant 0 : index
    %c0_27 = arith.constant 0 : index
    %37 = vector.load %arg2[%c1_25, %c0_26, %c0_27] : memref<9x16x8xf32, #tpu.memory_space<vmem>>, vector<1x16x8xf32>
    %38 = vector.shape_cast %37 : vector<1x16x8xf32> to vector<16x8xf32>
    %39 = arith.truncf %38 : vector<16x8xf32> to vector<16x8xbf16>
    %cst_28 = arith.constant dense<0.000000e+00> : vector<8x8xf32>
    %40 = tpu.matmul %36, %39, %cst_28 {dimension_numbers = #tpu.dot_dimension_numbers<[1], [0], [0], [1], [0, 0, 1, 1], [], []>} : vector<8x16xbf16>, vector<16x8xbf16>, vector<8x8xf32> -> vector<8x8xf32>
    %41 = arith.addf %33, %40 : vector<8x8xf32>
    %42 = vector.broadcast %0 : vector<1x8xf32> to vector<8x8xf32>
    %43 = arith.addf %41, %42 : vector<8x8xf32>
    %c0_29 = arith.constant 0 : index
    %c0_30 = arith.constant 0 : index
    %c0_31 = arith.constant 0 : index
    %44 = vector.load %arg1[%c0_29, %c0_30, %c0_31] : memref<4x8x16xf32, #tpu.memory_space<vmem>>, vector<1x8x16xf32>
    %45 = vector.shape_cast %44 : vector<1x8x16xf32> to vector<8x16xf32>
    %46 = arith.truncf %45 : vector<8x16xf32> to vector<8x16xbf16>
    %c8 = arith.constant 8 : index
    %c0_32 = arith.constant 0 : index
    %c0_33 = arith.constant 0 : index
    %47 = vector.load %arg2[%c8, %c0_32, %c0_33] : memref<9x16x8xf32, #tpu.memory_space<vmem>>, vector<1x16x8xf32>
    %48 = vector.shape_cast %47 : vector<1x16x8xf32> to vector<16x8xf32>
    %49 = arith.truncf %48 : vector<16x8xf32> to vector<16x8xbf16>
    %cst_34 = arith.constant dense<0.000000e+00> : vector<8x8xf32>
    %50 = tpu.matmul %46, %49, %cst_34 {dimension_numbers = #tpu.dot_dimension_numbers<[1], [0], [0], [1], [0, 0, 1, 1], [], []>} : vector<8x16xbf16>, vector<16x8xbf16>, vector<8x8xf32> -> vector<8x8xf32>
    %c1_35 = arith.constant 1 : index
    %c0_36 = arith.constant 0 : index
    %c0_37 = arith.constant 0 : index
    %51 = vector.load %arg1[%c1_35, %c0_36, %c0_37] : memref<4x8x16xf32, #tpu.memory_space<vmem>>, vector<1x8x16xf32>
    %52 = vector.shape_cast %51 : vector<1x8x16xf32> to vector<8x16xf32>
    %53 = arith.truncf %52 : vector<8x16xf32> to vector<8x16xbf16>
    %c6 = arith.constant 6 : index
    %c0_38 = arith.constant 0 : index
    %c0_39 = arith.constant 0 : index
    %54 = vector.load %arg2[%c6, %c0_38, %c0_39] : memref<9x16x8xf32, #tpu.memory_space<vmem>>, vector<1x16x8xf32>
    %55 = vector.shape_cast %54 : vector<1x16x8xf32> to vector<16x8xf32>
    %56 = arith.truncf %55 : vector<16x8xf32> to vector<16x8xbf16>
    %cst_40 = arith.constant dense<0.000000e+00> : vector<8x8xf32>
    %57 = tpu.matmul %53, %56, %cst_40 {dimension_numbers = #tpu.dot_dimension_numbers<[1], [0], [0], [1], [0, 0, 1, 1], [], []>} : vector<8x16xbf16>, vector<16x8xbf16>, vector<8x8xf32> -> vector<8x8xf32>
    %58 = arith.addf %50, %57 : vector<8x8xf32>
    %c2_41 = arith.constant 2 : index
    %c0_42 = arith.constant 0 : index
    %c0_43 = arith.constant 0 : index
    %59 = vector.load %arg1[%c2_41, %c0_42, %c0_43] : memref<4x8x16xf32, #tpu.memory_space<vmem>>, vector<1x8x16xf32>
    %60 = vector.shape_cast %59 : vector<1x8x16xf32> to vector<8x16xf32>
    %61 = arith.truncf %60 : vector<8x16xf32> to vector<8x16xbf16>
    %c2_44 = arith.constant 2 : index
    %c0_45 = arith.constant 0 : index
    %c0_46 = arith.constant 0 : index
    %62 = vector.load %arg2[%c2_44, %c0_45, %c0_46] : memref<9x16x8xf32, #tpu.memory_space<vmem>>, vector<1x16x8xf32>
    %63 = vector.shape_cast %62 : vector<1x16x8xf32> to vector<16x8xf32>
    %64 = arith.truncf %63 : vector<16x8xf32> to vector<16x8xbf16>
    %cst_47 = arith.constant dense<0.000000e+00> : vector<8x8xf32>
    %65 = tpu.matmul %61, %64, %cst_47 {dimension_numbers = #tpu.dot_dimension_numbers<[1], [0], [0], [1], [0, 0, 1, 1], [], []>} : vector<8x16xbf16>, vector<16x8xbf16>, vector<8x8xf32> -> vector<8x8xf32>
    %66 = arith.addf %58, %65 : vector<8x8xf32>
    %c3_48 = arith.constant 3 : index
    %c0_49 = arith.constant 0 : index
    %c0_50 = arith.constant 0 : index
    %67 = vector.load %arg1[%c3_48, %c0_49, %c0_50] : memref<4x8x16xf32, #tpu.memory_space<vmem>>, vector<1x8x16xf32>
    %68 = vector.shape_cast %67 : vector<1x8x16xf32> to vector<8x16xf32>
    %69 = arith.truncf %68 : vector<8x16xf32> to vector<8x16xbf16>
    %c0_51 = arith.constant 0 : index
    %c0_52 = arith.constant 0 : index
    %c0_53 = arith.constant 0 : index
    %70 = vector.load %arg2[%c0_51, %c0_52, %c0_53] : memref<9x16x8xf32, #tpu.memory_space<vmem>>, vector<1x16x8xf32>
    %71 = vector.shape_cast %70 : vector<1x16x8xf32> to vector<16x8xf32>
    %72 = arith.truncf %71 : vector<16x8xf32> to vector<16x8xbf16>
    %cst_54 = arith.constant dense<0.000000e+00> : vector<8x8xf32>
    %73 = tpu.matmul %69, %72, %cst_54 {dimension_numbers = #tpu.dot_dimension_numbers<[1], [0], [0], [1], [0, 0, 1, 1], [], []>} : vector<8x16xbf16>, vector<16x8xbf16>, vector<8x8xf32> -> vector<8x8xf32>
    %74 = arith.addf %66, %73 : vector<8x8xf32>
    %75 = vector.broadcast %0 : vector<1x8xf32> to vector<8x8xf32>
    %76 = arith.addf %74, %75 : vector<8x8xf32>
    %cst_55 = arith.constant 0.000000e+00 : f32
    %77 = vector.broadcast %cst_55 : f32 to vector<1x8xf32>
    %cst_56 = arith.constant 0.000000e+00 : f32
    %78 = vector.broadcast %cst_56 : f32 to vector<1x8xf32>
    %cst_57 = arith.constant dense<0.000000e+00> : vector<8xf32>
    %79 = vector.multi_reduction <add>, %9, %cst_57 [0] : vector<8x8xf32> to vector<8xf32>
    %80 = vector.shape_cast %79 : vector<8xf32> to vector<1x8xf32>
    %81 = arith.addf %77, %80 : vector<1x8xf32>
    %82 = arith.mulf %9, %9 : vector<8x8xf32>
    %cst_58 = arith.constant dense<0.000000e+00> : vector<8xf32>
    %83 = vector.multi_reduction <add>, %82, %cst_58 [0] : vector<8x8xf32> to vector<8xf32>
    %84 = vector.shape_cast %83 : vector<8xf32> to vector<1x8xf32>
    %85 = arith.addf %78, %84 : vector<1x8xf32>
    %cst_59 = arith.constant dense<0.000000e+00> : vector<8xf32>
    %86 = vector.multi_reduction <add>, %26, %cst_59 [0] : vector<8x8xf32> to vector<8xf32>
    %87 = vector.shape_cast %86 : vector<8xf32> to vector<1x8xf32>
    %88 = arith.addf %81, %87 : vector<1x8xf32>
    %89 = arith.mulf %26, %26 : vector<8x8xf32>
    %cst_60 = arith.constant dense<0.000000e+00> : vector<8xf32>
    %90 = vector.multi_reduction <add>, %89, %cst_60 [0] : vector<8x8xf32> to vector<8xf32>
    %91 = vector.shape_cast %90 : vector<8xf32> to vector<1x8xf32>
    %92 = arith.addf %85, %91 : vector<1x8xf32>
    %cst_61 = arith.constant dense<0.000000e+00> : vector<8xf32>
    %93 = vector.multi_reduction <add>, %43, %cst_61 [0] : vector<8x8xf32> to vector<8xf32>
    %94 = vector.shape_cast %93 : vector<8xf32> to vector<1x8xf32>
    %95 = arith.addf %88, %94 : vector<1x8xf32>
    %96 = arith.mulf %43, %43 : vector<8x8xf32>
    %cst_62 = arith.constant dense<0.000000e+00> : vector<8xf32>
    %97 = vector.multi_reduction <add>, %96, %cst_62 [0] : vector<8x8xf32> to vector<8xf32>
    %98 = vector.shape_cast %97 : vector<8xf32> to vector<1x8xf32>
    %99 = arith.addf %92, %98 : vector<1x8xf32>
    %cst_63 = arith.constant dense<0.000000e+00> : vector<8xf32>
    %100 = vector.multi_reduction <add>, %76, %cst_63 [0] : vector<8x8xf32> to vector<8xf32>
    %101 = vector.shape_cast %100 : vector<8xf32> to vector<1x8xf32>
    %102 = arith.addf %95, %101 : vector<1x8xf32>
    %103 = arith.mulf %76, %76 : vector<8x8xf32>
    %cst_64 = arith.constant dense<0.000000e+00> : vector<8xf32>
    %104 = vector.multi_reduction <add>, %103, %cst_64 [0] : vector<8x8xf32> to vector<8xf32>
    %105 = vector.shape_cast %104 : vector<8xf32> to vector<1x8xf32>
    %106 = arith.addf %99, %105 : vector<1x8xf32>
    %cst_65 = arith.constant 3.125000e-02 : f32
    %107 = vector.broadcast %cst_65 : f32 to vector<1x8xf32>
    %108 = arith.mulf %102, %107 : vector<1x8xf32>
    %cst_66 = arith.constant 3.125000e-02 : f32
    %109 = vector.broadcast %cst_66 : f32 to vector<1x8xf32>
    %110 = arith.mulf %106, %109 : vector<1x8xf32>
    %111 = arith.mulf %108, %108 : vector<1x8xf32>
    %112 = arith.subf %110, %111 : vector<1x8xf32>
    %cst_67 = arith.constant 0.000000e+00 : f32
    %113 = vector.broadcast %cst_67 : f32 to vector<1x8xf32>
    %114 = arith.maximumf %112, %113 : vector<1x8xf32>
    %c0_68 = arith.constant 0 : index
    %c0_69 = arith.constant 0 : index
    %115 = vector.load %arg4[%c0_68, %c0_69] : memref<1x8xf32, #tpu.memory_space<vmem>>, vector<1x8xf32>
    %cst_70 = arith.constant 9.99999974E-6 : f32
    %116 = vector.broadcast %cst_70 : f32 to vector<1x8xf32>
    %117 = arith.addf %114, %116 : vector<1x8xf32>
    %118 = math.rsqrt %117 : vector<1x8xf32>
    %119 = arith.mulf %115, %118 : vector<1x8xf32>
    %c0_71 = arith.constant 0 : index
    %c0_72 = arith.constant 0 : index
    %120 = vector.load %arg5[%c0_71, %c0_72] : memref<1x8xf32, #tpu.memory_space<vmem>>, vector<1x8xf32>
    %121 = arith.mulf %108, %119 : vector<1x8xf32>
    %122 = arith.subf %120, %121 : vector<1x8xf32>
    %123 = vector.broadcast %119 : vector<1x8xf32> to vector<8x8xf32>
    %124 = arith.mulf %9, %123 : vector<8x8xf32>
    %125 = vector.broadcast %122 : vector<1x8xf32> to vector<8x8xf32>
    %126 = arith.addf %124, %125 : vector<8x8xf32>
    %cst_73 = arith.constant 0.000000e+00 : f32
    %127 = vector.broadcast %cst_73 : f32 to vector<8x8xf32>
    %128 = arith.cmpf ogt, %126, %127 : vector<8x8xf32>
    %cst_74 = arith.constant 0.00999999977 : f32
    %129 = vector.broadcast %cst_74 : f32 to vector<8x8xf32>
    %130 = arith.mulf %129, %126 : vector<8x8xf32>
    %131 = arith.select %128, %126, %130 : vector<8x8xi1>, vector<8x8xf32>
    %c0_75 = arith.constant 0 : index
    %c0_76 = arith.constant 0 : index
    %c0_77 = arith.constant 0 : index
    %132 = vector.load %arg6[%c0_75, %c0_76, %c0_77] : memref<4x8x8xf32, #tpu.memory_space<vmem>>, vector<1x8x8xf32>
    %133 = vector.shape_cast %132 : vector<1x8x8xf32> to vector<8x8xf32>
    %134 = vector.shape_cast %131 : vector<8x8xf32> to vector<1x8x8xf32>
    tpu.vector_store %arg6[%c0_75, %c0_76, %c0_77], %134 {strides = array<i32>} : memref<4x8x8xf32, #tpu.memory_space<vmem>>, vector<1x8x8xf32>,
    %135 = vector.broadcast %119 : vector<1x8xf32> to vector<8x8xf32>
    %136 = arith.mulf %26, %135 : vector<8x8xf32>
    %137 = vector.broadcast %122 : vector<1x8xf32> to vector<8x8xf32>
    %138 = arith.addf %136, %137 : vector<8x8xf32>
    %cst_78 = arith.constant 0.000000e+00 : f32
    %139 = vector.broadcast %cst_78 : f32 to vector<8x8xf32>
    %140 = arith.cmpf ogt, %138, %139 : vector<8x8xf32>
    %cst_79 = arith.constant 0.00999999977 : f32
    %141 = vector.broadcast %cst_79 : f32 to vector<8x8xf32>
    %142 = arith.mulf %141, %138 : vector<8x8xf32>
    %143 = arith.select %140, %138, %142 : vector<8x8xi1>, vector<8x8xf32>
    %c1_80 = arith.constant 1 : index
    %c0_81 = arith.constant 0 : index
    %c0_82 = arith.constant 0 : index
    %144 = vector.load %arg6[%c1_80, %c0_81, %c0_82] : memref<4x8x8xf32, #tpu.memory_space<vmem>>, vector<1x8x8xf32>
    %145 = vector.shape_cast %144 : vector<1x8x8xf32> to vector<8x8xf32>
    %146 = vector.shape_cast %143 : vector<8x8xf32> to vector<1x8x8xf32>
    tpu.vector_store %arg6[%c1_80, %c0_81, %c0_82], %146 {strides = array<i32>} : memref<4x8x8xf32, #tpu.memory_space<vmem>>, vector<1x8x8xf32>,
    %147 = vector.broadcast %119 : vector<1x8xf32> to vector<8x8xf32>
    %148 = arith.mulf %43, %147 : vector<8x8xf32>
    %149 = vector.broadcast %122 : vector<1x8xf32> to vector<8x8xf32>
    %150 = arith.addf %148, %149 : vector<8x8xf32>
    %cst_83 = arith.constant 0.000000e+00 : f32
    %151 = vector.broadcast %cst_83 : f32 to vector<8x8xf32>
    %152 = arith.cmpf ogt, %150, %151 : vector<8x8xf32>
    %cst_84 = arith.constant 0.00999999977 : f32
    %153 = vector.broadcast %cst_84 : f32 to vector<8x8xf32>
    %154 = arith.mulf %153, %150 : vector<8x8xf32>
    %155 = arith.select %152, %150, %154 : vector<8x8xi1>, vector<8x8xf32>
    %c2_85 = arith.constant 2 : index
    %c0_86 = arith.constant 0 : index
    %c0_87 = arith.constant 0 : index
    %156 = vector.load %arg6[%c2_85, %c0_86, %c0_87] : memref<4x8x8xf32, #tpu.memory_space<vmem>>, vector<1x8x8xf32>
    %157 = vector.shape_cast %156 : vector<1x8x8xf32> to vector<8x8xf32>
    %158 = vector.shape_cast %155 : vector<8x8xf32> to vector<1x8x8xf32>
    tpu.vector_store %arg6[%c2_85, %c0_86, %c0_87], %158 {strides = array<i32>} : memref<4x8x8xf32, #tpu.memory_space<vmem>>, vector<1x8x8xf32>,
    %159 = vector.broadcast %119 : vector<1x8xf32> to vector<8x8xf32>
    %160 = arith.mulf %76, %159 : vector<8x8xf32>
    %161 = vector.broadcast %122 : vector<1x8xf32> to vector<8x8xf32>
    %162 = arith.addf %160, %161 : vector<8x8xf32>
    %cst_88 = arith.constant 0.000000e+00 : f32
    %163 = vector.broadcast %cst_88 : f32 to vector<8x8xf32>
    %164 = arith.cmpf ogt, %162, %163 : vector<8x8xf32>
    %cst_89 = arith.constant 0.00999999977 : f32
    %165 = vector.broadcast %cst_89 : f32 to vector<8x8xf32>
    %166 = arith.mulf %165, %162 : vector<8x8xf32>
    %167 = arith.select %164, %162, %166 : vector<8x8xi1>, vector<8x8xf32>
    %c3_90 = arith.constant 3 : index
    %c0_91 = arith.constant 0 : index
    %c0_92 = arith.constant 0 : index
    %168 = vector.load %arg6[%c3_90, %c0_91, %c0_92] : memref<4x8x8xf32, #tpu.memory_space<vmem>>, vector<1x8x8xf32>
    %169 = vector.shape_cast %168 : vector<1x8x8xf32> to vector<8x8xf32>
    %170 = vector.shape_cast %167 : vector<8x8xf32> to vector<1x8x8xf32>
    tpu.vector_store %arg6[%c3_90, %c0_91, %c0_92], %170 {strides = array<i32>} : memref<4x8x8xf32, #tpu.memory_space<vmem>>, vector<1x8x8xf32>,
    return
  }
  func.func @transform_0(%arg0: i32) -> (i32, i32, i32) {
    %c0_i32 = arith.constant 0 : i32
    %c0_i32_0 = arith.constant 0 : i32
    %c0_i32_1 = arith.constant 0 : i32
    %c0_i32_2 = arith.constant 0 : i32
    return %c0_i32, %c0_i32_0, %c0_i32_1 : i32, i32, i32
  }
  func.func @transform_1(%arg0: i32) -> (i32, i32, i32) {
    %c0_i32 = arith.constant 0 : i32
    %c0_i32_0 = arith.constant 0 : i32
    %c0_i32_1 = arith.constant 0 : i32
    %c0_i32_2 = arith.constant 0 : i32
    return %c0_i32, %c0_i32_0, %c0_i32_1 : i32, i32, i32
  }
  func.func @transform_2(%arg0: i32) -> (i32, i32) {
    %c0_i32 = arith.constant 0 : i32
    %c0_i32_0 = arith.constant 0 : i32
    %c0_i32_1 = arith.constant 0 : i32
    return %c0_i32, %c0_i32_0 : i32, i32
  }
  func.func @transform_3(%arg0: i32) -> (i32, i32) {
    %c0_i32 = arith.constant 0 : i32
    %c0_i32_0 = arith.constant 0 : i32
    %c0_i32_1 = arith.constant 0 : i32
    return %c0_i32, %c0_i32_0 : i32, i32
  }
  func.func @transform_4(%arg0: i32) -> (i32, i32) {
    %c0_i32 = arith.constant 0 : i32
    %c0_i32_0 = arith.constant 0 : i32
    %c0_i32_1 = arith.constant 0 : i32
    return %c0_i32, %c0_i32_0 : i32, i32
  }
  func.func @transform_5(%arg0: i32) -> (i32, i32, i32) {
    %c0_i32 = arith.constant 0 : i32
    %c0_i32_0 = arith.constant 0 : i32
    %c0_i32_1 = arith.constant 0 : i32
    %c0_i32_2 = arith.constant 0 : i32
    return %c0_i32, %c0_i32_0, %c0_i32_1 : i32, i32, i32
  }
}

module attributes {stable_mosaic.version = 11 : i64} {
  func.func @_convt_bn_lrelu_kernel(%arg0: i32, %arg1: memref<4x32x8xf32, #tpu.memory_space<vmem>>, %arg2: memref<9x8x8xf32, #tpu.memory_space<vmem>>, %arg3: memref<1x8xf32, #tpu.memory_space<vmem>>, %arg4: memref<1x8xf32, #tpu.memory_space<vmem>>, %arg5: memref<1x8xf32, #tpu.memory_space<vmem>>, %arg6: memref<4x32x8xf32, #tpu.memory_space<vmem>>) attributes {dimension_semantics = [#tpu.dimension_semantics<arbitrary>], iteration_bounds = array<i64: 1>, scalar_prefetch = 0 : i64, scratch_operands = 0 : i64, tpu.core_type = #tpu.core_type<tc>, window_params = [{pipeline_mode = #tpu.pipeline_mode<synchronous>, transform_indices = @transform_0, window_bounds = array<i64: 4, 32, 8>}, {pipeline_mode = #tpu.pipeline_mode<synchronous>, transform_indices = @transform_1, window_bounds = array<i64: 9, 8, 8>}, {pipeline_mode = #tpu.pipeline_mode<synchronous>, transform_indices = @transform_2, window_bounds = array<i64: 1, 8>}, {pipeline_mode = #tpu.pipeline_mode<synchronous>, transform_indices = @transform_3, window_bounds = array<i64: 1, 8>}, {pipeline_mode = #tpu.pipeline_mode<synchronous>, transform_indices = @transform_4, window_bounds = array<i64: 1, 8>}, {pipeline_mode = #tpu.pipeline_mode<synchronous>, transform_indices = @transform_5, window_bounds = array<i64: 4, 32, 8>}]} {
    %c0 = arith.constant 0 : index
    %c0_0 = arith.constant 0 : index
    %0 = vector.load %arg3[%c0, %c0_0] : memref<1x8xf32, #tpu.memory_space<vmem>>, vector<1x8xf32>
    %c0_1 = arith.constant 0 : index
    %c0_2 = arith.constant 0 : index
    %c0_3 = arith.constant 0 : index
    %1 = vector.load %arg1[%c0_1, %c0_2, %c0_3] : memref<4x32x8xf32, #tpu.memory_space<vmem>>, vector<1x32x8xf32>
    %2 = vector.shape_cast %1 : vector<1x32x8xf32> to vector<32x8xf32>
    %3 = arith.truncf %2 : vector<32x8xf32> to vector<32x8xbf16>
    %c4 = arith.constant 4 : index
    %c0_4 = arith.constant 0 : index
    %c0_5 = arith.constant 0 : index
    %4 = vector.load %arg2[%c4, %c0_4, %c0_5] : memref<9x8x8xf32, #tpu.memory_space<vmem>>, vector<1x8x8xf32>
    %5 = vector.shape_cast %4 : vector<1x8x8xf32> to vector<8x8xf32>
    %6 = arith.truncf %5 : vector<8x8xf32> to vector<8x8xbf16>
    %cst = arith.constant dense<0.000000e+00> : vector<32x8xf32>
    %7 = tpu.matmul %3, %6, %cst {dimension_numbers = #tpu.dot_dimension_numbers<[1], [0], [0], [1], [0, 0, 1, 1], [], []>} : vector<32x8xbf16>, vector<8x8xbf16>, vector<32x8xf32> -> vector<32x8xf32>
    %8 = vector.broadcast %0 : vector<1x8xf32> to vector<32x8xf32>
    %9 = arith.addf %7, %8 : vector<32x8xf32>
    %c0_6 = arith.constant 0 : index
    %c0_7 = arith.constant 0 : index
    %c0_8 = arith.constant 0 : index
    %10 = vector.load %arg1[%c0_6, %c0_7, %c0_8] : memref<4x32x8xf32, #tpu.memory_space<vmem>>, vector<1x32x8xf32>
    %11 = vector.shape_cast %10 : vector<1x32x8xf32> to vector<32x8xf32>
    %12 = arith.truncf %11 : vector<32x8xf32> to vector<32x8xbf16>
    %c5 = arith.constant 5 : index
    %c0_9 = arith.constant 0 : index
    %c0_10 = arith.constant 0 : index
    %13 = vector.load %arg2[%c5, %c0_9, %c0_10] : memref<9x8x8xf32, #tpu.memory_space<vmem>>, vector<1x8x8xf32>
    %14 = vector.shape_cast %13 : vector<1x8x8xf32> to vector<8x8xf32>
    %15 = arith.truncf %14 : vector<8x8xf32> to vector<8x8xbf16>
    %cst_11 = arith.constant dense<0.000000e+00> : vector<32x8xf32>
    %16 = tpu.matmul %12, %15, %cst_11 {dimension_numbers = #tpu.dot_dimension_numbers<[1], [0], [0], [1], [0, 0, 1, 1], [], []>} : vector<32x8xbf16>, vector<8x8xbf16>, vector<32x8xf32> -> vector<32x8xf32>
    %c1 = arith.constant 1 : index
    %c0_12 = arith.constant 0 : index
    %c0_13 = arith.constant 0 : index
    %17 = vector.load %arg1[%c1, %c0_12, %c0_13] : memref<4x32x8xf32, #tpu.memory_space<vmem>>, vector<1x32x8xf32>
    %18 = vector.shape_cast %17 : vector<1x32x8xf32> to vector<32x8xf32>
    %19 = arith.truncf %18 : vector<32x8xf32> to vector<32x8xbf16>
    %c3 = arith.constant 3 : index
    %c0_14 = arith.constant 0 : index
    %c0_15 = arith.constant 0 : index
    %20 = vector.load %arg2[%c3, %c0_14, %c0_15] : memref<9x8x8xf32, #tpu.memory_space<vmem>>, vector<1x8x8xf32>
    %21 = vector.shape_cast %20 : vector<1x8x8xf32> to vector<8x8xf32>
    %22 = arith.truncf %21 : vector<8x8xf32> to vector<8x8xbf16>
    %cst_16 = arith.constant dense<0.000000e+00> : vector<32x8xf32>
    %23 = tpu.matmul %19, %22, %cst_16 {dimension_numbers = #tpu.dot_dimension_numbers<[1], [0], [0], [1], [0, 0, 1, 1], [], []>} : vector<32x8xbf16>, vector<8x8xbf16>, vector<32x8xf32> -> vector<32x8xf32>
    %24 = arith.addf %16, %23 : vector<32x8xf32>
    %25 = vector.broadcast %0 : vector<1x8xf32> to vector<32x8xf32>
    %26 = arith.addf %24, %25 : vector<32x8xf32>
    %c0_17 = arith.constant 0 : index
    %c0_18 = arith.constant 0 : index
    %c0_19 = arith.constant 0 : index
    %27 = vector.load %arg1[%c0_17, %c0_18, %c0_19] : memref<4x32x8xf32, #tpu.memory_space<vmem>>, vector<1x32x8xf32>
    %28 = vector.shape_cast %27 : vector<1x32x8xf32> to vector<32x8xf32>
    %29 = arith.truncf %28 : vector<32x8xf32> to vector<32x8xbf16>
    %c7 = arith.constant 7 : index
    %c0_20 = arith.constant 0 : index
    %c0_21 = arith.constant 0 : index
    %30 = vector.load %arg2[%c7, %c0_20, %c0_21] : memref<9x8x8xf32, #tpu.memory_space<vmem>>, vector<1x8x8xf32>
    %31 = vector.shape_cast %30 : vector<1x8x8xf32> to vector<8x8xf32>
    %32 = arith.truncf %31 : vector<8x8xf32> to vector<8x8xbf16>
    %cst_22 = arith.constant dense<0.000000e+00> : vector<32x8xf32>
    %33 = tpu.matmul %29, %32, %cst_22 {dimension_numbers = #tpu.dot_dimension_numbers<[1], [0], [0], [1], [0, 0, 1, 1], [], []>} : vector<32x8xbf16>, vector<8x8xbf16>, vector<32x8xf32> -> vector<32x8xf32>
    %c2 = arith.constant 2 : index
    %c0_23 = arith.constant 0 : index
    %c0_24 = arith.constant 0 : index
    %34 = vector.load %arg1[%c2, %c0_23, %c0_24] : memref<4x32x8xf32, #tpu.memory_space<vmem>>, vector<1x32x8xf32>
    %35 = vector.shape_cast %34 : vector<1x32x8xf32> to vector<32x8xf32>
    %36 = arith.truncf %35 : vector<32x8xf32> to vector<32x8xbf16>
    %c1_25 = arith.constant 1 : index
    %c0_26 = arith.constant 0 : index
    %c0_27 = arith.constant 0 : index
    %37 = vector.load %arg2[%c1_25, %c0_26, %c0_27] : memref<9x8x8xf32, #tpu.memory_space<vmem>>, vector<1x8x8xf32>
    %38 = vector.shape_cast %37 : vector<1x8x8xf32> to vector<8x8xf32>
    %39 = arith.truncf %38 : vector<8x8xf32> to vector<8x8xbf16>
    %cst_28 = arith.constant dense<0.000000e+00> : vector<32x8xf32>
    %40 = tpu.matmul %36, %39, %cst_28 {dimension_numbers = #tpu.dot_dimension_numbers<[1], [0], [0], [1], [0, 0, 1, 1], [], []>} : vector<32x8xbf16>, vector<8x8xbf16>, vector<32x8xf32> -> vector<32x8xf32>
    %41 = arith.addf %33, %40 : vector<32x8xf32>
    %42 = vector.broadcast %0 : vector<1x8xf32> to vector<32x8xf32>
    %43 = arith.addf %41, %42 : vector<32x8xf32>
    %c0_29 = arith.constant 0 : index
    %c0_30 = arith.constant 0 : index
    %c0_31 = arith.constant 0 : index
    %44 = vector.load %arg1[%c0_29, %c0_30, %c0_31] : memref<4x32x8xf32, #tpu.memory_space<vmem>>, vector<1x32x8xf32>
    %45 = vector.shape_cast %44 : vector<1x32x8xf32> to vector<32x8xf32>
    %46 = arith.truncf %45 : vector<32x8xf32> to vector<32x8xbf16>
    %c8 = arith.constant 8 : index
    %c0_32 = arith.constant 0 : index
    %c0_33 = arith.constant 0 : index
    %47 = vector.load %arg2[%c8, %c0_32, %c0_33] : memref<9x8x8xf32, #tpu.memory_space<vmem>>, vector<1x8x8xf32>
    %48 = vector.shape_cast %47 : vector<1x8x8xf32> to vector<8x8xf32>
    %49 = arith.truncf %48 : vector<8x8xf32> to vector<8x8xbf16>
    %cst_34 = arith.constant dense<0.000000e+00> : vector<32x8xf32>
    %50 = tpu.matmul %46, %49, %cst_34 {dimension_numbers = #tpu.dot_dimension_numbers<[1], [0], [0], [1], [0, 0, 1, 1], [], []>} : vector<32x8xbf16>, vector<8x8xbf16>, vector<32x8xf32> -> vector<32x8xf32>
    %c1_35 = arith.constant 1 : index
    %c0_36 = arith.constant 0 : index
    %c0_37 = arith.constant 0 : index
    %51 = vector.load %arg1[%c1_35, %c0_36, %c0_37] : memref<4x32x8xf32, #tpu.memory_space<vmem>>, vector<1x32x8xf32>
    %52 = vector.shape_cast %51 : vector<1x32x8xf32> to vector<32x8xf32>
    %53 = arith.truncf %52 : vector<32x8xf32> to vector<32x8xbf16>
    %c6 = arith.constant 6 : index
    %c0_38 = arith.constant 0 : index
    %c0_39 = arith.constant 0 : index
    %54 = vector.load %arg2[%c6, %c0_38, %c0_39] : memref<9x8x8xf32, #tpu.memory_space<vmem>>, vector<1x8x8xf32>
    %55 = vector.shape_cast %54 : vector<1x8x8xf32> to vector<8x8xf32>
    %56 = arith.truncf %55 : vector<8x8xf32> to vector<8x8xbf16>
    %cst_40 = arith.constant dense<0.000000e+00> : vector<32x8xf32>
    %57 = tpu.matmul %53, %56, %cst_40 {dimension_numbers = #tpu.dot_dimension_numbers<[1], [0], [0], [1], [0, 0, 1, 1], [], []>} : vector<32x8xbf16>, vector<8x8xbf16>, vector<32x8xf32> -> vector<32x8xf32>
    %58 = arith.addf %50, %57 : vector<32x8xf32>
    %c2_41 = arith.constant 2 : index
    %c0_42 = arith.constant 0 : index
    %c0_43 = arith.constant 0 : index
    %59 = vector.load %arg1[%c2_41, %c0_42, %c0_43] : memref<4x32x8xf32, #tpu.memory_space<vmem>>, vector<1x32x8xf32>
    %60 = vector.shape_cast %59 : vector<1x32x8xf32> to vector<32x8xf32>
    %61 = arith.truncf %60 : vector<32x8xf32> to vector<32x8xbf16>
    %c2_44 = arith.constant 2 : index
    %c0_45 = arith.constant 0 : index
    %c0_46 = arith.constant 0 : index
    %62 = vector.load %arg2[%c2_44, %c0_45, %c0_46] : memref<9x8x8xf32, #tpu.memory_space<vmem>>, vector<1x8x8xf32>
    %63 = vector.shape_cast %62 : vector<1x8x8xf32> to vector<8x8xf32>
    %64 = arith.truncf %63 : vector<8x8xf32> to vector<8x8xbf16>
    %cst_47 = arith.constant dense<0.000000e+00> : vector<32x8xf32>
    %65 = tpu.matmul %61, %64, %cst_47 {dimension_numbers = #tpu.dot_dimension_numbers<[1], [0], [0], [1], [0, 0, 1, 1], [], []>} : vector<32x8xbf16>, vector<8x8xbf16>, vector<32x8xf32> -> vector<32x8xf32>
    %66 = arith.addf %58, %65 : vector<32x8xf32>
    %c3_48 = arith.constant 3 : index
    %c0_49 = arith.constant 0 : index
    %c0_50 = arith.constant 0 : index
    %67 = vector.load %arg1[%c3_48, %c0_49, %c0_50] : memref<4x32x8xf32, #tpu.memory_space<vmem>>, vector<1x32x8xf32>
    %68 = vector.shape_cast %67 : vector<1x32x8xf32> to vector<32x8xf32>
    %69 = arith.truncf %68 : vector<32x8xf32> to vector<32x8xbf16>
    %c0_51 = arith.constant 0 : index
    %c0_52 = arith.constant 0 : index
    %c0_53 = arith.constant 0 : index
    %70 = vector.load %arg2[%c0_51, %c0_52, %c0_53] : memref<9x8x8xf32, #tpu.memory_space<vmem>>, vector<1x8x8xf32>
    %71 = vector.shape_cast %70 : vector<1x8x8xf32> to vector<8x8xf32>
    %72 = arith.truncf %71 : vector<8x8xf32> to vector<8x8xbf16>
    %cst_54 = arith.constant dense<0.000000e+00> : vector<32x8xf32>
    %73 = tpu.matmul %69, %72, %cst_54 {dimension_numbers = #tpu.dot_dimension_numbers<[1], [0], [0], [1], [0, 0, 1, 1], [], []>} : vector<32x8xbf16>, vector<8x8xbf16>, vector<32x8xf32> -> vector<32x8xf32>
    %74 = arith.addf %66, %73 : vector<32x8xf32>
    %75 = vector.broadcast %0 : vector<1x8xf32> to vector<32x8xf32>
    %76 = arith.addf %74, %75 : vector<32x8xf32>
    %cst_55 = arith.constant 0.000000e+00 : f32
    %77 = vector.broadcast %cst_55 : f32 to vector<1x8xf32>
    %cst_56 = arith.constant 0.000000e+00 : f32
    %78 = vector.broadcast %cst_56 : f32 to vector<1x8xf32>
    %cst_57 = arith.constant dense<0.000000e+00> : vector<8xf32>
    %79 = vector.multi_reduction <add>, %9, %cst_57 [0] : vector<32x8xf32> to vector<8xf32>
    %80 = vector.shape_cast %79 : vector<8xf32> to vector<1x8xf32>
    %81 = arith.addf %77, %80 : vector<1x8xf32>
    %82 = arith.mulf %9, %9 : vector<32x8xf32>
    %cst_58 = arith.constant dense<0.000000e+00> : vector<8xf32>
    %83 = vector.multi_reduction <add>, %82, %cst_58 [0] : vector<32x8xf32> to vector<8xf32>
    %84 = vector.shape_cast %83 : vector<8xf32> to vector<1x8xf32>
    %85 = arith.addf %78, %84 : vector<1x8xf32>
    %cst_59 = arith.constant dense<0.000000e+00> : vector<8xf32>
    %86 = vector.multi_reduction <add>, %26, %cst_59 [0] : vector<32x8xf32> to vector<8xf32>
    %87 = vector.shape_cast %86 : vector<8xf32> to vector<1x8xf32>
    %88 = arith.addf %81, %87 : vector<1x8xf32>
    %89 = arith.mulf %26, %26 : vector<32x8xf32>
    %cst_60 = arith.constant dense<0.000000e+00> : vector<8xf32>
    %90 = vector.multi_reduction <add>, %89, %cst_60 [0] : vector<32x8xf32> to vector<8xf32>
    %91 = vector.shape_cast %90 : vector<8xf32> to vector<1x8xf32>
    %92 = arith.addf %85, %91 : vector<1x8xf32>
    %cst_61 = arith.constant dense<0.000000e+00> : vector<8xf32>
    %93 = vector.multi_reduction <add>, %43, %cst_61 [0] : vector<32x8xf32> to vector<8xf32>
    %94 = vector.shape_cast %93 : vector<8xf32> to vector<1x8xf32>
    %95 = arith.addf %88, %94 : vector<1x8xf32>
    %96 = arith.mulf %43, %43 : vector<32x8xf32>
    %cst_62 = arith.constant dense<0.000000e+00> : vector<8xf32>
    %97 = vector.multi_reduction <add>, %96, %cst_62 [0] : vector<32x8xf32> to vector<8xf32>
    %98 = vector.shape_cast %97 : vector<8xf32> to vector<1x8xf32>
    %99 = arith.addf %92, %98 : vector<1x8xf32>
    %cst_63 = arith.constant dense<0.000000e+00> : vector<8xf32>
    %100 = vector.multi_reduction <add>, %76, %cst_63 [0] : vector<32x8xf32> to vector<8xf32>
    %101 = vector.shape_cast %100 : vector<8xf32> to vector<1x8xf32>
    %102 = arith.addf %95, %101 : vector<1x8xf32>
    %103 = arith.mulf %76, %76 : vector<32x8xf32>
    %cst_64 = arith.constant dense<0.000000e+00> : vector<8xf32>
    %104 = vector.multi_reduction <add>, %103, %cst_64 [0] : vector<32x8xf32> to vector<8xf32>
    %105 = vector.shape_cast %104 : vector<8xf32> to vector<1x8xf32>
    %106 = arith.addf %99, %105 : vector<1x8xf32>
    %cst_65 = arith.constant 7.812500e-03 : f32
    %107 = vector.broadcast %cst_65 : f32 to vector<1x8xf32>
    %108 = arith.mulf %102, %107 : vector<1x8xf32>
    %cst_66 = arith.constant 7.812500e-03 : f32
    %109 = vector.broadcast %cst_66 : f32 to vector<1x8xf32>
    %110 = arith.mulf %106, %109 : vector<1x8xf32>
    %111 = arith.mulf %108, %108 : vector<1x8xf32>
    %112 = arith.subf %110, %111 : vector<1x8xf32>
    %cst_67 = arith.constant 0.000000e+00 : f32
    %113 = vector.broadcast %cst_67 : f32 to vector<1x8xf32>
    %114 = arith.maximumf %112, %113 : vector<1x8xf32>
    %c0_68 = arith.constant 0 : index
    %c0_69 = arith.constant 0 : index
    %115 = vector.load %arg4[%c0_68, %c0_69] : memref<1x8xf32, #tpu.memory_space<vmem>>, vector<1x8xf32>
    %cst_70 = arith.constant 9.99999974E-6 : f32
    %116 = vector.broadcast %cst_70 : f32 to vector<1x8xf32>
    %117 = arith.addf %114, %116 : vector<1x8xf32>
    %118 = math.rsqrt %117 : vector<1x8xf32>
    %119 = arith.mulf %115, %118 : vector<1x8xf32>
    %c0_71 = arith.constant 0 : index
    %c0_72 = arith.constant 0 : index
    %120 = vector.load %arg5[%c0_71, %c0_72] : memref<1x8xf32, #tpu.memory_space<vmem>>, vector<1x8xf32>
    %121 = arith.mulf %108, %119 : vector<1x8xf32>
    %122 = arith.subf %120, %121 : vector<1x8xf32>
    %123 = vector.broadcast %119 : vector<1x8xf32> to vector<32x8xf32>
    %124 = arith.mulf %9, %123 : vector<32x8xf32>
    %125 = vector.broadcast %122 : vector<1x8xf32> to vector<32x8xf32>
    %126 = arith.addf %124, %125 : vector<32x8xf32>
    %cst_73 = arith.constant 0.000000e+00 : f32
    %127 = vector.broadcast %cst_73 : f32 to vector<32x8xf32>
    %128 = arith.cmpf ogt, %126, %127 : vector<32x8xf32>
    %cst_74 = arith.constant 0.00999999977 : f32
    %129 = vector.broadcast %cst_74 : f32 to vector<32x8xf32>
    %130 = arith.mulf %129, %126 : vector<32x8xf32>
    %131 = arith.select %128, %126, %130 : vector<32x8xi1>, vector<32x8xf32>
    %c0_75 = arith.constant 0 : index
    %c0_76 = arith.constant 0 : index
    %c0_77 = arith.constant 0 : index
    %132 = vector.load %arg6[%c0_75, %c0_76, %c0_77] : memref<4x32x8xf32, #tpu.memory_space<vmem>>, vector<1x32x8xf32>
    %133 = vector.shape_cast %132 : vector<1x32x8xf32> to vector<32x8xf32>
    %134 = vector.shape_cast %131 : vector<32x8xf32> to vector<1x32x8xf32>
    tpu.vector_store %arg6[%c0_75, %c0_76, %c0_77], %134 {strides = array<i32>} : memref<4x32x8xf32, #tpu.memory_space<vmem>>, vector<1x32x8xf32>,
    %135 = vector.broadcast %119 : vector<1x8xf32> to vector<32x8xf32>
    %136 = arith.mulf %26, %135 : vector<32x8xf32>
    %137 = vector.broadcast %122 : vector<1x8xf32> to vector<32x8xf32>
    %138 = arith.addf %136, %137 : vector<32x8xf32>
    %cst_78 = arith.constant 0.000000e+00 : f32
    %139 = vector.broadcast %cst_78 : f32 to vector<32x8xf32>
    %140 = arith.cmpf ogt, %138, %139 : vector<32x8xf32>
    %cst_79 = arith.constant 0.00999999977 : f32
    %141 = vector.broadcast %cst_79 : f32 to vector<32x8xf32>
    %142 = arith.mulf %141, %138 : vector<32x8xf32>
    %143 = arith.select %140, %138, %142 : vector<32x8xi1>, vector<32x8xf32>
    %c1_80 = arith.constant 1 : index
    %c0_81 = arith.constant 0 : index
    %c0_82 = arith.constant 0 : index
    %144 = vector.load %arg6[%c1_80, %c0_81, %c0_82] : memref<4x32x8xf32, #tpu.memory_space<vmem>>, vector<1x32x8xf32>
    %145 = vector.shape_cast %144 : vector<1x32x8xf32> to vector<32x8xf32>
    %146 = vector.shape_cast %143 : vector<32x8xf32> to vector<1x32x8xf32>
    tpu.vector_store %arg6[%c1_80, %c0_81, %c0_82], %146 {strides = array<i32>} : memref<4x32x8xf32, #tpu.memory_space<vmem>>, vector<1x32x8xf32>,
    %147 = vector.broadcast %119 : vector<1x8xf32> to vector<32x8xf32>
    %148 = arith.mulf %43, %147 : vector<32x8xf32>
    %149 = vector.broadcast %122 : vector<1x8xf32> to vector<32x8xf32>
    %150 = arith.addf %148, %149 : vector<32x8xf32>
    %cst_83 = arith.constant 0.000000e+00 : f32
    %151 = vector.broadcast %cst_83 : f32 to vector<32x8xf32>
    %152 = arith.cmpf ogt, %150, %151 : vector<32x8xf32>
    %cst_84 = arith.constant 0.00999999977 : f32
    %153 = vector.broadcast %cst_84 : f32 to vector<32x8xf32>
    %154 = arith.mulf %153, %150 : vector<32x8xf32>
    %155 = arith.select %152, %150, %154 : vector<32x8xi1>, vector<32x8xf32>
    %c2_85 = arith.constant 2 : index
    %c0_86 = arith.constant 0 : index
    %c0_87 = arith.constant 0 : index
    %156 = vector.load %arg6[%c2_85, %c0_86, %c0_87] : memref<4x32x8xf32, #tpu.memory_space<vmem>>, vector<1x32x8xf32>
    %157 = vector.shape_cast %156 : vector<1x32x8xf32> to vector<32x8xf32>
    %158 = vector.shape_cast %155 : vector<32x8xf32> to vector<1x32x8xf32>
    tpu.vector_store %arg6[%c2_85, %c0_86, %c0_87], %158 {strides = array<i32>} : memref<4x32x8xf32, #tpu.memory_space<vmem>>, vector<1x32x8xf32>,
    %159 = vector.broadcast %119 : vector<1x8xf32> to vector<32x8xf32>
    %160 = arith.mulf %76, %159 : vector<32x8xf32>
    %161 = vector.broadcast %122 : vector<1x8xf32> to vector<32x8xf32>
    %162 = arith.addf %160, %161 : vector<32x8xf32>
    %cst_88 = arith.constant 0.000000e+00 : f32
    %163 = vector.broadcast %cst_88 : f32 to vector<32x8xf32>
    %164 = arith.cmpf ogt, %162, %163 : vector<32x8xf32>
    %cst_89 = arith.constant 0.00999999977 : f32
    %165 = vector.broadcast %cst_89 : f32 to vector<32x8xf32>
    %166 = arith.mulf %165, %162 : vector<32x8xf32>
    %167 = arith.select %164, %162, %166 : vector<32x8xi1>, vector<32x8xf32>
    %c3_90 = arith.constant 3 : index
    %c0_91 = arith.constant 0 : index
    %c0_92 = arith.constant 0 : index
    %168 = vector.load %arg6[%c3_90, %c0_91, %c0_92] : memref<4x32x8xf32, #tpu.memory_space<vmem>>, vector<1x32x8xf32>
    %169 = vector.shape_cast %168 : vector<1x32x8xf32> to vector<32x8xf32>
    %170 = vector.shape_cast %167 : vector<32x8xf32> to vector<1x32x8xf32>
    tpu.vector_store %arg6[%c3_90, %c0_91, %c0_92], %170 {strides = array<i32>} : memref<4x32x8xf32, #tpu.memory_space<vmem>>, vector<1x32x8xf32>,
    return
  }
  func.func @transform_0(%arg0: i32) -> (i32, i32, i32) {
    %c0_i32 = arith.constant 0 : i32
    %c0_i32_0 = arith.constant 0 : i32
    %c0_i32_1 = arith.constant 0 : i32
    %c0_i32_2 = arith.constant 0 : i32
    return %c0_i32, %c0_i32_0, %c0_i32_1 : i32, i32, i32
  }
  func.func @transform_1(%arg0: i32) -> (i32, i32, i32) {
    %c0_i32 = arith.constant 0 : i32
    %c0_i32_0 = arith.constant 0 : i32
    %c0_i32_1 = arith.constant 0 : i32
    %c0_i32_2 = arith.constant 0 : i32
    return %c0_i32, %c0_i32_0, %c0_i32_1 : i32, i32, i32
  }
  func.func @transform_2(%arg0: i32) -> (i32, i32) {
    %c0_i32 = arith.constant 0 : i32
    %c0_i32_0 = arith.constant 0 : i32
    %c0_i32_1 = arith.constant 0 : i32
    return %c0_i32, %c0_i32_0 : i32, i32
  }
  func.func @transform_3(%arg0: i32) -> (i32, i32) {
    %c0_i32 = arith.constant 0 : i32
    %c0_i32_0 = arith.constant 0 : i32
    %c0_i32_1 = arith.constant 0 : i32
    return %c0_i32, %c0_i32_0 : i32, i32
  }
  func.func @transform_4(%arg0: i32) -> (i32, i32) {
    %c0_i32 = arith.constant 0 : i32
    %c0_i32_0 = arith.constant 0 : i32
    %c0_i32_1 = arith.constant 0 : i32
    return %c0_i32, %c0_i32_0 : i32, i32
  }
  func.func @transform_5(%arg0: i32) -> (i32, i32, i32) {
    %c0_i32 = arith.constant 0 : i32
    %c0_i32_0 = arith.constant 0 : i32
    %c0_i32_1 = arith.constant 0 : i32
    %c0_i32_2 = arith.constant 0 : i32
    return %c0_i32, %c0_i32_0, %c0_i32_1 : i32, i32, i32
  }
}

module attributes {stable_mosaic.version = 11 : i64} {
  func.func @_matmul_epilogue_kernel(%arg0: i32, %arg1: memref<128x72xf32, #tpu.memory_space<vmem>>, %arg2: memref<72x3xf32, #tpu.memory_space<vmem>>, %arg3: memref<1x3xf32, #tpu.memory_space<vmem>>, %arg4: memref<1x3xf32, #tpu.memory_space<vmem>>, %arg5: memref<1x3xf32, #tpu.memory_space<vmem>>, %arg6: memref<128x3xf32, #tpu.memory_space<vmem>>) attributes {dimension_semantics = [#tpu.dimension_semantics<arbitrary>], iteration_bounds = array<i64: 1>, scalar_prefetch = 0 : i64, scratch_operands = 0 : i64, tpu.core_type = #tpu.core_type<tc>, window_params = [{pipeline_mode = #tpu.pipeline_mode<synchronous>, transform_indices = @transform_0, window_bounds = array<i64: 128, 72>}, {pipeline_mode = #tpu.pipeline_mode<synchronous>, transform_indices = @transform_1, window_bounds = array<i64: 72, 3>}, {pipeline_mode = #tpu.pipeline_mode<synchronous>, transform_indices = @transform_2, window_bounds = array<i64: 1, 3>}, {pipeline_mode = #tpu.pipeline_mode<synchronous>, transform_indices = @transform_3, window_bounds = array<i64: 1, 3>}, {pipeline_mode = #tpu.pipeline_mode<synchronous>, transform_indices = @transform_4, window_bounds = array<i64: 1, 3>}, {pipeline_mode = #tpu.pipeline_mode<synchronous>, transform_indices = @transform_5, window_bounds = array<i64: 128, 3>}]} {
    %c0 = arith.constant 0 : index
    %c0_0 = arith.constant 0 : index
    %0 = vector.load %arg1[%c0, %c0_0] : memref<128x72xf32, #tpu.memory_space<vmem>>, vector<128x72xf32>
    %1 = arith.truncf %0 : vector<128x72xf32> to vector<128x72xbf16>
    %c0_1 = arith.constant 0 : index
    %c0_2 = arith.constant 0 : index
    %2 = vector.load %arg2[%c0_1, %c0_2] : memref<72x3xf32, #tpu.memory_space<vmem>>, vector<72x3xf32>
    %3 = arith.truncf %2 : vector<72x3xf32> to vector<72x3xbf16>
    %cst = arith.constant dense<0.000000e+00> : vector<128x3xf32>
    %4 = tpu.matmul %1, %3, %cst {dimension_numbers = #tpu.dot_dimension_numbers<[1], [0], [0], [1], [0, 0, 1, 1], [], []>} : vector<128x72xbf16>, vector<72x3xbf16>, vector<128x3xf32> -> vector<128x3xf32>
    %c0_3 = arith.constant 0 : index
    %c0_4 = arith.constant 0 : index
    %5 = vector.load %arg3[%c0_3, %c0_4] : memref<1x3xf32, #tpu.memory_space<vmem>>, vector<1x3xf32>
    %6 = vector.broadcast %5 : vector<1x3xf32> to vector<128x3xf32>
    %7 = arith.addf %4, %6 : vector<128x3xf32>
    %8 = math.tanh %7 : vector<128x3xf32>
    %cst_5 = arith.constant 3.000000e+00 : f32
    %9 = vector.broadcast %cst_5 : f32 to vector<128x3xf32>
    %10 = arith.mulf %9, %8 : vector<128x3xf32>
    %c0_6 = arith.constant 0 : index
    %c0_7 = arith.constant 0 : index
    %11 = vector.load %arg6[%c0_6, %c0_7] : memref<128x3xf32, #tpu.memory_space<vmem>>, vector<128x3xf32>
    tpu.vector_store %arg6[%c0_6, %c0_7], %10 {strides = array<i32>} : memref<128x3xf32, #tpu.memory_space<vmem>>, vector<128x3xf32>,
    return
  }
  func.func @transform_0(%arg0: i32) -> (i32, i32) {
    %c0_i32 = arith.constant 0 : i32
    %c0_i32_0 = arith.constant 0 : i32
    %c0_i32_1 = arith.constant 0 : i32
    return %c0_i32, %c0_i32_0 : i32, i32
  }
  func.func @transform_1(%arg0: i32) -> (i32, i32) {
    %c0_i32 = arith.constant 0 : i32
    %c0_i32_0 = arith.constant 0 : i32
    %c0_i32_1 = arith.constant 0 : i32
    return %c0_i32, %c0_i32_0 : i32, i32
  }
  func.func @transform_2(%arg0: i32) -> (i32, i32) {
    %c0_i32 = arith.constant 0 : i32
    %c0_i32_0 = arith.constant 0 : i32
    %c0_i32_1 = arith.constant 0 : i32
    return %c0_i32, %c0_i32_0 : i32, i32
  }
  func.func @transform_3(%arg0: i32) -> (i32, i32) {
    %c0_i32 = arith.constant 0 : i32
    %c0_i32_0 = arith.constant 0 : i32
    %c0_i32_1 = arith.constant 0 : i32
    return %c0_i32, %c0_i32_0 : i32, i32
  }
  func.func @transform_4(%arg0: i32) -> (i32, i32) {
    %c0_i32 = arith.constant 0 : i32
    %c0_i32_0 = arith.constant 0 : i32
    %c0_i32_1 = arith.constant 0 : i32
    return %c0_i32, %c0_i32_0 : i32, i32
  }
  func.func @transform_5(%arg0: i32) -> (i32, i32) {
    %c0_i32 = arith.constant 0 : i32
    %c0_i32_0 = arith.constant 0 : i32
    %c0_i32_1 = arith.constant 0 : i32
    return %c0_i32, %c0_i32_0 : i32, i32
  }
}

</mosaic_0001>

<llo_original>
// kernel: vae_forward.6
$region0: #{vae_forward.6}
  #allocation0 [shape = 'u32[]', space=smem, size = 0x4, offset = 0x4, fixed_abs, tag = 'smem constant byte address 0x4 - core index']
  #allocation1 [shape = 'u32[144,128]{1,0:T(1,128)}', space=vmem, size = 0x12000, scoped, tag = 'internal scratch']
  %s0 = inlined_call_operand.vmem [shape: f32[32,27], index: 0, kind: input, shape index: {}]
  %s1 = inlined_call_operand.vmem [shape: f32[27,8], index: 1, kind: input, shape index: {}]
  %s2 = inlined_call_operand.vmem [shape: f32[1,8], index: 2, kind: input, shape index: {}]
  %s3 = inlined_call_operand.vmem [shape: f32[1,8], index: 3, kind: input, shape index: {}]
  %s4 = inlined_call_operand.vmem [shape: f32[1,8], index: 4, kind: input, shape index: {}]
  %s5 = inlined_call_operand.vmem [shape: f32[32,8], index: 5, kind: output, shape index: {}]
  %s6 = sld [smem:[#allocation0]]
  $region30: #{vae_forward.6} parent=0
    _
  %s8 = ssub.s32 1, %s6
  %s9 = scalar_select 0, %s8, %s6
  // Predicated region
  $region2: #{vae_forward.6} parent=0 // pred_check
    _
  $region3: #{vae_forward.6} parent=0 // pred_check_branch
    %11 = sbr.rel (0) target = $region5
  $region4: #{vae_forward.6} parent=0 // pred_region
    _
  $region5: #{vae_forward.6} parent=0 // pred_fallthru
    _
  // Predicated region
  $region6: #{vae_forward.6} parent=0 // pred_check
    _
  $region7: #{vae_forward.6} parent=0 // pred_check_branch
    %13 = sbr.rel (0) target = $region9
  $region8: #{vae_forward.6} parent=0 // pred_region
    _
  $region9: #{vae_forward.6} parent=0 // pred_fallthru
    _
  // Predicated region
  $region10: #{vae_forward.6} parent=0 // pred_check
    _
  $region11: #{vae_forward.6} parent=0 // pred_check_branch
    %15 = sbr.rel (0) target = $region13
  $region12: #{vae_forward.6} parent=0 // pred_region
    _
  $region13: #{vae_forward.6} parent=0 // pred_fallthru
    _
  // Predicated region
  $region14: #{vae_forward.6} parent=0 // pred_check
    _
  $region15: #{vae_forward.6} parent=0 // pred_check_branch
    %17 = sbr.rel (0) target = $region17
  $region16: #{vae_forward.6} parent=0 // pred_region
    _
  $region17: #{vae_forward.6} parent=0 // pred_fallthru
    _
  // Predicated region
  $region18: #{vae_forward.6} parent=0 // pred_check
    _
  $region19: #{vae_forward.6} parent=0 // pred_check_branch
    %19 = sbr.rel (0) target = $region21
  $region20: #{vae_forward.6} parent=0 // pred_region
    _
  $region21: #{vae_forward.6} parent=0 // pred_fallthru
    _
  %v21 = vld [vmem:[%s0] sm:$0xff]
  %v22 = vld [vmem:[%s0 + $0x8] sm:$0xff]
  %v23 = vld [vmem:[%s0 + $0x10] sm:$0xff]
  %v24 = vld [vmem:[%s0 + $0x18] sm:$0xff]
  %v25 = vpack.c.bf16 %v22, %v21
  %v26 = vpack.c.bf16 %v24, %v23
  %v27 = vld [vmem:[%s1] sm:$0xff]
  %v28 = vld [vmem:[%s1 + $0x8] sm:$0xff]
  %v29 = vld [vmem:[%s1 + $0x10] sm:$0xff]
  %v30 = vld [vmem:[%s1 + $0x18] sm:$0x7]
  %v31 = vpack.c.bf16 %v28, %v27
  %v32 = vpack.c.bf16 %v30, %v29
  %v33 = vld [vmem:[%s2] sm:$0x1]
  %v35 = vlaneseq
  %v36 = vshrl.u32 %v35, 7
  %v37 = vsub.s32 0, %v36
  %v38 = vrot.slane %v33, %v37
  %vm40 = vcmask 220160
  %v42 = vsel %vm40, %v25, 0
  %v45 = vsel %vm40, %v26, 0
  %vm47 = vcmask 1044480
  %vm48 = vcmask 1045504
  %v49 = vsel %vm47, 4294967295, 65535
  %v50 = vsel %vm48, %v49, 0
  %v52 = vand.u32 %v32, %v50
  %54 = vmatprep.subr.bf16.mxu0 0
  %55 = vmatpush1.bf16.msra.mxu0 0
  %56 = vmatprep.subr.bf16.mxu0 0
  %57 = vmatpush1.bf16.msra.mxu0 0
  %58 = vmatprep.subr.bf16.mxu0 0
  %59 = vmatpush1.bf16.msra.mxu0 0
  %60 = vmatprep.subr.bf16.mxu0 0
  %61 = vmatpush1.bf16.msra.mxu0 0
  %62 = vmatprep.subr.bf16.mxu0 0
  %63 = vmatpush1.bf16.msra.mxu0 0
  %64 = vmatprep.subr.bf16.mxu0 0
  %65 = vmatpush1.bf16.msra.mxu0 0
  %66 = vmatprep.subr.bf16.mxu0 0
  %67 = vmatpush1.bf16.msra.mxu0 %v52
  %68 = vmatprep.subr.bf16.mxu0 0
  %69 = vmatpush1.bf16.msra.mxu0 %v31
  %70 = vmatprep.subr.bf16.mxu0 0
  %71 = vmatpush2.bf16.msra.mxu0 0
  %72 = vmatprep.subr.bf16.mxu0 0
  %73 = vmatpush2.bf16.msra.mxu0 0
  %74 = vmatprep.subr.bf16.mxu0 0
  %75 = vmatpush2.bf16.msra.mxu0 0
  %76 = vmatprep.subr.bf16.mxu0 0
  %77 = vmatpush2.bf16.msra.mxu0 0
  %78 = vmatprep.subr.bf16.mxu0 0
  %79 = vmatpush2.bf16.msra.mxu0 0
  %80 = vmatprep.subr.bf16.mxu0 0
  %81 = vmatpush2.bf16.msra.mxu0 0
  %82 = vmatprep.subr.bf16.mxu0 0
  %83 = vmatpush2.bf16.msra.mxu0 0
  %84 = vmatprep.subr.bf16.mxu0 0
  %85 = vmatpush2.bf16.msra.mxu0 0
  %86 = vmatprep.mubr.bf16.mxu0 0
  %87 = vmatmul.mubr.bf16.gmra.mxu0 %v42
  %v88 = vpop.f32.mrf.mxu0
  %v89 = vadd.f32 %v38, %v88
  %v90 = vpop.f32.mrf.mxu0
  %v91 = vpop.f32.mrf.mxu0
  %v92 = vadd.f32 %v38, %v91
  %v93 = vpop.f32.mrf.mxu0
  %94 = vmatprep.mubr.bf16.mxu0 0
  %95 = vmatmul.mubr.bf16.gmra.mxu0 %v45
  %v96 = vpop.f32.mrf.mxu0
  %v97 = vadd.f32 %v38, %v96
  %v98 = vpop.f32.mrf.mxu0
  %v99 = vpop.f32.mrf.mxu0
  %v100 = vadd.f32 %v38, %v99
  %v101 = vpop.f32.mrf.mxu0
  %102 = vdwg.mxu0
  %vm103 = vcmask 64512
  %v104 = vsel %vm103, %v89, 0.0
  %v105 = vsel %vm103, %v92, 0.0
  %v106 = vadd.f32 %v104, %v105
  %v107 = vsel %vm103, %v97, 0.0
  %v108 = vadd.f32 %v106, %v107
  %v109 = vsel %vm103, %v100, 0.0
  %v110 = vadd.f32 %v108, %v109
  %v111 = vrot.slane %v110, 4
  %v112 = vadd.f32 %v110, %v111
  %v113 = vrot.slane %v112, 2
  %v114 = vadd.f32 %v112, %v113
  %v115 = vrot.slane %v114, 1
  %v116 = vadd.f32 %v114, %v115
  %v117 = vmul.f32 %v116, 0.03125
  %v118 = vmul.f32 %v89, %v89
  %v119 = vmul.f32 %v92, %v92
  %v120 = vmul.f32 %v97, %v97
  %v121 = vmul.f32 %v100, %v100
  %v122 = vsel %vm103, %v118, 0.0
  %v123 = vsel %vm103, %v119, 0.0
  %v124 = vadd.f32 %v122, %v123
  %v125 = vsel %vm103, %v120, 0.0
  %v126 = vadd.f32 %v124, %v125
  %v127 = vsel %vm103, %v121, 0.0
  %v128 = vadd.f32 %v126, %v127
  %v129 = vrot.slane %v128, 4
  %v130 = vadd.f32 %v128, %v129
  %v131 = vrot.slane %v130, 2
  %v132 = vadd.f32 %v130, %v131
  %v133 = vrot.slane %v132, 1
  %v134 = vadd.f32 %v132, %v133
  %v135 = vmul.f32 %v134, 0.03125
  %v136 = vmul.f32 %v117, %v117
  %v137 = vsub.f32 %v135, %v136
  %v138 = vmax.f32 %v137, 0.0
  %v139 = vld [vmem:[%s3] sm:$0x1]
  %v140 = vadd.f32 %v138, 1e-05
  %v141 = vrsqrt.pop %v140
  %v142 = vmul.f32 %v139, %v141
  %v143 = vld [vmem:[%s4] sm:$0x1]
  %v144 = vmul.f32 %v117, %v142
  %v145 = vsub.f32 %v143, %v144
  %v147 = vlaneseq
  %v148 = vshrl.u32 %v147, 7
  %v149 = vsub.s32 0, %v148
  %v150 = vrot.slane %v142, %v149
  %v152 = vmul.f32 %v89, %v150
  %v153 = vmul.f32 %v92, %v150
  %v154 = vmul.f32 %v97, %v150
  %v155 = vmul.f32 %v100, %v150
  %v157 = vlaneseq
  %v158 = vshrl.u32 %v157, 7
  %v159 = vsub.s32 0, %v158
  %v160 = vrot.slane %v145, %v159
  %v162 = vadd.f32 %v152, %v160
  %v163 = vadd.f32 %v153, %v160
  %v164 = vadd.f32 %v154, %v160
  %v165 = vadd.f32 %v155, %v160
  %vm166 = vcmp.gt.f32.partialorder %v162, 0.0
  %vm167 = vcmp.gt.f32.partialorder %v163, 0.0
  %vm168 = vcmp.gt.f32.partialorder %v164, 0.0
  %vm169 = vcmp.gt.f32.partialorder %v165, 0.0
  %v170 = vmul.f32 %v162, 0.01
  %v171 = vmul.f32 %v163, 0.01
  %v172 = vmul.f32 %v164, 0.01
  %v173 = vmul.f32 %v165, 0.01
  %v174 = vsel %vm166, %v162, %v170
  %v175 = vsel %vm167, %v163, %v171
  %v176 = vsel %vm168, %v164, %v172
  %v177 = vsel %vm169, %v165, %v173
  %178 = vst.msk [vmem:[%s5] sm:$0xff] %vm103, %v174
  %179 = vst.msk [vmem:[%s5 + $0x8] sm:$0xff] %vm103, %v175
  %180 = vst.msk [vmem:[%s5 + $0x10] sm:$0xff] %vm103, %v176
  %181 = vst.msk [vmem:[%s5 + $0x18] sm:$0xff] %vm103, %v177
  // Predicated region
  $region22: #{vae_forward.6} parent=0 // pred_check
    _
  $region23: #{vae_forward.6} parent=0 // pred_check_branch
    %183 = sbr.rel (0) target = $region25
  $region24: #{vae_forward.6} parent=0 // pred_region
    _
  $region25: #{vae_forward.6} parent=0 // pred_fallthru
    _
  // Predicated region
  $region26: #{vae_forward.6} parent=0 // pred_check
    _
  $region27: #{vae_forward.6} parent=0 // pred_check_branch
    %185 = sbr.rel (0) target = $region29
  $region28: #{vae_forward.6} parent=0 // pred_region
    _
  $region29: #{vae_forward.6} parent=0 // pred_fallthru
    _

// kernel: vae_forward.8
$region0: #{vae_forward.8}
  #allocation0 [shape = 'u32[]', space=smem, size = 0x4, offset = 0x4, fixed_abs, tag = 'smem constant byte address 0x4 - core index']
  #allocation1 [shape = 'u32[144,128]{1,0:T(1,128)}', space=vmem, size = 0x12000, scoped, tag = 'internal scratch']
  %s0 = inlined_call_operand.vmem [shape: f32[2,16], index: 0, kind: input, shape index: {}]
  %s1 = inlined_call_operand.vmem [shape: f32[16,4], index: 1, kind: input, shape index: {}]
  %s2 = inlined_call_operand.vmem [shape: f32[1,4], index: 2, kind: input, shape index: {}]
  %s3 = inlined_call_operand.vmem [shape: f32[16,4], index: 3, kind: input, shape index: {}]
  %s4 = inlined_call_operand.vmem [shape: f32[1,4], index: 4, kind: input, shape index: {}]
  %s5 = inlined_call_operand.vmem [shape: f32[2,4], index: 5, kind: input, shape index: {}]
  %s6 = inlined_call_operand.vmem [shape: f32[4,64], index: 6, kind: input, shape index: {}]
  %s7 = inlined_call_operand.vmem [shape: f32[1,64], index: 7, kind: input, shape index: {}]
  %s8 = inlined_call_operand.hbm [shape: f32[2,4], index: 8, kind: output, shape index: {0}]
  %s9 = inlined_call_operand.hbm [shape: f32[2,4], index: 9, kind: output, shape index: {1}]
  %s10 = inlined_call_operand.vmem [shape: f32[2,64], index: 10, kind: output, shape index: {2}]
  %11 = xla_tuple %s8, %s9, %s10
  %s12 = sld [smem:[#allocation0]]
  $region58: #{vae_forward.8} parent=0
    _
  %s14 = ssub.s32 1, %s12
  %s15 = scalar_select 0, %s14, %s12
  $region1: #{vae_forward.8} parent=0
    #allocation2 [shape = 'u8[1024]{0}', space=vmem, size = 0x400, scoped, tag = 'output window, operand 0, single buffered']
    #allocation3 [shape = 's32[1]{0}', space=sflag, size = 0x4, scoped, tag = 'scoped memory for vae_forward.8']
    #allocation4 [shape = 'u8[1024]{0}', space=vmem, size = 0x400, scoped, tag = 'output window, operand 1, single buffered']
    #allocation5 [shape = 's32[1]{0}', space=sflag, size = 0x4, scoped, tag = 'scoped memory for vae_forward.8']
    %16 = vsyncpa [#allocation3], 0
    %17 = vsyncpa [#allocation5], 0
    // Predicated region
    $region2: #{vae_forward.8} parent=1 // pred_check
      _
    $region3: #{vae_forward.8} parent=1 // pred_check_branch
      %19 = sbr.rel (0) target = $region5
    $region4: #{vae_forward.8} parent=1 // pred_region
      _
    $region5: #{vae_forward.8} parent=1 // pred_fallthru
      _
    // Predicated region
    $region6: #{vae_forward.8} parent=1 // pred_check
      _
    $region7: #{vae_forward.8} parent=1 // pred_check_branch
      %21 = sbr.rel (0) target = $region9
    $region8: #{vae_forward.8} parent=1 // pred_region
      _
    $region9: #{vae_forward.8} parent=1 // pred_fallthru
      _
    // Predicated region
    $region10: #{vae_forward.8} parent=1 // pred_check
      _
    $region11: #{vae_forward.8} parent=1 // pred_check_branch
      %23 = sbr.rel (0) target = $region13
    $region12: #{vae_forward.8} parent=1 // pred_region
      _
    $region13: #{vae_forward.8} parent=1 // pred_fallthru
      _
    // Predicated region
    $region14: #{vae_forward.8} parent=1 // pred_check
      _
    $region15: #{vae_forward.8} parent=1 // pred_check_branch
      %25 = sbr.rel (0) target = $region17
    $region16: #{vae_forward.8} parent=1 // pred_region
      _
    $region17: #{vae_forward.8} parent=1 // pred_fallthru
      _
    // Predicated region
    $region18: #{vae_forward.8} parent=1 // pred_check
      _
    $region19: #{vae_forward.8} parent=1 // pred_check_branch
      %27 = sbr.rel (0) target = $region21
    $region20: #{vae_forward.8} parent=1 // pred_region
      _
    $region21: #{vae_forward.8} parent=1 // pred_fallthru
      _
    // Predicated region
    $region22: #{vae_forward.8} parent=1 // pred_check
      _
    $region23: #{vae_forward.8} parent=1 // pred_check_branch
      %29 = sbr.rel (0) target = $region25
    $region24: #{vae_forward.8} parent=1 // pred_region
      _
    $region25: #{vae_forward.8} parent=1 // pred_fallthru
      _
    // Predicated region
    $region26: #{vae_forward.8} parent=1 // pred_check
      _
    $region27: #{vae_forward.8} parent=1 // pred_check_branch
      %31 = sbr.rel (0) target = $region29
    $region28: #{vae_forward.8} parent=1 // pred_region
      _
    $region29: #{vae_forward.8} parent=1 // pred_fallthru
      _
    // Predicated region
    $region30: #{vae_forward.8} parent=1 // pred_check
      _
    $region31: #{vae_forward.8} parent=1 // pred_check_branch
      %33 = sbr.rel (0) target = $region33
    $region32: #{vae_forward.8} parent=1 // pred_region
      _
    $region33: #{vae_forward.8} parent=1 // pred_fallthru
      _
    %v35 = vld [vmem:[%s0] sm:$0x3]
    %v36 = vpack.c.bf16 %v35, %v35
    %v37 = vld [vmem:[%s1] sm:$0xff]
    %v38 = vld [vmem:[%s1 + $0x8] sm:$0xff]
    %v39 = vpack.c.bf16 %v38, %v37
    %v40 = vld [vmem:[%s2] sm:$0x1]
    %v42 = vlaneseq
    %v43 = vshrl.u32 %v42, 7
    %v44 = vsub.s32 0, %v43
    %v45 = vrot.slane %v40, %v44
    %vm47 = vcmask 130048
    %v49 = vsel %vm47, %v36, 0
    %51 = vmatprep.subr.bf16.mxu0 0
    %52 = vmatpush1.bf16.msra.mxu0 0
    %53 = vmatprep.subr.bf16.mxu0 0
    %54 = vmatpush1.bf16.msra.mxu0 0
    %55 = vmatprep.subr.bf16.mxu0 0
    %56 = vmatpush1.bf16.msra.mxu0 0
    %57 = vmatprep.subr.bf16.mxu0 0
    %58 = vmatpush1.bf16.msra.mxu0 0
    %59 = vmatprep.subr.bf16.mxu0 0
    %60 = vmatpush1.bf16.msra.mxu0 0
    %61 = vmatprep.subr.bf16.mxu0 0
    %62 = vmatpush1.bf16.msra.mxu0 0
    %63 = vmatprep.subr.bf16.mxu0 0
    %64 = vmatpush1.bf16.msra.mxu0 0
    %65 = vmatprep.subr.bf16.mxu0 0
    %66 = vmatpush1.bf16.msra.mxu0 %v39
    %67 = vmatprep.subr.bf16.mxu0 0
    %68 = vmatpush2.bf16.msra.mxu0 0
    %69 = vmatprep.subr.bf16.mxu0 0
    %70 = vmatpush2.bf16.msra.mxu0 0
    %71 = vmatprep.subr.bf16.mxu0 0
    %72 = vmatpush2.bf16.msra.mxu0 0
    %73 = vmatprep.subr.bf16.mxu0 0
    %74 = vmatpush2.bf16.msra.mxu0 0
    %75 = vmatprep.subr.bf16.mxu0 0
    %76 = vmatpush2.bf16.msra.mxu0 0
    %77 = vmatprep.subr.bf16.mxu0 0
    %78 = vmatpush2.bf16.msra.mxu0 0
    %79 = vmatprep.subr.bf16.mxu0 0
    %80 = vmatpush2.bf16.msra.mxu0 0
    %81 = vmatprep.subr.bf16.mxu0 0
    %82 = vmatpush2.bf16.msra.mxu0 0
    %83 = vmatprep.mubr.bf16.mxu0 0
    %84 = vmatmul.mubr.bf16.gmra.mxu0 %v49
    %v85 = vpop.f32.mrf.mxu0
    %v86 = vadd.f32 %v45, %v85
    %v87 = vpop.f32.mrf.mxu0
    %v88 = vpop.f32.mrf.mxu0
    %v89 = vpop.f32.mrf.mxu0
    %90 = vdwg.mxu0
    %v91 = vld [vmem:[%s3] sm:$0xff]
    %v92 = vld [vmem:[%s3 + $0x8] sm:$0xff]
    %v93 = vpack.c.bf16 %v92, %v91
    %v94 = vld [vmem:[%s4] sm:$0x1]
    %v96 = vlaneseq
    %v97 = vshrl.u32 %v96, 7
    %v98 = vsub.s32 0, %v97
    %v99 = vrot.slane %v94, %v98
    %101 = vmatprep.subr.bf16.mxu0 0
    %102 = vmatpush1.bf16.msra.mxu0 0
    %103 = vmatprep.subr.bf16.mxu0 0
    %104 = vmatpush1.bf16.msra.mxu0 0
    %105 = vmatprep.subr.bf16.mxu0 0
    %106 = vmatpush1.bf16.msra.mxu0 0
    %107 = vmatprep.subr.bf16.mxu0 0
    %108 = vmatpush1.bf16.msra.mxu0 0
    %109 = vmatprep.subr.bf16.mxu0 0
    %110 = vmatpush1.bf16.msra.mxu0 0
    %111 = vmatprep.subr.bf16.mxu0 0
    %112 = vmatpush1.bf16.msra.mxu0 0
    %113 = vmatprep.subr.bf16.mxu0 0
    %114 = vmatpush1.bf16.msra.mxu0 0
    %115 = vmatprep.subr.bf16.mxu0 0
    %116 = vmatpush1.bf16.msra.mxu0 %v93
    %117 = vmatprep.subr.bf16.mxu0 0
    %118 = vmatpush2.bf16.msra.mxu0 0
    %119 = vmatprep.subr.bf16.mxu0 0
    %120 = vmatpush2.bf16.msra.mxu0 0
    %121 = vmatprep.subr.bf16.mxu0 0
    %122 = vmatpush2.bf16.msra.mxu0 0
    %123 = vmatprep.subr.bf16.mxu0 0
    %124 = vmatpush2.bf16.msra.mxu0 0
    %125 = vmatprep.subr.bf16.mxu0 0
    %126 = vmatpush2.bf16.msra.mxu0 0
    %127 = vmatprep.subr.bf16.mxu0 0
    %128 = vmatpush2.bf16.msra.mxu0 0
    %129 = vmatprep.subr.bf16.mxu0 0
    %130 = vmatpush2.bf16.msra.mxu0 0
    %131 = vmatprep.subr.bf16.mxu0 0
    %132 = vmatpush2.bf16.msra.mxu0 0
    %133 = vmatprep.mubr.bf16.mxu0 0
    %134 = vmatmul.mubr.bf16.gmra.mxu0 %v49
    %v135 = vpop.f32.mrf.mxu0
    %v136 = vadd.f32 %v99, %v135
    %v137 = vpop.f32.mrf.mxu0
    %v138 = vpop.f32.mrf.mxu0
    %v139 = vpop.f32.mrf.mxu0
    %140 = vdwg.mxu0
    %vm141 = vcmask 25600
    %142 = vst.msk [vmem:[#allocation2] sm:$0x3] %vm141, %v86
    %143 = vst.msk [vmem:[#allocation4] sm:$0x3] %vm141, %v136
    %v144 = vmul.f32 %v136, 0.5
    %v145 = vmul.f32 %v144, 1.442695
    %v146 = vpow.pop %v145
    %v147 = vld [vmem:[%s5] sm:$0x3]
    %v148 = vmul.f32 %v146, %v147
    %v149 = vadd.f32 %v86, %v148
    %v150 = vpack.c.bf16 %v149, %v149
    %v151 = vld [vmem:[%s6] sm:$0xf]
    %v152 = vpack.c.bf16 %v151, %v151
    %v153 = vld [vmem:[%s7] sm:$0x1]
    %v155 = vlaneseq
    %v156 = vshrl.u32 %v155, 7
    %v157 = vsub.s32 0, %v156
    %v158 = vrot.slane %v153, %v157
    %vm160 = vcmask 31744
    %v162 = vsel %vm160, %v150, 0
    %vm164 = vcmask 1041408
    %v166 = vsel %vm164, %v152, 0
    %168 = vmatprep.subr.bf16.mxu0 0
    %169 = vmatpush1.bf16.msra.mxu0 0
    %170 = vmatprep.subr.bf16.mxu0 0
    %171 = vmatpush1.bf16.msra.mxu0 0
    %172 = vmatprep.subr.bf16.mxu0 0
    %173 = vmatpush1.bf16.msra.mxu0 0
    %174 = vmatprep.subr.bf16.mxu0 0
    %175 = vmatpush1.bf16.msra.mxu0 0
    %176 = vmatprep.subr.bf16.mxu0 0
    %177 = vmatpush1.bf16.msra.mxu0 0
    %178 = vmatprep.subr.bf16.mxu0 0
    %179 = vmatpush1.bf16.msra.mxu0 0
    %180 = vmatprep.subr.bf16.mxu0 0
    %181 = vmatpush1.bf16.msra.mxu0 0
    %182 = vmatprep.subr.bf16.mxu0 0
    %183 = vmatpush1.bf16.msra.mxu0 %v166
    %184 = vmatprep.subr.bf16.mxu0 0
    %185 = vmatpush2.bf16.msra.mxu0 0
    %186 = vmatprep.subr.bf16.mxu0 0
    %187 = vmatpush2.bf16.msra.mxu0 0
    %188 = vmatprep.subr.bf16.mxu0 0
    %189 = vmatpush2.bf16.msra.mxu0 0
    %190 = vmatprep.subr.bf16.mxu0 0
    %191 = vmatpush2.bf16.msra.mxu0 0
    %192 = vmatprep.subr.bf16.mxu0 0
    %193 = vmatpush2.bf16.msra.mxu0 0
    %194 = vmatprep.subr.bf16.mxu0 0
    %195 = vmatpush2.bf16.msra.mxu0 0
    %196 = vmatprep.subr.bf16.mxu0 0
    %197 = vmatpush2.bf16.msra.mxu0 0
    %198 = vmatprep.subr.bf16.mxu0 0
    %199 = vmatpush2.bf16.msra.mxu0 0
    %200 = vmatprep.mubr.bf16.mxu0 0
    %201 = vmatmul.mubr.bf16.gmra.mxu0 %v162
    %v202 = vpop.f32.mrf.mxu0
    %v203 = vadd.f32 %v158, %v202
    %v204 = vpop.f32.mrf.mxu0
    %v205 = vpop.f32.mrf.mxu0
    %v206 = vpop.f32.mrf.mxu0
    %207 = vdwg.mxu0
    %vm208 = vcmask 517120
    %209 = vst.msk [vmem:[%s10] sm:$0x3] %vm208, %v203
    // Predicated region
    $region34: #{vae_forward.8} parent=1 // pred_check
      _
    $region35: #{vae_forward.8} parent=1 // pred_check_branch
      %211 = sbr.rel (0) target = $region37
    $region36: #{vae_forward.8} parent=1 // pred_region
      %s213 = ssub.s32 32, 32
      %214 = vsyncadd [#allocation3], %s213
      %s216 = sshll.u32 [#allocation2], 4
      %s217 = int_to_ptr.vmem [resolvable:$true] %s216
      %219 = dma.vmem_to_hbm [thread:$0]  %s217, 32, %s8, [#allocation3]
    $region37: #{vae_forward.8} parent=1 // pred_fallthru
      _
    // Predicated region
    $region38: #{vae_forward.8} parent=1 // pred_check
      _
    $region39: #{vae_forward.8} parent=1 // pred_check_branch
      %221 = sbr.rel (0) target = $region41
    $region40: #{vae_forward.8} parent=1 // pred_region
      %s223 = ssub.s32 32, 32
      %224 = vsyncadd [#allocation5], %s223
      %s226 = sshll.u32 [#allocation4], 4
      %s227 = int_to_ptr.vmem [resolvable:$true] %s226
      %229 = dma.vmem_to_hbm [thread:$0]  %s227, 32, %s9, [#allocation5]
    $region41: #{vae_forward.8} parent=1 // pred_fallthru
      _
    // Predicated region
    $region42: #{vae_forward.8} parent=1 // pred_check
      _
    $region43: #{vae_forward.8} parent=1 // pred_check_branch
      %231 = sbr.rel (0) target = $region45
    $region44: #{vae_forward.8} parent=1 // pred_region
      _
    $region45: #{vae_forward.8} parent=1 // pred_fallthru
      _
    // Predicated region
    $region46: #{vae_forward.8} parent=1 // pred_check
      _
    $region47: #{vae_forward.8} parent=1 // pred_check_branch
      %233 = sbr.rel (0) target = $region49
    $region48: #{vae_forward.8} parent=1 // pred_region
      %234 = dma.done [#allocation3], 32
    $region49: #{vae_forward.8} parent=1 // pred_fallthru
      _
    // Predicated region
    $region50: #{vae_forward.8} parent=1 // pred_check
      _
    $region51: #{vae_forward.8} parent=1 // pred_check_branch
      %236 = sbr.rel (0) target = $region53
    $region52: #{vae_forward.8} parent=1 // pred_region
      %237 = dma.done [#allocation5], 32
    $region53: #{vae_forward.8} parent=1 // pred_fallthru
      _
    // Predicated region
    $region54: #{vae_forward.8} parent=1 // pred_check
      _
    $region55: #{vae_forward.8} parent=1 // pred_check_branch
      %239 = sbr.rel (0) target = $region57
    $region56: #{vae_forward.8} parent=1 // pred_region
      _
    $region57: #{vae_forward.8} parent=1 // pred_fallthru
      _
    %240 = vsyncpa [#allocation3], 1
    %241 = vsyncpa [#allocation5], 1

// kernel: vae_forward.7
$region0: #{vae_forward.7}
  #allocation0 [shape = 'u32[]', space=smem, size = 0x4, offset = 0x4, fixed_abs, tag = 'smem constant byte address 0x4 - core index']
  #allocation1 [shape = 'u32[144,128]{1,0:T(1,128)}', space=vmem, size = 0x12000, scoped, tag = 'internal scratch']
  %s0 = inlined_call_operand.vmem [shape: f32[2,392], index: 0, kind: input, shape index: {}]
  %s1 = inlined_call_operand.vmem [shape: f32[392,16], index: 1, kind: input, shape index: {}]
  %s2 = inlined_call_operand.vmem [shape: f32[1,16], index: 2, kind: input, shape index: {}]
  %s3 = inlined_call_operand.vmem [shape: f32[1,16], index: 3, kind: input, shape index: {}]
  %s4 = inlined_call_operand.vmem [shape: f32[1,16], index: 4, kind: input, shape index: {}]
  %s5 = inlined_call_operand.vmem [shape: f32[2,16], index: 5, kind: output, shape index: {}]
  %s6 = sld [smem:[#allocation0]]
  $region30: #{vae_forward.7} parent=0
    _
  %s8 = ssub.s32 1, %s6
  %s9 = scalar_select 0, %s8, %s6
  // Predicated region
  $region2: #{vae_forward.7} parent=0 // pred_check
    _
  $region3: #{vae_forward.7} parent=0 // pred_check_branch
    %11 = sbr.rel (0) target = $region5
  $region4: #{vae_forward.7} parent=0 // pred_region
    _
  $region5: #{vae_forward.7} parent=0 // pred_fallthru
    _
  // Predicated region
  $region6: #{vae_forward.7} parent=0 // pred_check
    _
  $region7: #{vae_forward.7} parent=0 // pred_check_branch
    %13 = sbr.rel (0) target = $region9
  $region8: #{vae_forward.7} parent=0 // pred_region
    _
  $region9: #{vae_forward.7} parent=0 // pred_fallthru
    _
  // Predicated region
  $region10: #{vae_forward.7} parent=0 // pred_check
    _
  $region11: #{vae_forward.7} parent=0 // pred_check_branch
    %15 = sbr.rel (0) target = $region13
  $region12: #{vae_forward.7} parent=0 // pred_region
    _
  $region13: #{vae_forward.7} parent=0 // pred_fallthru
    _
  // Predicated region
  $region14: #{vae_forward.7} parent=0 // pred_check
    _
  $region15: #{vae_forward.7} parent=0 // pred_check_branch
    %17 = sbr.rel (0) target = $region17
  $region16: #{vae_forward.7} parent=0 // pred_region
    _
  $region17: #{vae_forward.7} parent=0 // pred_fallthru
    _
  // Predicated region
  $region18: #{vae_forward.7} parent=0 // pred_check
    _
  $region19: #{vae_forward.7} parent=0 // pred_check_branch
    %19 = sbr.rel (0) target = $region21
  $region20: #{vae_forward.7} parent=0 // pred_region
    _
  $region21: #{vae_forward.7} parent=0 // pred_fallthru
    _
  %v21 = vld [vmem:[%s0] sm:$0xff]
  %v23 = vcombine.high %v21, %v21
  %v25 = vunpack.c.l.s4 1983009808
  %v26 = vunpack.c.0.s8 %v25
  %v27 = vlaneseq
  %v28 = vshrl.u32 %v27, 7
  %v29 = vsub.s32 %v26, %v28
  %v30 = vrot.slane %v21, %v29
  %v32 = vunpack.c.l.s4 1983009808
  %v33 = vunpack.c.0.s8 %v32
  %v34 = vlaneseq
  %v35 = vshrl.u32 %v34, 7
  %v36 = vsub.s32 %v33, %v35
  %v37 = vrot.slane %v23, %v36
  %v38 = vcombine.high %v30, %v30
  %v39 = vcombine.high %v37, %v37
  %v44 = vpack.c.bf16 %v30, %v30
  %v45 = vpack.c.bf16 %v38, %v38
  %v46 = vpack.c.bf16 %v37, %v37
  %v47 = vpack.c.bf16 %v39, %v39
  %v48 = vld [vmem:[%s1] sm:$0xff]
  %v49 = vld [vmem:[%s1 + $0x8] sm:$0xff]
  %v50 = vld [vmem:[%s1 + $0x10] sm:$0xff]
  %v51 = vld [vmem:[%s1 + $0x18] sm:$0xff]
  %v52 = vld [vmem:[%s1 + $0x20] sm:$0xff]
  %v53 = vld [vmem:[%s1 + $0x28] sm:$0xff]
  %v54 = vld [vmem:[%s1 + $0x30] sm:$0xff]
  %v55 = vld [vmem:[%s1 + $0x38] sm:$0xff]
  %v56 = vld [vmem:[%s1 + $0x40] sm:$0xff]
  %v57 = vld [vmem:[%s1 + $0x48] sm:$0xff]
  %v58 = vld [vmem:[%s1 + $0x50] sm:$0xff]
  %v59 = vld [vmem:[%s1 + $0x58] sm:$0xff]
  %v60 = vld [vmem:[%s1 + $0x60] sm:$0xff]
  %v61 = vld [vmem:[%s1 + $0x68] sm:$0xff]
  %v62 = vld [vmem:[%s1 + $0x70] sm:$0xff]
  %v63 = vld [vmem:[%s1 + $0x78] sm:$0xff]
  %v64 = vld [vmem:[%s1 + $0x80] sm:$0xff]
  %v65 = vld [vmem:[%s1 + $0x88] sm:$0xff]
  %v66 = vld [vmem:[%s1 + $0x90] sm:$0xff]
  %v67 = vld [vmem:[%s1 + $0x98] sm:$0xff]
  %v68 = vld [vmem:[%s1 + $0xa0] sm:$0xff]
  %v69 = vld [vmem:[%s1 + $0xa8] sm:$0xff]
  %v70 = vld [vmem:[%s1 + $0xb0] sm:$0xff]
  %v71 = vld [vmem:[%s1 + $0xb8] sm:$0xff]
  %v72 = vld [vmem:[%s1 + $0xc0] sm:$0xff]
  %v73 = vld [vmem:[%s1 + $0xc8] sm:$0xff]
  %v74 = vld [vmem:[%s1 + $0xd0] sm:$0xff]
  %v75 = vld [vmem:[%s1 + $0xd8] sm:$0xff]
  %v76 = vld [vmem:[%s1 + $0xe0] sm:$0xff]
  %v77 = vld [vmem:[%s1 + $0xe8] sm:$0xff]
  %v78 = vld [vmem:[%s1 + $0xf0] sm:$0xff]
  %v79 = vld [vmem:[%s1 + $0xf8] sm:$0xff]
  %v80 = vld [vmem:[%s1 + $0x100] sm:$0xff]
  %v81 = vld [vmem:[%s1 + $0x108] sm:$0xff]
  %v82 = vld [vmem:[%s1 + $0x110] sm:$0xff]
  %v83 = vld [vmem:[%s1 + $0x118] sm:$0xff]
  %v84 = vld [vmem:[%s1 + $0x120] sm:$0xff]
  %v85 = vld [vmem:[%s1 + $0x128] sm:$0xff]
  %v86 = vld [vmem:[%s1 + $0x130] sm:$0xff]
  %v87 = vld [vmem:[%s1 + $0x138] sm:$0xff]
  %v88 = vld [vmem:[%s1 + $0x140] sm:$0xff]
  %v89 = vld [vmem:[%s1 + $0x148] sm:$0xff]
  %v90 = vld [vmem:[%s1 + $0x150] sm:$0xff]
  %v91 = vld [vmem:[%s1 + $0x158] sm:$0xff]
  %v92 = vld [vmem:[%s1 + $0x160] sm:$0xff]
  %v93 = vld [vmem:[%s1 + $0x168] sm:$0xff]
  %v94 = vld [vmem:[%s1 + $0x170] sm:$0xff]
  %v95 = vld [vmem:[%s1 + $0x178] sm:$0xff]
  %v96 = vld [vmem:[%s1 + $0x180] sm:$0xff]
  %v97 = vpack.c.bf16 %v49, %v48
  %v98 = vpack.c.bf16 %v51, %v50
  %v99 = vpack.c.bf16 %v53, %v52
  %v100 = vpack.c.bf16 %v55, %v54
  %v101 = vpack.c.bf16 %v57, %v56
  %v102 = vpack.c.bf16 %v59, %v58
  %v103 = vpack.c.bf16 %v61, %v60
  %v104 = vpack.c.bf16 %v63, %v62
  %v105 = vpack.c.bf16 %v65, %v64
  %v106 = vpack.c.bf16 %v67, %v66
  %v107 = vpack.c.bf16 %v69, %v68
  %v108 = vpack.c.bf16 %v71, %v70
  %v109 = vpack.c.bf16 %v73, %v72
  %v110 = vpack.c.bf16 %v75, %v74
  %v111 = vpack.c.bf16 %v77, %v76
  %v112 = vpack.c.bf16 %v79, %v78
  %v113 = vpack.c.bf16 %v81, %v80
  %v114 = vpack.c.bf16 %v83, %v82
  %v115 = vpack.c.bf16 %v85, %v84
  %v116 = vpack.c.bf16 %v87, %v86
  %v117 = vpack.c.bf16 %v89, %v88
  %v118 = vpack.c.bf16 %v91, %v90
  %v119 = vpack.c.bf16 %v93, %v92
  %v120 = vpack.c.bf16 %v95, %v94
  %v121 = vpack.c.bf16 %v96, %v96
  %v122 = vld [vmem:[%s2] sm:$0x1]
  %v124 = vlaneseq
  %v125 = vshrl.u32 %v124, 7
  %v126 = vsub.s32 0, %v125
  %v127 = vrot.slane %v122, %v126
  %vm129 = vcmask 64512
  %v131 = vsel %vm129, %v47, 0
  %vm133 = vcmask 1043456
  %v135 = vsel %vm133, %v121, 0
  %137 = vmatprep.subr.bf16.mxu0 0
  %138 = vmatpush1.bf16.msra.mxu0 %v104
  %139 = vmatprep.subr.bf16.mxu0 0
  %140 = vmatpush1.bf16.msra.mxu0 %v103
  %141 = vmatprep.subr.bf16.mxu0 0
  %142 = vmatpush1.bf16.msra.mxu0 %v102
  %143 = vmatprep.subr.bf16.mxu0 0
  %144 = vmatpush1.bf16.msra.mxu0 %v101
  %145 = vmatprep.subr.bf16.mxu0 0
  %146 = vmatpush1.bf16.msra.mxu0 %v100
  %147 = vmatprep.subr.bf16.mxu0 0
  %148 = vmatpush1.bf16.msra.mxu0 %v99
  %149 = vmatprep.subr.bf16.mxu0 0
  %150 = vmatpush1.bf16.msra.mxu0 %v98
  %151 = vmatprep.subr.bf16.mxu0 0
  %152 = vmatpush1.bf16.msra.mxu0 %v97
  %153 = vmatprep.subr.bf16.mxu0 0
  %154 = vmatpush2.bf16.msra.mxu0 %v112
  %155 = vmatprep.subr.bf16.mxu0 0
  %156 = vmatpush2.bf16.msra.mxu0 %v111
  %157 = vmatprep.subr.bf16.mxu0 0
  %158 = vmatpush2.bf16.msra.mxu0 %v110
  %159 = vmatprep.subr.bf16.mxu0 0
  %160 = vmatpush2.bf16.msra.mxu0 %v109
  %161 = vmatprep.subr.bf16.mxu0 0
  %162 = vmatpush2.bf16.msra.mxu0 %v108
  %163 = vmatprep.subr.bf16.mxu0 0
  %164 = vmatpush2.bf16.msra.mxu0 %v107
  %165 = vmatprep.subr.bf16.mxu0 0
  %166 = vmatpush2.bf16.msra.mxu0 %v106
  %167 = vmatprep.subr.bf16.mxu0 0
  %168 = vmatpush2.bf16.msra.mxu0 %v105
  %169 = vmatprep.mubr.bf16.mxu0 %v45
  %170 = vmatmul.mubr.bf16.gmra.mxu0 %v44
  %v171 = vpop.f32.mrf.mxu0
  %v172 = vadd.f32 %v127, %v171
  %v173 = vpop.f32.mrf.mxu0
  %v174 = vpop.f32.mrf.mxu0
  %v175 = vpop.f32.mrf.mxu0
  %176 = vdwg.mxu0
  %177 = vmatprep.subr.bf16.mxu0 0
  %178 = vmatpush1.bf16.msra.mxu0 %v120
  %179 = vmatprep.subr.bf16.mxu0 0
  %180 = vmatpush1.bf16.msra.mxu0 %v119
  %181 = vmatprep.subr.bf16.mxu0 0
  %182 = vmatpush1.bf16.msra.mxu0 %v118
  %183 = vmatprep.subr.bf16.mxu0 0
  %184 = vmatpush1.bf16.msra.mxu0 %v117
  %185 = vmatprep.subr.bf16.mxu0 0
  %186 = vmatpush1.bf16.msra.mxu0 %v116
  %187 = vmatprep.subr.bf16.mxu0 0
  %188 = vmatpush1.bf16.msra.mxu0 %v115
  %189 = vmatprep.subr.bf16.mxu0 0
  %190 = vmatpush1.bf16.msra.mxu0 %v114
  %191 = vmatprep.subr.bf16.mxu0 0
  %192 = vmatpush1.bf16.msra.mxu0 %v113
  %193 = vmatprep.subr.bf16.mxu0 0
  %194 = vmatpush2.bf16.msra.mxu0 0
  %195 = vmatprep.subr.bf16.mxu0 0
  %196 = vmatpush2.bf16.msra.mxu0 0
  %197 = vmatprep.subr.bf16.mxu0 0
  %198 = vmatpush2.bf16.msra.mxu0 0
  %199 = vmatprep.subr.bf16.mxu0 0
  %200 = vmatpush2.bf16.msra.mxu0 0
  %201 = vmatprep.subr.bf16.mxu0 0
  %202 = vmatpush2.bf16.msra.mxu0 0
  %203 = vmatprep.subr.bf16.mxu0 0
  %204 = vmatpush2.bf16.msra.mxu0 0
  %205 = vmatprep.subr.bf16.mxu0 0
  %206 = vmatpush2.bf16.msra.mxu0 0
  %207 = vmatprep.subr.bf16.mxu0 0
  %208 = vmatpush2.bf16.msra.mxu0 %v135
  %209 = vmatprep.mubr.bf16.mxu0 %v131
  %210 = vmatmul.mubr.bf16.gmra.mxu0 %v46
  %v211 = vpop.f32.mrf.mxu0
  %v212 = vadd.f32 %v172, %v211
  %v213 = vpop.f32.mrf.mxu0
  %v214 = vpop.f32.mrf.mxu0
  %v215 = vpop.f32.mrf.mxu0
  %216 = vdwg.mxu0
  %vm217 = vcmask 123904
  %v218 = vsel %vm217, %v212, 0.0
  %v219 = vrot.slane %v218, 4
  %v220 = vadd.f32 %v218, %v219
  %v221 = vrot.slane %v220, 2
  %v222 = vadd.f32 %v220, %v221
  %v223 = vrot.slane %v222, 1
  %v224 = vadd.f32 %v222, %v223
  %v225 = vmul.f32 %v224, 0.5
  %v226 = vmul.f32 %v212, %v212
  %v227 = vsel %vm217, %v226, 0.0
  %v228 = vrot.slane %v227, 4
  %v229 = vadd.f32 %v227, %v228
  %v230 = vrot.slane %v229, 2
  %v231 = vadd.f32 %v229, %v230
  %v232 = vrot.slane %v231, 1
  %v233 = vadd.f32 %v231, %v232
  %v234 = vmul.f32 %v233, 0.5
  %v235 = vmul.f32 %v225, %v225
  %v236 = vsub.f32 %v234, %v235
  %v237 = vmax.f32 %v236, 0.0
  %v238 = vld [vmem:[%s3] sm:$0x1]
  %v239 = vadd.f32 %v237, 1e-05
  %v240 = vrsqrt.pop %v239
  %v241 = vmul.f32 %v238, %v240
  %v242 = vld [vmem:[%s4] sm:$0x1]
  %v243 = vmul.f32 %v225, %v241
  %v244 = vsub.f32 %v242, %v243
  %v246 = vlaneseq
  %v247 = vshrl.u32 %v246, 7
  %v248 = vsub.s32 0, %v247
  %v249 = vrot.slane %v241, %v248
  %v251 = vmul.f32 %v212, %v249
  %v253 = vlaneseq
  %v254 = vshrl.u32 %v253, 7
  %v255 = vsub.s32 0, %v254
  %v256 = vrot.slane %v244, %v255
  %v258 = vadd.f32 %v251, %v256
  %vm259 = vcmp.gt.f32.partialorder %v258, 0.0
  %v260 = vmul.f32 %v258, 0.01
  %v261 = vsel %vm259, %v258, %v260
  %262 = vst.msk [vmem:[%s5] sm:$0x3] %vm217, %v261
  // Predicated region
  $region22: #{vae_forward.7} parent=0 // pred_check
    _
  $region23: #{vae_forward.7} parent=0 // pred_check_branch
    %264 = sbr.rel (0) target = $region25
  $region24: #{vae_forward.7} parent=0 // pred_region
    _
  $region25: #{vae_forward.7} parent=0 // pred_fallthru
    _
  // Predicated region
  $region26: #{vae_forward.7} parent=0 // pred_check
    _
  $region27: #{vae_forward.7} parent=0 // pred_check_branch
    %266 = sbr.rel (0) target = $region29
  $region28: #{vae_forward.7} parent=0 // pred_region
    _
  $region29: #{vae_forward.7} parent=0 // pred_fallthru
    _

// kernel: vae_forward.9
$region0: #{vae_forward.9}
  #allocation0 [shape = 'u32[]', space=smem, size = 0x4, offset = 0x4, fixed_abs, tag = 'smem constant byte address 0x4 - core index']
  #allocation1 [shape = 'u32[144,128]{1,0:T(1,128)}', space=vmem, size = 0x12000, scoped, tag = 'internal scratch']
  %s0 = inlined_call_operand.vmem [shape: f32[4,8,16], index: 0, kind: input, shape index: {}]
  %s1 = inlined_call_operand.vmem [shape: f32[9,16,8], index: 1, kind: input, shape index: {}]
  %s2 = inlined_call_operand.vmem [shape: f32[1,8], index: 2, kind: input, shape index: {}]
  %s3 = inlined_call_operand.vmem [shape: f32[1,8], index: 3, kind: input, shape index: {}]
  %s4 = inlined_call_operand.vmem [shape: f32[1,8], index: 4, kind: input, shape index: {}]
  %s5 = inlined_call_operand.vmem [shape: f32[4,8,8], index: 5, kind: output, shape index: {}]
  %s6 = sld [smem:[#allocation0]]
  $region30: #{vae_forward.9} parent=0
    _
  %s8 = ssub.s32 1, %s6
  %s9 = scalar_select 0, %s8, %s6
  // Predicated region
  $region2: #{vae_forward.9} parent=0 // pred_check
    _
  $region3: #{vae_forward.9} parent=0 // pred_check_branch
    %11 = sbr.rel (0) target = $region5
  $region4: #{vae_forward.9} parent=0 // pred_region
    _
  $region5: #{vae_forward.9} parent=0 // pred_fallthru
    _
  // Predicated region
  $region6: #{vae_forward.9} parent=0 // pred_check
    _
  $region7: #{vae_forward.9} parent=0 // pred_check_branch
    %13 = sbr.rel (0) target = $region9
  $region8: #{vae_forward.9} parent=0 // pred_region
    _
  $region9: #{vae_forward.9} parent=0 // pred_fallthru
    _
  // Predicated region
  $region10: #{vae_forward.9} parent=0 // pred_check
    _
  $region11: #{vae_forward.9} parent=0 // pred_check_branch
    %15 = sbr.rel (0) target = $region13
  $region12: #{vae_forward.9} parent=0 // pred_region
    _
  $region13: #{vae_forward.9} parent=0 // pred_fallthru
    _
  // Predicated region
  $region14: #{vae_forward.9} parent=0 // pred_check
    _
  $region15: #{vae_forward.9} parent=0 // pred_check_branch
    %17 = sbr.rel (0) target = $region17
  $region16: #{vae_forward.9} parent=0 // pred_region
    _
  $region17: #{vae_forward.9} parent=0 // pred_fallthru
    _
  // Predicated region
  $region18: #{vae_forward.9} parent=0 // pred_check
    _
  $region19: #{vae_forward.9} parent=0 // pred_check_branch
    %19 = sbr.rel (0) target = $region21
  $region20: #{vae_forward.9} parent=0 // pred_region
    _
  $region21: #{vae_forward.9} parent=0 // pred_fallthru
    _
  %v21 = vld [vmem:[%s2] sm:$0x1]
  %v22 = vld [vmem:[%s0] sm:$0xff]
  %v23 = vpack.c.bf16 %v22, %v22
  %s24 = scalar_lea.vmem %s1, 64
  %v25 = vld [vmem:[%s24] sm:$0xff]
  %v26 = vld [vmem:[%s24 + $0x8] sm:$0xff]
  %v27 = vpack.c.bf16 %v26, %v25
  %v29 = vlaneseq
  %v30 = vshrl.u32 %v29, 7
  %v31 = vsub.s32 0, %v30
  %v32 = vrot.slane %v21, %v31
  %vm34 = vcmask 130048
  %v36 = vsel %vm34, %v23, 0
  %38 = vmatprep.subr.bf16.mxu0 0
  %39 = vmatpush1.bf16.msra.mxu0 0
  %40 = vmatprep.subr.bf16.mxu0 0
  %41 = vmatpush1.bf16.msra.mxu0 0
  %42 = vmatprep.subr.bf16.mxu0 0
  %43 = vmatpush1.bf16.msra.mxu0 0
  %44 = vmatprep.subr.bf16.mxu0 0
  %45 = vmatpush1.bf16.msra.mxu0 0
  %46 = vmatprep.subr.bf16.mxu0 0
  %47 = vmatpush1.bf16.msra.mxu0 0
  %48 = vmatprep.subr.bf16.mxu0 0
  %49 = vmatpush1.bf16.msra.mxu0 0
  %50 = vmatprep.subr.bf16.mxu0 0
  %51 = vmatpush1.bf16.msra.mxu0 0
  %52 = vmatprep.subr.bf16.mxu0 0
  %53 = vmatpush1.bf16.msra.mxu0 %v27
  %54 = vmatprep.subr.bf16.mxu0 0
  %55 = vmatpush2.bf16.msra.mxu0 0
  %56 = vmatprep.subr.bf16.mxu0 0
  %57 = vmatpush2.bf16.msra.mxu0 0
  %58 = vmatprep.subr.bf16.mxu0 0
  %59 = vmatpush2.bf16.msra.mxu0 0
  %60 = vmatprep.subr.bf16.mxu0 0
  %61 = vmatpush2.bf16.msra.mxu0 0
  %62 = vmatprep.subr.bf16.mxu0 0
  %63 = vmatpush2.bf16.msra.mxu0 0
  %64 = vmatprep.subr.bf16.mxu0 0
  %65 = vmatpush2.bf16.msra.mxu0 0
  %66 = vmatprep.subr.bf16.mxu0 0
  %67 = vmatpush2.bf16.msra.mxu0 0
  %68 = vmatprep.subr.bf16.mxu0 0
  %69 = vmatpush2.bf16.msra.mxu0 0
  %70 = vmatprep.mubr.bf16.mxu0 0
  %71 = vmatmul.mubr.bf16.gmra.mxu0 %v36
  %v72 = vpop.f32.mrf.mxu0
  %v73 = vadd.f32 %v32, %v72
  %v74 = vpop.f32.mrf.mxu0
  %v75 = vpop.f32.mrf.mxu0
  %v76 = vpop.f32.mrf.mxu0
  %77 = vdwg.mxu0
  %s78 = scalar_lea.vmem %s1, 80
  %v79 = vld [vmem:[%s78] sm:$0xff]
  %v80 = vld [vmem:[%s78 + $0x8] sm:$0xff]
  %v81 = vpack.c.bf16 %v80, %v79
  %s82 = scalar_lea.vmem %s0, 8
  %v83 = vld [vmem:[%s82] sm:$0xff]
  %v84 = vpack.c.bf16 %v83, %v83
  %s85 = scalar_lea.vmem %s1, 48
  %v86 = vld [vmem:[%s85] sm:$0xff]
  %v87 = vld [vmem:[%s85 + $0x8] sm:$0xff]
  %v88 = vpack.c.bf16 %v87, %v86
  %v90 = vsel %vm34, %v84, 0
  %92 = vmatprep.subr.bf16.mxu0 0
  %93 = vmatpush1.bf16.msra.mxu0 0
  %94 = vmatprep.subr.bf16.mxu0 0
  %95 = vmatpush1.bf16.msra.mxu0 0
  %96 = vmatprep.subr.bf16.mxu0 0
  %97 = vmatpush1.bf16.msra.mxu0 0
  %98 = vmatprep.subr.bf16.mxu0 0
  %99 = vmatpush1.bf16.msra.mxu0 0
  %100 = vmatprep.subr.bf16.mxu0 0
  %101 = vmatpush1.bf16.msra.mxu0 0
  %102 = vmatprep.subr.bf16.mxu0 0
  %103 = vmatpush1.bf16.msra.mxu0 0
  %104 = vmatprep.subr.bf16.mxu0 0
  %105 = vmatpush1.bf16.msra.mxu0 0
  %106 = vmatprep.subr.bf16.mxu0 0
  %107 = vmatpush1.bf16.msra.mxu0 %v88
  %108 = vmatprep.subr.bf16.mxu0 0
  %109 = vmatpush2.bf16.msra.mxu0 0
  %110 = vmatprep.subr.bf16.mxu0 0
  %111 = vmatpush2.bf16.msra.mxu0 0
  %112 = vmatprep.subr.bf16.mxu0 0
  %113 = vmatpush2.bf16.msra.mxu0 0
  %114 = vmatprep.subr.bf16.mxu0 0
  %115 = vmatpush2.bf16.msra.mxu0 0
  %116 = vmatprep.subr.bf16.mxu0 0
  %117 = vmatpush2.bf16.msra.mxu0 0
  %118 = vmatprep.subr.bf16.mxu0 0
  %119 = vmatpush2.bf16.msra.mxu0 0
  %120 = vmatprep.subr.bf16.mxu0 0
  %121 = vmatpush2.bf16.msra.mxu0 0
  %122 = vmatprep.subr.bf16.mxu0 0
  %123 = vmatpush2.bf16.msra.mxu0 0
  %124 = vmatprep.mubr.bf16.mxu0 0
  %125 = vmatmul.mubr.bf16.gmra.mxu0 %v90
  %v126 = vpop.f32.mrf.mxu0
  %v127 = vadd.f32 0.0, %v126
  %v128 = vpop.f32.mrf.mxu0
  %v129 = vpop.f32.mrf.mxu0
  %v130 = vpop.f32.mrf.mxu0
  %131 = vdwg.mxu0
  %132 = vmatprep.subr.bf16.mxu0 0
  %133 = vmatpush1.bf16.msra.mxu0 0
  %134 = vmatprep.subr.bf16.mxu0 0
  %135 = vmatpush1.bf16.msra.mxu0 0
  %136 = vmatprep.subr.bf16.mxu0 0
  %137 = vmatpush1.bf16.msra.mxu0 0
  %138 = vmatprep.subr.bf16.mxu0 0
  %139 = vmatpush1.bf16.msra.mxu0 0
  %140 = vmatprep.subr.bf16.mxu0 0
  %141 = vmatpush1.bf16.msra.mxu0 0
  %142 = vmatprep.subr.bf16.mxu0 0
  %143 = vmatpush1.bf16.msra.mxu0 0
  %144 = vmatprep.subr.bf16.mxu0 0
  %145 = vmatpush1.bf16.msra.mxu0 0
  %146 = vmatprep.subr.bf16.mxu0 0
  %147 = vmatpush1.bf16.msra.mxu0 %v81
  %148 = vmatprep.subr.bf16.mxu0 0
  %149 = vmatpush2.bf16.msra.mxu0 0
  %150 = vmatprep.subr.bf16.mxu0 0
  %151 = vmatpush2.bf16.msra.mxu0 0
  %152 = vmatprep.subr.bf16.mxu0 0
  %153 = vmatpush2.bf16.msra.mxu0 0
  %154 = vmatprep.subr.bf16.mxu0 0
  %155 = vmatpush2.bf16.msra.mxu0 0
  %156 = vmatprep.subr.bf16.mxu0 0
  %157 = vmatpush2.bf16.msra.mxu0 0
  %158 = vmatprep.subr.bf16.mxu0 0
  %159 = vmatpush2.bf16.msra.mxu0 0
  %160 = vmatprep.subr.bf16.mxu0 0
  %161 = vmatpush2.bf16.msra.mxu0 0
  %162 = vmatprep.subr.bf16.mxu0 0
  %163 = vmatpush2.bf16.msra.mxu0 0
  %164 = vmatprep.mubr.bf16.mxu0 0
  %165 = vmatmul.mubr.bf16.gmra.mxu0 %v36
  %v166 = vpop.f32.mrf.mxu0
  %v167 = vadd.f32 %v127, %v166
  %v168 = vpop.f32.mrf.mxu0
  %v169 = vpop.f32.mrf.mxu0
  %v170 = vpop.f32.mrf.mxu0
  %171 = vdwg.mxu0
  %v172 = vadd.f32 %v167, %v32
  %s173 = scalar_lea.vmem %s1, 112
  %v174 = vld [vmem:[%s173] sm:$0xff]
  %v175 = vld [vmem:[%s173 + $0x8] sm:$0xff]
  %v176 = vpack.c.bf16 %v175, %v174
  %s177 = scalar_lea.vmem %s0, 16
  %v178 = vld [vmem:[%s177] sm:$0xff]
  %v179 = vpack.c.bf16 %v178, %v178
  %s180 = scalar_lea.vmem %s1, 16
  %v181 = vld [vmem:[%s180] sm:$0xff]
  %v182 = vld [vmem:[%s180 + $0x8] sm:$0xff]
  %v183 = vpack.c.bf16 %v182, %v181
  %v185 = vsel %vm34, %v179, 0
  %187 = vmatprep.subr.bf16.mxu0 0
  %188 = vmatpush1.bf16.msra.mxu0 0
  %189 = vmatprep.subr.bf16.mxu0 0
  %190 = vmatpush1.bf16.msra.mxu0 0
  %191 = vmatprep.subr.bf16.mxu0 0
  %192 = vmatpush1.bf16.msra.mxu0 0
  %193 = vmatprep.subr.bf16.mxu0 0
  %194 = vmatpush1.bf16.msra.mxu0 0
  %195 = vmatprep.subr.bf16.mxu0 0
  %196 = vmatpush1.bf16.msra.mxu0 0
  %197 = vmatprep.subr.bf16.mxu0 0
  %198 = vmatpush1.bf16.msra.mxu0 0
  %199 = vmatprep.subr.bf16.mxu0 0
  %200 = vmatpush1.bf16.msra.mxu0 0
  %201 = vmatprep.subr.bf16.mxu0 0
  %202 = vmatpush1.bf16.msra.mxu0 %v183
  %203 = vmatprep.subr.bf16.mxu0 0
  %204 = vmatpush2.bf16.msra.mxu0 0
  %205 = vmatprep.subr.bf16.mxu0 0
  %206 = vmatpush2.bf16.msra.mxu0 0
  %207 = vmatprep.subr.bf16.mxu0 0
  %208 = vmatpush2.bf16.msra.mxu0 0
  %209 = vmatprep.subr.bf16.mxu0 0
  %210 = vmatpush2.bf16.msra.mxu0 0
  %211 = vmatprep.subr.bf16.mxu0 0
  %212 = vmatpush2.bf16.msra.mxu0 0
  %213 = vmatprep.subr.bf16.mxu0 0
  %214 = vmatpush2.bf16.msra.mxu0 0
  %215 = vmatprep.subr.bf16.mxu0 0
  %216 = vmatpush2.bf16.msra.mxu0 0
  %217 = vmatprep.subr.bf16.mxu0 0
  %218 = vmatpush2.bf16.msra.mxu0 0
  %219 = vmatprep.mubr.bf16.mxu0 0
  %220 = vmatmul.mubr.bf16.gmra.mxu0 %v185
  %v221 = vpop.f32.mrf.mxu0
  %v222 = vadd.f32 0.0, %v221
  %v223 = vpop.f32.mrf.mxu0
  %v224 = vpop.f32.mrf.mxu0
  %v225 = vpop.f32.mrf.mxu0
  %226 = vdwg.mxu0
  %227 = vmatprep.subr.bf16.mxu0 0
  %228 = vmatpush1.bf16.msra.mxu0 0
  %229 = vmatprep.subr.bf16.mxu0 0
  %230 = vmatpush1.bf16.msra.mxu0 0
  %231 = vmatprep.subr.bf16.mxu0 0
  %232 = vmatpush1.bf16.msra.mxu0 0
  %233 = vmatprep.subr.bf16.mxu0 0
  %234 = vmatpush1.bf16.msra.mxu0 0
  %235 = vmatprep.subr.bf16.mxu0 0
  %236 = vmatpush1.bf16.msra.mxu0 0
  %237 = vmatprep.subr.bf16.mxu0 0
  %238 = vmatpush1.bf16.msra.mxu0 0
  %239 = vmatprep.subr.bf16.mxu0 0
  %240 = vmatpush1.bf16.msra.mxu0 0
  %241 = vmatprep.subr.bf16.mxu0 0
  %242 = vmatpush1.bf16.msra.mxu0 %v176
  %243 = vmatprep.subr.bf16.mxu0 0
  %244 = vmatpush2.bf16.msra.mxu0 0
  %245 = vmatprep.subr.bf16.mxu0 0
  %246 = vmatpush2.bf16.msra.mxu0 0
  %247 = vmatprep.subr.bf16.mxu0 0
  %248 = vmatpush2.bf16.msra.mxu0 0
  %249 = vmatprep.subr.bf16.mxu0 0
  %250 = vmatpush2.bf16.msra.mxu0 0
  %251 = vmatprep.subr.bf16.mxu0 0
  %252 = vmatpush2.bf16.msra.mxu0 0
  %253 = vmatprep.subr.bf16.mxu0 0
  %254 = vmatpush2.bf16.msra.mxu0 0
  %255 = vmatprep.subr.bf16.mxu0 0
  %256 = vmatpush2.bf16.msra.mxu0 0
  %257 = vmatprep.subr.bf16.mxu0 0
  %258 = vmatpush2.bf16.msra.mxu0 0
  %259 = vmatprep.mubr.bf16.mxu0 0
  %260 = vmatmul.mubr.bf16.gmra.mxu0 %v36
  %v261 = vpop.f32.mrf.mxu0
  %v262 = vadd.f32 %v222, %v261
  %v263 = vpop.f32.mrf.mxu0
  %v264 = vpop.f32.mrf.mxu0
  %v265 = vpop.f32.mrf.mxu0
  %266 = vdwg.mxu0
  %v267 = vadd.f32 %v262, %v32
  %s268 = scalar_lea.vmem %s1, 128
  %v269 = vld [vmem:[%s268] sm:$0xff]
  %v270 = vld [vmem:[%s268 + $0x8] sm:$0xff]
  %v271 = vpack.c.bf16 %v270, %v269
  %s272 = scalar_lea.vmem %s1, 96
  %v273 = vld [vmem:[%s272] sm:$0xff]
  %v274 = vld [vmem:[%s272 + $0x8] sm:$0xff]
  %v275 = vpack.c.bf16 %v274, %v273
  %276 = vmatprep.subr.bf16.mxu0 0
  %277 = vmatpush1.bf16.msra.mxu0 0
  %278 = vmatprep.subr.bf16.mxu0 0
  %279 = vmatpush1.bf16.msra.mxu0 0
  %280 = vmatprep.subr.bf16.mxu0 0
  %281 = vmatpush1.bf16.msra.mxu0 0
  %282 = vmatprep.subr.bf16.mxu0 0
  %283 = vmatpush1.bf16.msra.mxu0 0
  %284 = vmatprep.subr.bf16.mxu0 0
  %285 = vmatpush1.bf16.msra.mxu0 0
  %286 = vmatprep.subr.bf16.mxu0 0
  %287 = vmatpush1.bf16.msra.mxu0 0
  %288 = vmatprep.subr.bf16.mxu0 0
  %289 = vmatpush1.bf16.msra.mxu0 0
  %290 = vmatprep.subr.bf16.mxu0 0
  %291 = vmatpush1.bf16.msra.mxu0 %v275
  %292 = vmatprep.subr.bf16.mxu0 0
  %293 = vmatpush2.bf16.msra.mxu0 0
  %294 = vmatprep.subr.bf16.mxu0 0
  %295 = vmatpush2.bf16.msra.mxu0 0
  %296 = vmatprep.subr.bf16.mxu0 0
  %297 = vmatpush2.bf16.msra.mxu0 0
  %298 = vmatprep.subr.bf16.mxu0 0
  %299 = vmatpush2.bf16.msra.mxu0 0
  %300 = vmatprep.subr.bf16.mxu0 0
  %301 = vmatpush2.bf16.msra.mxu0 0
  %302 = vmatprep.subr.bf16.mxu0 0
  %303 = vmatpush2.bf16.msra.mxu0 0
  %304 = vmatprep.subr.bf16.mxu0 0
  %305 = vmatpush2.bf16.msra.mxu0 0
  %306 = vmatprep.subr.bf16.mxu0 0
  %307 = vmatpush2.bf16.msra.mxu0 0
  %308 = vmatprep.mubr.bf16.mxu0 0
  %309 = vmatmul.mubr.bf16.gmra.mxu0 %v90
  %v310 = vpop.f32.mrf.mxu0
  %v311 = vadd.f32 0.0, %v310
  %v312 = vpop.f32.mrf.mxu0
  %v313 = vpop.f32.mrf.mxu0
  %v314 = vpop.f32.mrf.mxu0
  %315 = vdwg.mxu0
  %316 = vmatprep.subr.bf16.mxu0 0
  %317 = vmatpush1.bf16.msra.mxu0 0
  %318 = vmatprep.subr.bf16.mxu0 0
  %319 = vmatpush1.bf16.msra.mxu0 0
  %320 = vmatprep.subr.bf16.mxu0 0
  %321 = vmatpush1.bf16.msra.mxu0 0
  %322 = vmatprep.subr.bf16.mxu0 0
  %323 = vmatpush1.bf16.msra.mxu0 0
  %324 = vmatprep.subr.bf16.mxu0 0
  %325 = vmatpush1.bf16.msra.mxu0 0
  %326 = vmatprep.subr.bf16.mxu0 0
  %327 = vmatpush1.bf16.msra.mxu0 0
  %328 = vmatprep.subr.bf16.mxu0 0
  %329 = vmatpush1.bf16.msra.mxu0 0
  %330 = vmatprep.subr.bf16.mxu0 0
  %331 = vmatpush1.bf16.msra.mxu0 %v271
  %332 = vmatprep.subr.bf16.mxu0 0
  %333 = vmatpush2.bf16.msra.mxu0 0
  %334 = vmatprep.subr.bf16.mxu0 0
  %335 = vmatpush2.bf16.msra.mxu0 0
  %336 = vmatprep.subr.bf16.mxu0 0
  %337 = vmatpush2.bf16.msra.mxu0 0
  %338 = vmatprep.subr.bf16.mxu0 0
  %339 = vmatpush2.bf16.msra.mxu0 0
  %340 = vmatprep.subr.bf16.mxu0 0
  %341 = vmatpush2.bf16.msra.mxu0 0
  %342 = vmatprep.subr.bf16.mxu0 0
  %343 = vmatpush2.bf16.msra.mxu0 0
  %344 = vmatprep.subr.bf16.mxu0 0
  %345 = vmatpush2.bf16.msra.mxu0 0
  %346 = vmatprep.subr.bf16.mxu0 0
  %347 = vmatpush2.bf16.msra.mxu0 0
  %348 = vmatprep.mubr.bf16.mxu0 0
  %349 = vmatmul.mubr.bf16.gmra.mxu0 %v36
  %v350 = vpop.f32.mrf.mxu0
  %v351 = vadd.f32 %v311, %v350
  %v352 = vpop.f32.mrf.mxu0
  %v353 = vpop.f32.mrf.mxu0
  %v354 = vpop.f32.mrf.mxu0
  %355 = vdwg.mxu0
  %s356 = scalar_lea.vmem %s1, 32
  %v357 = vld [vmem:[%s356] sm:$0xff]
  %v358 = vld [vmem:[%s356 + $0x8] sm:$0xff]
  %v359 = vpack.c.bf16 %v358, %v357
  %360 = vmatprep.subr.bf16.mxu0 0
  %361 = vmatpush1.bf16.msra.mxu0 0
  %362 = vmatprep.subr.bf16.mxu0 0
  %363 = vmatpush1.bf16.msra.mxu0 0
  %364 = vmatprep.subr.bf16.mxu0 0
  %365 = vmatpush1.bf16.msra.mxu0 0
  %366 = vmatprep.subr.bf16.mxu0 0
  %367 = vmatpush1.bf16.msra.mxu0 0
  %368 = vmatprep.subr.bf16.mxu0 0
  %369 = vmatpush1.bf16.msra.mxu0 0
  %370 = vmatprep.subr.bf16.mxu0 0
  %371 = vmatpush1.bf16.msra.mxu0 0
  %372 = vmatprep.subr.bf16.mxu0 0
  %373 = vmatpush1.bf16.msra.mxu0 0
  %374 = vmatprep.subr.bf16.mxu0 0
  %375 = vmatpush1.bf16.msra.mxu0 %v359
  %376 = vmatprep.subr.bf16.mxu0 0
  %377 = vmatpush2.bf16.msra.mxu0 0
  %378 = vmatprep.subr.bf16.mxu0 0
  %379 = vmatpush2.bf16.msra.mxu0 0
  %380 = vmatprep.subr.bf16.mxu0 0
  %381 = vmatpush2.bf16.msra.mxu0 0
  %382 = vmatprep.subr.bf16.mxu0 0
  %383 = vmatpush2.bf16.msra.mxu0 0
  %384 = vmatprep.subr.bf16.mxu0 0
  %385 = vmatpush2.bf16.msra.mxu0 0
  %386 = vmatprep.subr.bf16.mxu0 0
  %387 = vmatpush2.bf16.msra.mxu0 0
  %388 = vmatprep.subr.bf16.mxu0 0
  %389 = vmatpush2.bf16.msra.mxu0 0
  %390 = vmatprep.subr.bf16.mxu0 0
  %391 = vmatpush2.bf16.msra.mxu0 0
  %392 = vmatprep.mubr.bf16.mxu0 0
  %393 = vmatmul.mubr.bf16.gmra.mxu0 %v185
  %v394 = vpop.f32.mrf.mxu0
  %v395 = vadd.f32 0.0, %v394
  %v396 = vpop.f32.mrf.mxu0
  %v397 = vpop.f32.mrf.mxu0
  %v398 = vpop.f32.mrf.mxu0
  %399 = vdwg.mxu0
  %v400 = vadd.f32 %v351, %v395
  %s401 = scalar_lea.vmem %s0, 24
  %v402 = vld [vmem:[%s401] sm:$0xff]
  %v403 = vpack.c.bf16 %v402, %v402
  %v404 = vld [vmem:[%s1] sm:$0xff]
  %v405 = vld [vmem:[%s1 + $0x8] sm:$0xff]
  %v406 = vpack.c.bf16 %v405, %v404
  %v408 = vsel %vm34, %v403, 0
  %410 = vmatprep.subr.bf16.mxu0 0
  %411 = vmatpush1.bf16.msra.mxu0 0
  %412 = vmatprep.subr.bf16.mxu0 0
  %413 = vmatpush1.bf16.msra.mxu0 0
  %414 = vmatprep.subr.bf16.mxu0 0
  %415 = vmatpush1.bf16.msra.mxu0 0
  %416 = vmatprep.subr.bf16.mxu0 0
  %417 = vmatpush1.bf16.msra.mxu0 0
  %418 = vmatprep.subr.bf16.mxu0 0
  %419 = vmatpush1.bf16.msra.mxu0 0
  %420 = vmatprep.subr.bf16.mxu0 0
  %421 = vmatpush1.bf16.msra.mxu0 0
  %422 = vmatprep.subr.bf16.mxu0 0
  %423 = vmatpush1.bf16.msra.mxu0 0
  %424 = vmatprep.subr.bf16.mxu0 0
  %425 = vmatpush1.bf16.msra.mxu0 %v406
  %426 = vmatprep.subr.bf16.mxu0 0
  %427 = vmatpush2.bf16.msra.mxu0 0
  %428 = vmatprep.subr.bf16.mxu0 0
  %429 = vmatpush2.bf16.msra.mxu0 0
  %430 = vmatprep.subr.bf16.mxu0 0
  %431 = vmatpush2.bf16.msra.mxu0 0
  %432 = vmatprep.subr.bf16.mxu0 0
  %433 = vmatpush2.bf16.msra.mxu0 0
  %434 = vmatprep.subr.bf16.mxu0 0
  %435 = vmatpush2.bf16.msra.mxu0 0
  %436 = vmatprep.subr.bf16.mxu0 0
  %437 = vmatpush2.bf16.msra.mxu0 0
  %438 = vmatprep.subr.bf16.mxu0 0
  %439 = vmatpush2.bf16.msra.mxu0 0
  %440 = vmatprep.subr.bf16.mxu0 0
  %441 = vmatpush2.bf16.msra.mxu0 0
  %442 = vmatprep.mubr.bf16.mxu0 0
  %443 = vmatmul.mubr.bf16.gmra.mxu0 %v408
  %v444 = vpop.f32.mrf.mxu0
  %v445 = vadd.f32 0.0, %v444
  %v446 = vpop.f32.mrf.mxu0
  %v447 = vpop.f32.mrf.mxu0
  %v448 = vpop.f32.mrf.mxu0
  %449 = vdwg.mxu0
  %v450 = vadd.f32 %v400, %v445
  %v451 = vadd.f32 %v450, %v32
  %vm452 = vcmask 64512
  %v453 = vsel %vm452, %v73, 0.0
  %v454 = vrot.slane %v453, 4
  %v455 = vadd.f32 %v453, %v454
  %v456 = vrot.slane %v455, 2
  %v457 = vadd.f32 %v455, %v456
  %v458 = vrot.slane %v457, 1
  %v459 = vadd.f32 %v457, %v458
  %v460 = vadd.f32 %v459, 0.0
  %v461 = vmul.f32 %v73, %v73
  %v462 = vsel %vm452, %v461, 0.0
  %v463 = vrot.slane %v462, 4
  %v464 = vadd.f32 %v462, %v463
  %v465 = vrot.slane %v464, 2
  %v466 = vadd.f32 %v464, %v465
  %v467 = vrot.slane %v466, 1
  %v468 = vadd.f32 %v466, %v467
  %v469 = vadd.f32 %v468, 0.0
  %v470 = vsel %vm452, %v172, 0.0
  %v471 = vrot.slane %v470, 4
  %v472 = vadd.f32 %v470, %v471
  %v473 = vrot.slane %v472, 2
  %v474 = vadd.f32 %v472, %v473
  %v475 = vrot.slane %v474, 1
  %v476 = vadd.f32 %v474, %v475
  %v477 = vadd.f32 %v460, %v476
  %v478 = vmul.f32 %v172, %v172
  %v479 = vsel %vm452, %v478, 0.0
  %v480 = vrot.slane %v479, 4
  %v481 = vadd.f32 %v479, %v480
  %v482 = vrot.slane %v481, 2
  %v483 = vadd.f32 %v481, %v482
  %v484 = vrot.slane %v483, 1
  %v485 = vadd.f32 %v483, %v484
  %v486 = vadd.f32 %v469, %v485
  %v487 = vsel %vm452, %v267, 0.0
  %v488 = vrot.slane %v487, 4
  %v489 = vadd.f32 %v487, %v488
  %v490 = vrot.slane %v489, 2
  %v491 = vadd.f32 %v489, %v490
  %v492 = vrot.slane %v491, 1
  %v493 = vadd.f32 %v491, %v492
  %v494 = vadd.f32 %v477, %v493
  %v495 = vmul.f32 %v267, %v267
  %v496 = vsel %vm452, %v495, 0.0
  %v497 = vrot.slane %v496, 4
  %v498 = vadd.f32 %v496, %v497
  %v499 = vrot.slane %v498, 2
  %v500 = vadd.f32 %v498, %v499
  %v501 = vrot.slane %v500, 1
  %v502 = vadd.f32 %v500, %v501
  %v503 = vadd.f32 %v486, %v502
  %v504 = vsel %vm452, %v451, 0.0
  %v505 = vrot.slane %v504, 4
  %v506 = vadd.f32 %v504, %v505
  %v507 = vrot.slane %v506, 2
  %v508 = vadd.f32 %v506, %v507
  %v509 = vrot.slane %v508, 1
  %v510 = vadd.f32 %v508, %v509
  %v511 = vadd.f32 %v494, %v510
  %v512 = vmul.f32 %v451, %v451
  %v513 = vsel %vm452, %v512, 0.0
  %v514 = vrot.slane %v513, 4
  %v515 = vadd.f32 %v513, %v514
  %v516 = vrot.slane %v515, 2
  %v517 = vadd.f32 %v515, %v516
  %v518 = vrot.slane %v517, 1
  %v519 = vadd.f32 %v517, %v518
  %v520 = vadd.f32 %v503, %v519
  %v521 = vmul.f32 %v511, 0.03125
  %v522 = vmul.f32 %v520, 0.03125
  %v523 = vmul.f32 %v521, %v521
  %v524 = vsub.f32 %v522, %v523
  %v525 = vmax.f32 %v524, 0.0
  %v526 = vld [vmem:[%s3] sm:$0x1]
  %v527 = vadd.f32 %v525, 1e-05
  %v528 = vrsqrt.pop %v527
  %v529 = vmul.f32 %v526, %v528
  %v530 = vld [vmem:[%s4] sm:$0x1]
  %v531 = vmul.f32 %v521, %v529
  %v532 = vsub.f32 %v530, %v531
  %v534 = vlaneseq
  %v535 = vshrl.u32 %v534, 7
  %v536 = vsub.s32 0, %v535
  %v537 = vrot.slane %v529, %v536
  %v539 = vmul.f32 %v73, %v537
  %v541 = vlaneseq
  %v542 = vshrl.u32 %v541, 7
  %v543 = vsub.s32 0, %v542
  %v544 = vrot.slane %v532, %v543
  %v546 = vadd.f32 %v539, %v544
  %vm547 = vcmp.gt.f32.partialorder %v546, 0.0
  %v548 = vmul.f32 %v546, 0.01
  %v549 = vsel %vm547, %v546, %v548
  %550 = vst.msk [vmem:[%s5] sm:$0xff] %vm452, %v549
  %v551 = vmul.f32 %v172, %v537
  %v552 = vadd.f32 %v551, %v544
  %vm553 = vcmp.gt.f32.partialorder %v552, 0.0
  %v554 = vmul.f32 %v552, 0.01
  %v555 = vsel %vm553, %v552, %v554
  %s556 = scalar_lea.vmem %s5, 8
  %557 = vst.msk [vmem:[%s556] sm:$0xff] %vm452, %v555
  %v558 = vmul.f32 %v267, %v537
  %v559 = vadd.f32 %v558, %v544
  %vm560 = vcmp.gt.f32.partialorder %v559, 0.0
  %v561 = vmul.f32 %v559, 0.01
  %v562 = vsel %vm560, %v559, %v561
  %s563 = scalar_lea.vmem %s5, 16
  %564 = vst.msk [vmem:[%s563] sm:$0xff] %vm452, %v562
  %v565 = vmul.f32 %v451, %v537
  %v566 = vadd.f32 %v565, %v544
  %vm567 = vcmp.gt.f32.partialorder %v566, 0.0
  %v568 = vmul.f32 %v566, 0.01
  %v569 = vsel %vm567, %v566, %v568
  %s570 = scalar_lea.vmem %s5, 24
  %571 = vst.msk [vmem:[%s570] sm:$0xff] %vm452, %v569
  // Predicated region
  $region22: #{vae_forward.9} parent=0 // pred_check
    _
  $region23: #{vae_forward.9} parent=0 // pred_check_branch
    %573 = sbr.rel (0) target = $region25
  $region24: #{vae_forward.9} parent=0 // pred_region
    _
  $region25: #{vae_forward.9} parent=0 // pred_fallthru
    _
  // Predicated region
  $region26: #{vae_forward.9} parent=0 // pred_check
    _
  $region27: #{vae_forward.9} parent=0 // pred_check_branch
    %575 = sbr.rel (0) target = $region29
  $region28: #{vae_forward.9} parent=0 // pred_region
    _
  $region29: #{vae_forward.9} parent=0 // pred_fallthru
    _

// kernel: vae_forward.10
$region0: #{vae_forward.10}
  #allocation0 [shape = 'u32[]', space=smem, size = 0x4, offset = 0x4, fixed_abs, tag = 'smem constant byte address 0x4 - core index']
  #allocation1 [shape = 'u32[144,128]{1,0:T(1,128)}', space=vmem, size = 0x12000, scoped, tag = 'internal scratch']
  %s0 = inlined_call_operand.vmem [shape: f32[4,32,8], index: 0, kind: input, shape index: {}]
  %s1 = inlined_call_operand.vmem [shape: f32[9,8,8], index: 1, kind: input, shape index: {}]
  %s2 = inlined_call_operand.vmem [shape: f32[1,8], index: 2, kind: input, shape index: {}]
  %s3 = inlined_call_operand.vmem [shape: f32[1,8], index: 3, kind: input, shape index: {}]
  %s4 = inlined_call_operand.vmem [shape: f32[1,8], index: 4, kind: input, shape index: {}]
  %s5 = inlined_call_operand.vmem [shape: f32[4,32,8], index: 5, kind: output, shape index: {}]
  %s6 = sld [smem:[#allocation0]]
  $region30: #{vae_forward.10} parent=0
    _
  %s8 = ssub.s32 1, %s6
  %s9 = scalar_select 0, %s8, %s6
  // Predicated region
  $region2: #{vae_forward.10} parent=0 // pred_check
    _
  $region3: #{vae_forward.10} parent=0 // pred_check_branch
    %11 = sbr.rel (0) target = $region5
  $region4: #{vae_forward.10} parent=0 // pred_region
    _
  $region5: #{vae_forward.10} parent=0 // pred_fallthru
    _
  // Predicated region
  $region6: #{vae_forward.10} parent=0 // pred_check
    _
  $region7: #{vae_forward.10} parent=0 // pred_check_branch
    %13 = sbr.rel (0) target = $region9
  $region8: #{vae_forward.10} parent=0 // pred_region
    _
  $region9: #{vae_forward.10} parent=0 // pred_fallthru
    _
  // Predicated region
  $region10: #{vae_forward.10} parent=0 // pred_check
    _
  $region11: #{vae_forward.10} parent=0 // pred_check_branch
    %15 = sbr.rel (0) target = $region13
  $region12: #{vae_forward.10} parent=0 // pred_region
    _
  $region13: #{vae_forward.10} parent=0 // pred_fallthru
    _
  // Predicated region
  $region14: #{vae_forward.10} parent=0 // pred_check
    _
  $region15: #{vae_forward.10} parent=0 // pred_check_branch
    %17 = sbr.rel (0) target = $region17
  $region16: #{vae_forward.10} parent=0 // pred_region
    _
  $region17: #{vae_forward.10} parent=0 // pred_fallthru
    _
  // Predicated region
  $region18: #{vae_forward.10} parent=0 // pred_check
    _
  $region19: #{vae_forward.10} parent=0 // pred_check_branch
    %19 = sbr.rel (0) target = $region21
  $region20: #{vae_forward.10} parent=0 // pred_region
    _
  $region21: #{vae_forward.10} parent=0 // pred_fallthru
    _
  %v21 = vld [vmem:[%s2] sm:$0x1]
  %v22 = vld [vmem:[%s0] sm:$0xff]
  %v23 = vld [vmem:[%s0 + $0x8] sm:$0xff]
  %v24 = vld [vmem:[%s0 + $0x10] sm:$0xff]
  %v25 = vld [vmem:[%s0 + $0x18] sm:$0xff]
  %v26 = vpack.c.bf16 %v23, %v22
  %v27 = vpack.c.bf16 %v25, %v24
  %s28 = scalar_lea.vmem %s1, 32
  %v29 = vld [vmem:[%s28] sm:$0xff]
  %v30 = vpack.c.bf16 %v29, %v29
  %v32 = vlaneseq
  %v33 = vshrl.u32 %v32, 7
  %v34 = vsub.s32 0, %v33
  %v35 = vrot.slane %v21, %v34
  %vm37 = vcmask 64512
  %v39 = vsel %vm37, %v26, 0
  %v42 = vsel %vm37, %v27, 0
  %vm44 = vcmask 1043456
  %v46 = vsel %vm44, %v30, 0
  %48 = vmatprep.subr.bf16.mxu0 0
  %49 = vmatpush1.bf16.msra.mxu0 0
  %50 = vmatprep.subr.bf16.mxu0 0
  %51 = vmatpush1.bf16.msra.mxu0 0
  %52 = vmatprep.subr.bf16.mxu0 0
  %53 = vmatpush1.bf16.msra.mxu0 0
  %54 = vmatprep.subr.bf16.mxu0 0
  %55 = vmatpush1.bf16.msra.mxu0 0
  %56 = vmatprep.subr.bf16.mxu0 0
  %57 = vmatpush1.bf16.msra.mxu0 0
  %58 = vmatprep.subr.bf16.mxu0 0
  %59 = vmatpush1.bf16.msra.mxu0 0
  %60 = vmatprep.subr.bf16.mxu0 0
  %61 = vmatpush1.bf16.msra.mxu0 0
  %62 = vmatprep.subr.bf16.mxu0 0
  %63 = vmatpush1.bf16.msra.mxu0 %v46
  %64 = vmatprep.subr.bf16.mxu0 0
  %65 = vmatpush2.bf16.msra.mxu0 0
  %66 = vmatprep.subr.bf16.mxu0 0
  %67 = vmatpush2.bf16.msra.mxu0 0
  %68 = vmatprep.subr.bf16.mxu0 0
  %69 = vmatpush2.bf16.msra.mxu0 0
  %70 = vmatprep.subr.bf16.mxu0 0
  %71 = vmatpush2.bf16.msra.mxu0 0
  %72 = vmatprep.subr.bf16.mxu0 0
  %73 = vmatpush2.bf16.msra.mxu0 0
  %74 = vmatprep.subr.bf16.mxu0 0
  %75 = vmatpush2.bf16.msra.mxu0 0
  %76 = vmatprep.subr.bf16.mxu0 0
  %77 = vmatpush2.bf16.msra.mxu0 0
  %78 = vmatprep.subr.bf16.mxu0 0
  %79 = vmatpush2.bf16.msra.mxu0 0
  %80 = vmatprep.mubr.bf16.mxu0 0
  %81 = vmatmul.mubr.bf16.gmra.mxu0 %v39
  %v82 = vpop.f32.mrf.mxu0
  %v83 = vadd.f32 %v35, %v82
  %v84 = vpop.f32.mrf.mxu0
  %v85 = vpop.f32.mrf.mxu0
  %v86 = vadd.f32 %v35, %v85
  %v87 = vpop.f32.mrf.mxu0
  %88 = vmatprep.mubr.bf16.mxu0 0
  %89 = vmatmul.mubr.bf16.gmra.mxu0 %v42
  %v90 = vpop.f32.mrf.mxu0
  %v91 = vadd.f32 %v35, %v90
  %v92 = vpop.f32.mrf.mxu0
  %v93 = vpop.f32.mrf.mxu0
  %v94 = vadd.f32 %v35, %v93
  %v95 = vpop.f32.mrf.mxu0
  %96 = vdwg.mxu0
  %s97 = scalar_lea.vmem %s1, 40
  %v98 = vld [vmem:[%s97] sm:$0xff]
  %v99 = vpack.c.bf16 %v98, %v98
  %s100 = scalar_lea.vmem %s0, 32
  %v101 = vld [vmem:[%s100] sm:$0xff]
  %v102 = vld [vmem:[%s100 + $0x8] sm:$0xff]
  %v103 = vld [vmem:[%s100 + $0x10] sm:$0xff]
  %v104 = vld [vmem:[%s100 + $0x18] sm:$0xff]
  %v105 = vpack.c.bf16 %v102, %v101
  %v106 = vpack.c.bf16 %v104, %v103
  %s107 = scalar_lea.vmem %s1, 24
  %v108 = vld [vmem:[%s107] sm:$0xff]
  %v109 = vpack.c.bf16 %v108, %v108
  %v111 = vsel %vm37, %v105, 0
  %v114 = vsel %vm37, %v106, 0
  %v117 = vsel %vm44, %v109, 0
  %119 = vmatprep.subr.bf16.mxu0 0
  %120 = vmatpush1.bf16.msra.mxu0 0
  %121 = vmatprep.subr.bf16.mxu0 0
  %122 = vmatpush1.bf16.msra.mxu0 0
  %123 = vmatprep.subr.bf16.mxu0 0
  %124 = vmatpush1.bf16.msra.mxu0 0
  %125 = vmatprep.subr.bf16.mxu0 0
  %126 = vmatpush1.bf16.msra.mxu0 0
  %127 = vmatprep.subr.bf16.mxu0 0
  %128 = vmatpush1.bf16.msra.mxu0 0
  %129 = vmatprep.subr.bf16.mxu0 0
  %130 = vmatpush1.bf16.msra.mxu0 0
  %131 = vmatprep.subr.bf16.mxu0 0
  %132 = vmatpush1.bf16.msra.mxu0 0
  %133 = vmatprep.subr.bf16.mxu0 0
  %134 = vmatpush1.bf16.msra.mxu0 %v117
  %135 = vmatprep.subr.bf16.mxu0 0
  %136 = vmatpush2.bf16.msra.mxu0 0
  %137 = vmatprep.subr.bf16.mxu0 0
  %138 = vmatpush2.bf16.msra.mxu0 0
  %139 = vmatprep.subr.bf16.mxu0 0
  %140 = vmatpush2.bf16.msra.mxu0 0
  %141 = vmatprep.subr.bf16.mxu0 0
  %142 = vmatpush2.bf16.msra.mxu0 0
  %143 = vmatprep.subr.bf16.mxu0 0
  %144 = vmatpush2.bf16.msra.mxu0 0
  %145 = vmatprep.subr.bf16.mxu0 0
  %146 = vmatpush2.bf16.msra.mxu0 0
  %147 = vmatprep.subr.bf16.mxu0 0
  %148 = vmatpush2.bf16.msra.mxu0 0
  %149 = vmatprep.subr.bf16.mxu0 0
  %150 = vmatpush2.bf16.msra.mxu0 0
  %151 = vmatprep.mubr.bf16.mxu0 0
  %152 = vmatmul.mubr.bf16.gmra.mxu0 %v111
  %v153 = vpop.f32.mrf.mxu0
  %v154 = vadd.f32 0.0, %v153
  %v155 = vpop.f32.mrf.mxu0
  %v156 = vpop.f32.mrf.mxu0
  %v157 = vadd.f32 0.0, %v156
  %v158 = vpop.f32.mrf.mxu0
  %159 = vmatprep.mubr.bf16.mxu0 0
  %160 = vmatmul.mubr.bf16.gmra.mxu0 %v114
  %v161 = vpop.f32.mrf.mxu0
  %v162 = vadd.f32 0.0, %v161
  %v163 = vpop.f32.mrf.mxu0
  %v164 = vpop.f32.mrf.mxu0
  %v165 = vadd.f32 0.0, %v164
  %v166 = vpop.f32.mrf.mxu0
  %167 = vdwg.mxu0
  %v169 = vsel %vm44, %v99, 0
  %171 = vmatprep.subr.bf16.mxu0 0
  %172 = vmatpush1.bf16.msra.mxu0 0
  %173 = vmatprep.subr.bf16.mxu0 0
  %174 = vmatpush1.bf16.msra.mxu0 0
  %175 = vmatprep.subr.bf16.mxu0 0
  %176 = vmatpush1.bf16.msra.mxu0 0
  %177 = vmatprep.subr.bf16.mxu0 0
  %178 = vmatpush1.bf16.msra.mxu0 0
  %179 = vmatprep.subr.bf16.mxu0 0
  %180 = vmatpush1.bf16.msra.mxu0 0
  %181 = vmatprep.subr.bf16.mxu0 0
  %182 = vmatpush1.bf16.msra.mxu0 0
  %183 = vmatprep.subr.bf16.mxu0 0
  %184 = vmatpush1.bf16.msra.mxu0 0
  %185 = vmatprep.subr.bf16.mxu0 0
  %186 = vmatpush1.bf16.msra.mxu0 %v169
  %187 = vmatprep.subr.bf16.mxu0 0
  %188 = vmatpush2.bf16.msra.mxu0 0
  %189 = vmatprep.subr.bf16.mxu0 0
  %190 = vmatpush2.bf16.msra.mxu0 0
  %191 = vmatprep.subr.bf16.mxu0 0
  %192 = vmatpush2.bf16.msra.mxu0 0
  %193 = vmatprep.subr.bf16.mxu0 0
  %194 = vmatpush2.bf16.msra.mxu0 0
  %195 = vmatprep.subr.bf16.mxu0 0
  %196 = vmatpush2.bf16.msra.mxu0 0
  %197 = vmatprep.subr.bf16.mxu0 0
  %198 = vmatpush2.bf16.msra.mxu0 0
  %199 = vmatprep.subr.bf16.mxu0 0
  %200 = vmatpush2.bf16.msra.mxu0 0
  %201 = vmatprep.subr.bf16.mxu0 0
  %202 = vmatpush2.bf16.msra.mxu0 0
  %203 = vmatprep.mubr.bf16.mxu0 0
  %204 = vmatmul.mubr.bf16.gmra.mxu0 %v39
  %v205 = vpop.f32.mrf.mxu0
  %v206 = vadd.f32 %v154, %v205
  %v207 = vpop.f32.mrf.mxu0
  %v208 = vpop.f32.mrf.mxu0
  %v209 = vadd.f32 %v157, %v208
  %v210 = vpop.f32.mrf.mxu0
  %211 = vmatprep.mubr.bf16.mxu0 0
  %212 = vmatmul.mubr.bf16.gmra.mxu0 %v42
  %v213 = vpop.f32.mrf.mxu0
  %v214 = vadd.f32 %v162, %v213
  %v215 = vpop.f32.mrf.mxu0
  %v216 = vpop.f32.mrf.mxu0
  %v217 = vadd.f32 %v165, %v216
  %v218 = vpop.f32.mrf.mxu0
  %219 = vdwg.mxu0
  %v220 = vadd.f32 %v206, %v35
  %v221 = vadd.f32 %v209, %v35
  %v222 = vadd.f32 %v214, %v35
  %v223 = vadd.f32 %v217, %v35
  %s224 = scalar_lea.vmem %s1, 56
  %v225 = vld [vmem:[%s224] sm:$0xff]
  %v226 = vpack.c.bf16 %v225, %v225
  %s227 = scalar_lea.vmem %s0, 64
  %v228 = vld [vmem:[%s227] sm:$0xff]
  %v229 = vld [vmem:[%s227 + $0x8] sm:$0xff]
  %v230 = vld [vmem:[%s227 + $0x10] sm:$0xff]
  %v231 = vld [vmem:[%s227 + $0x18] sm:$0xff]
  %v232 = vpack.c.bf16 %v229, %v228
  %v233 = vpack.c.bf16 %v231, %v230
  %s234 = scalar_lea.vmem %s1, 8
  %v235 = vld [vmem:[%s234] sm:$0xff]
  %v236 = vpack.c.bf16 %v235, %v235
  %v238 = vsel %vm37, %v232, 0
  %v241 = vsel %vm37, %v233, 0
  %v244 = vsel %vm44, %v236, 0
  %246 = vmatprep.subr.bf16.mxu0 0
  %247 = vmatpush1.bf16.msra.mxu0 0
  %248 = vmatprep.subr.bf16.mxu0 0
  %249 = vmatpush1.bf16.msra.mxu0 0
  %250 = vmatprep.subr.bf16.mxu0 0
  %251 = vmatpush1.bf16.msra.mxu0 0
  %252 = vmatprep.subr.bf16.mxu0 0
  %253 = vmatpush1.bf16.msra.mxu0 0
  %254 = vmatprep.subr.bf16.mxu0 0
  %255 = vmatpush1.bf16.msra.mxu0 0
  %256 = vmatprep.subr.bf16.mxu0 0
  %257 = vmatpush1.bf16.msra.mxu0 0
  %258 = vmatprep.subr.bf16.mxu0 0
  %259 = vmatpush1.bf16.msra.mxu0 0
  %260 = vmatprep.subr.bf16.mxu0 0
  %261 = vmatpush1.bf16.msra.mxu0 %v244
  %262 = vmatprep.subr.bf16.mxu0 0
  %263 = vmatpush2.bf16.msra.mxu0 0
  %264 = vmatprep.subr.bf16.mxu0 0
  %265 = vmatpush2.bf16.msra.mxu0 0
  %266 = vmatprep.subr.bf16.mxu0 0
  %267 = vmatpush2.bf16.msra.mxu0 0
  %268 = vmatprep.subr.bf16.mxu0 0
  %269 = vmatpush2.bf16.msra.mxu0 0
  %270 = vmatprep.subr.bf16.mxu0 0
  %271 = vmatpush2.bf16.msra.mxu0 0
  %272 = vmatprep.subr.bf16.mxu0 0
  %273 = vmatpush2.bf16.msra.mxu0 0
  %274 = vmatprep.subr.bf16.mxu0 0
  %275 = vmatpush2.bf16.msra.mxu0 0
  %276 = vmatprep.subr.bf16.mxu0 0
  %277 = vmatpush2.bf16.msra.mxu0 0
  %278 = vmatprep.mubr.bf16.mxu0 0
  %279 = vmatmul.mubr.bf16.gmra.mxu0 %v238
  %v280 = vpop.f32.mrf.mxu0
  %v281 = vadd.f32 0.0, %v280
  %v282 = vpop.f32.mrf.mxu0
  %v283 = vpop.f32.mrf.mxu0
  %v284 = vadd.f32 0.0, %v283
  %v285 = vpop.f32.mrf.mxu0
  %286 = vmatprep.mubr.bf16.mxu0 0
  %287 = vmatmul.mubr.bf16.gmra.mxu0 %v241
  %v288 = vpop.f32.mrf.mxu0
  %v289 = vadd.f32 0.0, %v288
  %v290 = vpop.f32.mrf.mxu0
  %v291 = vpop.f32.mrf.mxu0
  %v292 = vadd.f32 0.0, %v291
  %v293 = vpop.f32.mrf.mxu0
  %294 = vdwg.mxu0
  %v296 = vsel %vm44, %v226, 0
  %298 = vmatprep.subr.bf16.mxu0 0
  %299 = vmatpush1.bf16.msra.mxu0 0
  %300 = vmatprep.subr.bf16.mxu0 0
  %301 = vmatpush1.bf16.msra.mxu0 0
  %302 = vmatprep.subr.bf16.mxu0 0
  %303 = vmatpush1.bf16.msra.mxu0 0
  %304 = vmatprep.subr.bf16.mxu0 0
  %305 = vmatpush1.bf16.msra.mxu0 0
  %306 = vmatprep.subr.bf16.mxu0 0
  %307 = vmatpush1.bf16.msra.mxu0 0
  %308 = vmatprep.subr.bf16.mxu0 0
  %309 = vmatpush1.bf16.msra.mxu0 0
  %310 = vmatprep.subr.bf16.mxu0 0
  %311 = vmatpush1.bf16.msra.mxu0 0
  %312 = vmatprep.subr.bf16.mxu0 0
  %313 = vmatpush1.bf16.msra.mxu0 %v296
  %314 = vmatprep.subr.bf16.mxu0 0
  %315 = vmatpush2.bf16.msra.mxu0 0
  %316 = vmatprep.subr.bf16.mxu0 0
  %317 = vmatpush2.bf16.msra.mxu0 0
  %318 = vmatprep.subr.bf16.mxu0 0
  %319 = vmatpush2.bf16.msra.mxu0 0
  %320 = vmatprep.subr.bf16.mxu0 0
  %321 = vmatpush2.bf16.msra.mxu0 0
  %322 = vmatprep.subr.bf16.mxu0 0
  %323 = vmatpush2.bf16.msra.mxu0 0
  %324 = vmatprep.subr.bf16.mxu0 0
  %325 = vmatpush2.bf16.msra.mxu0 0
  %326 = vmatprep.subr.bf16.mxu0 0
  %327 = vmatpush2.bf16.msra.mxu0 0
  %328 = vmatprep.subr.bf16.mxu0 0
  %329 = vmatpush2.bf16.msra.mxu0 0
  %330 = vmatprep.mubr.bf16.mxu0 0
  %331 = vmatmul.mubr.bf16.gmra.mxu0 %v39
  %v332 = vpop.f32.mrf.mxu0
  %v333 = vadd.f32 %v281, %v332
  %v334 = vpop.f32.mrf.mxu0
  %v335 = vpop.f32.mrf.mxu0
  %v336 = vadd.f32 %v284, %v335
  %v337 = vpop.f32.mrf.mxu0
  %338 = vmatprep.mubr.bf16.mxu0 0
  %339 = vmatmul.mubr.bf16.gmra.mxu0 %v42
  %v340 = vpop.f32.mrf.mxu0
  %v341 = vadd.f32 %v289, %v340
  %v342 = vpop.f32.mrf.mxu0
  %v343 = vpop.f32.mrf.mxu0
  %v344 = vadd.f32 %v292, %v343
  %v345 = vpop.f32.mrf.mxu0
  %346 = vdwg.mxu0
  %v347 = vadd.f32 %v333, %v35
  %v348 = vadd.f32 %v336, %v35
  %v349 = vadd.f32 %v341, %v35
  %v350 = vadd.f32 %v344, %v35
  %s351 = scalar_lea.vmem %s1, 64
  %v352 = vld [vmem:[%s351] sm:$0xff]
  %v353 = vpack.c.bf16 %v352, %v352
  %s354 = scalar_lea.vmem %s1, 48
  %v355 = vld [vmem:[%s354] sm:$0xff]
  %v356 = vpack.c.bf16 %v355, %v355
  %v358 = vsel %vm44, %v356, 0
  %360 = vmatprep.subr.bf16.mxu0 0
  %361 = vmatpush1.bf16.msra.mxu0 0
  %362 = vmatprep.subr.bf16.mxu0 0
  %363 = vmatpush1.bf16.msra.mxu0 0
  %364 = vmatprep.subr.bf16.mxu0 0
  %365 = vmatpush1.bf16.msra.mxu0 0
  %366 = vmatprep.subr.bf16.mxu0 0
  %367 = vmatpush1.bf16.msra.mxu0 0
  %368 = vmatprep.subr.bf16.mxu0 0
  %369 = vmatpush1.bf16.msra.mxu0 0
  %370 = vmatprep.subr.bf16.mxu0 0
  %371 = vmatpush1.bf16.msra.mxu0 0
  %372 = vmatprep.subr.bf16.mxu0 0
  %373 = vmatpush1.bf16.msra.mxu0 0
  %374 = vmatprep.subr.bf16.mxu0 0
  %375 = vmatpush1.bf16.msra.mxu0 %v358
  %376 = vmatprep.subr.bf16.mxu0 0
  %377 = vmatpush2.bf16.msra.mxu0 0
  %378 = vmatprep.subr.bf16.mxu0 0
  %379 = vmatpush2.bf16.msra.mxu0 0
  %380 = vmatprep.subr.bf16.mxu0 0
  %381 = vmatpush2.bf16.msra.mxu0 0
  %382 = vmatprep.subr.bf16.mxu0 0
  %383 = vmatpush2.bf16.msra.mxu0 0
  %384 = vmatprep.subr.bf16.mxu0 0
  %385 = vmatpush2.bf16.msra.mxu0 0
  %386 = vmatprep.subr.bf16.mxu0 0
  %387 = vmatpush2.bf16.msra.mxu0 0
  %388 = vmatprep.subr.bf16.mxu0 0
  %389 = vmatpush2.bf16.msra.mxu0 0
  %390 = vmatprep.subr.bf16.mxu0 0
  %391 = vmatpush2.bf16.msra.mxu0 0
  %392 = vmatprep.mubr.bf16.mxu0 0
  %393 = vmatmul.mubr.bf16.gmra.mxu0 %v111
  %v394 = vpop.f32.mrf.mxu0
  %v395 = vadd.f32 0.0, %v394
  %v396 = vpop.f32.mrf.mxu0
  %v397 = vpop.f32.mrf.mxu0
  %v398 = vadd.f32 0.0, %v397
  %v399 = vpop.f32.mrf.mxu0
  %400 = vmatprep.mubr.bf16.mxu0 0
  %401 = vmatmul.mubr.bf16.gmra.mxu0 %v114
  %v402 = vpop.f32.mrf.mxu0
  %v403 = vadd.f32 0.0, %v402
  %v404 = vpop.f32.mrf.mxu0
  %v405 = vpop.f32.mrf.mxu0
  %v406 = vadd.f32 0.0, %v405
  %v407 = vpop.f32.mrf.mxu0
  %408 = vdwg.mxu0
  %v410 = vsel %vm44, %v353, 0
  %412 = vmatprep.subr.bf16.mxu0 0
  %413 = vmatpush1.bf16.msra.mxu0 0
  %414 = vmatprep.subr.bf16.mxu0 0
  %415 = vmatpush1.bf16.msra.mxu0 0
  %416 = vmatprep.subr.bf16.mxu0 0
  %417 = vmatpush1.bf16.msra.mxu0 0
  %418 = vmatprep.subr.bf16.mxu0 0
  %419 = vmatpush1.bf16.msra.mxu0 0
  %420 = vmatprep.subr.bf16.mxu0 0
  %421 = vmatpush1.bf16.msra.mxu0 0
  %422 = vmatprep.subr.bf16.mxu0 0
  %423 = vmatpush1.bf16.msra.mxu0 0
  %424 = vmatprep.subr.bf16.mxu0 0
  %425 = vmatpush1.bf16.msra.mxu0 0
  %426 = vmatprep.subr.bf16.mxu0 0
  %427 = vmatpush1.bf16.msra.mxu0 %v410
  %428 = vmatprep.subr.bf16.mxu0 0
  %429 = vmatpush2.bf16.msra.mxu0 0
  %430 = vmatprep.subr.bf16.mxu0 0
  %431 = vmatpush2.bf16.msra.mxu0 0
  %432 = vmatprep.subr.bf16.mxu0 0
  %433 = vmatpush2.bf16.msra.mxu0 0
  %434 = vmatprep.subr.bf16.mxu0 0
  %435 = vmatpush2.bf16.msra.mxu0 0
  %436 = vmatprep.subr.bf16.mxu0 0
  %437 = vmatpush2.bf16.msra.mxu0 0
  %438 = vmatprep.subr.bf16.mxu0 0
  %439 = vmatpush2.bf16.msra.mxu0 0
  %440 = vmatprep.subr.bf16.mxu0 0
  %441 = vmatpush2.bf16.msra.mxu0 0
  %442 = vmatprep.subr.bf16.mxu0 0
  %443 = vmatpush2.bf16.msra.mxu0 0
  %444 = vmatprep.mubr.bf16.mxu0 0
  %445 = vmatmul.mubr.bf16.gmra.mxu0 %v39
  %v446 = vpop.f32.mrf.mxu0
  %v447 = vadd.f32 %v395, %v446
  %v448 = vpop.f32.mrf.mxu0
  %v449 = vpop.f32.mrf.mxu0
  %v450 = vadd.f32 %v398, %v449
  %v451 = vpop.f32.mrf.mxu0
  %452 = vmatprep.mubr.bf16.mxu0 0
  %453 = vmatmul.mubr.bf16.gmra.mxu0 %v42
  %v454 = vpop.f32.mrf.mxu0
  %v455 = vadd.f32 %v403, %v454
  %v456 = vpop.f32.mrf.mxu0
  %v457 = vpop.f32.mrf.mxu0
  %v458 = vadd.f32 %v406, %v457
  %v459 = vpop.f32.mrf.mxu0
  %460 = vdwg.mxu0
  %s461 = scalar_lea.vmem %s1, 16
  %v462 = vld [vmem:[%s461] sm:$0xff]
  %v463 = vpack.c.bf16 %v462, %v462
  %v465 = vsel %vm44, %v463, 0
  %467 = vmatprep.subr.bf16.mxu0 0
  %468 = vmatpush1.bf16.msra.mxu0 0
  %469 = vmatprep.subr.bf16.mxu0 0
  %470 = vmatpush1.bf16.msra.mxu0 0
  %471 = vmatprep.subr.bf16.mxu0 0
  %472 = vmatpush1.bf16.msra.mxu0 0
  %473 = vmatprep.subr.bf16.mxu0 0
  %474 = vmatpush1.bf16.msra.mxu0 0
  %475 = vmatprep.subr.bf16.mxu0 0
  %476 = vmatpush1.bf16.msra.mxu0 0
  %477 = vmatprep.subr.bf16.mxu0 0
  %478 = vmatpush1.bf16.msra.mxu0 0
  %479 = vmatprep.subr.bf16.mxu0 0
  %480 = vmatpush1.bf16.msra.mxu0 0
  %481 = vmatprep.subr.bf16.mxu0 0
  %482 = vmatpush1.bf16.msra.mxu0 %v465
  %483 = vmatprep.subr.bf16.mxu0 0
  %484 = vmatpush2.bf16.msra.mxu0 0
  %485 = vmatprep.subr.bf16.mxu0 0
  %486 = vmatpush2.bf16.msra.mxu0 0
  %487 = vmatprep.subr.bf16.mxu0 0
  %488 = vmatpush2.bf16.msra.mxu0 0
  %489 = vmatprep.subr.bf16.mxu0 0
  %490 = vmatpush2.bf16.msra.mxu0 0
  %491 = vmatprep.subr.bf16.mxu0 0
  %492 = vmatpush2.bf16.msra.mxu0 0
  %493 = vmatprep.subr.bf16.mxu0 0
  %494 = vmatpush2.bf16.msra.mxu0 0
  %495 = vmatprep.subr.bf16.mxu0 0
  %496 = vmatpush2.bf16.msra.mxu0 0
  %497 = vmatprep.subr.bf16.mxu0 0
  %498 = vmatpush2.bf16.msra.mxu0 0
  %499 = vmatprep.mubr.bf16.mxu0 0
  %500 = vmatmul.mubr.bf16.gmra.mxu0 %v238
  %v501 = vpop.f32.mrf.mxu0
  %v502 = vadd.f32 0.0, %v501
  %v503 = vpop.f32.mrf.mxu0
  %v504 = vpop.f32.mrf.mxu0
  %v505 = vadd.f32 0.0, %v504
  %v506 = vpop.f32.mrf.mxu0
  %507 = vmatprep.mubr.bf16.mxu0 0
  %508 = vmatmul.mubr.bf16.gmra.mxu0 %v241
  %v509 = vpop.f32.mrf.mxu0
  %v510 = vadd.f32 0.0, %v509
  %v511 = vpop.f32.mrf.mxu0
  %v512 = vpop.f32.mrf.mxu0
  %v513 = vadd.f32 0.0, %v512
  %v514 = vpop.f32.mrf.mxu0
  %515 = vdwg.mxu0
  %v516 = vadd.f32 %v447, %v502
  %v517 = vadd.f32 %v450, %v505
  %v518 = vadd.f32 %v455, %v510
  %v519 = vadd.f32 %v458, %v513
  %s520 = scalar_lea.vmem %s0, 96
  %v521 = vld [vmem:[%s520] sm:$0xff]
  %v522 = vld [vmem:[%s520 + $0x8] sm:$0xff]
  %v523 = vld [vmem:[%s520 + $0x10] sm:$0xff]
  %v524 = vld [vmem:[%s520 + $0x18] sm:$0xff]
  %v525 = vpack.c.bf16 %v522, %v521
  %v526 = vpack.c.bf16 %v524, %v523
  %v527 = vld [vmem:[%s1] sm:$0xff]
  %v528 = vpack.c.bf16 %v527, %v527
  %v530 = vsel %vm37, %v525, 0
  %v533 = vsel %vm37, %v526, 0
  %v536 = vsel %vm44, %v528, 0
  %538 = vmatprep.subr.bf16.mxu0 0
  %539 = vmatpush1.bf16.msra.mxu0 0
  %540 = vmatprep.subr.bf16.mxu0 0
  %541 = vmatpush1.bf16.msra.mxu0 0
  %542 = vmatprep.subr.bf16.mxu0 0
  %543 = vmatpush1.bf16.msra.mxu0 0
  %544 = vmatprep.subr.bf16.mxu0 0
  %545 = vmatpush1.bf16.msra.mxu0 0
  %546 = vmatprep.subr.bf16.mxu0 0
  %547 = vmatpush1.bf16.msra.mxu0 0
  %548 = vmatprep.subr.bf16.mxu0 0
  %549 = vmatpush1.bf16.msra.mxu0 0
  %550 = vmatprep.subr.bf16.mxu0 0
  %551 = vmatpush1.bf16.msra.mxu0 0
  %552 = vmatprep.subr.bf16.mxu0 0
  %553 = vmatpush1.bf16.msra.mxu0 %v536
  %554 = vmatprep.subr.bf16.mxu0 0
  %555 = vmatpush2.bf16.msra.mxu0 0
  %556 = vmatprep.subr.bf16.mxu0 0
  %557 = vmatpush2.bf16.msra.mxu0 0
  %558 = vmatprep.subr.bf16.mxu0 0
  %559 = vmatpush2.bf16.msra.mxu0 0
  %560 = vmatprep.subr.bf16.mxu0 0
  %561 = vmatpush2.bf16.msra.mxu0 0
  %562 = vmatprep.subr.bf16.mxu0 0
  %563 = vmatpush2.bf16.msra.mxu0 0
  %564 = vmatprep.subr.bf16.mxu0 0
  %565 = vmatpush2.bf16.msra.mxu0 0
  %566 = vmatprep.subr.bf16.mxu0 0
  %567 = vmatpush2.bf16.msra.mxu0 0
  %568 = vmatprep.subr.bf16.mxu0 0
  %569 = vmatpush2.bf16.msra.mxu0 0
  %570 = vmatprep.mubr.bf16.mxu0 0
  %571 = vmatmul.mubr.bf16.gmra.mxu0 %v530
  %v572 = vpop.f32.mrf.mxu0
  %v573 = vadd.f32 0.0, %v572
  %v574 = vpop.f32.mrf.mxu0
  %v575 = vpop.f32.mrf.mxu0
  %v576 = vadd.f32 0.0, %v575
  %v577 = vpop.f32.mrf.mxu0
  %578 = vmatprep.mubr.bf16.mxu0 0
  %579 = vmatmul.mubr.bf16.gmra.mxu0 %v533
  %v580 = vpop.f32.mrf.mxu0
  %v581 = vadd.f32 0.0, %v580
  %v582 = vpop.f32.mrf.mxu0
  %v583 = vpop.f32.mrf.mxu0
  %v584 = vadd.f32 0.0, %v583
  %v585 = vpop.f32.mrf.mxu0
  %586 = vdwg.mxu0
  %v587 = vadd.f32 %v516, %v573
  %v588 = vadd.f32 %v517, %v576
  %v589 = vadd.f32 %v518, %v581
  %v590 = vadd.f32 %v519, %v584
  %v591 = vadd.f32 %v587, %v35
  %v592 = vadd.f32 %v588, %v35
  %v593 = vadd.f32 %v589, %v35
  %v594 = vadd.f32 %v590, %v35
  %v595 = vsel %vm37, %v83, 0.0
  %v596 = vsel %vm37, %v86, 0.0
  %v597 = vadd.f32 %v595, %v596
  %v598 = vsel %vm37, %v91, 0.0
  %v599 = vadd.f32 %v597, %v598
  %v600 = vsel %vm37, %v94, 0.0
  %v601 = vadd.f32 %v599, %v600
  %v602 = vrot.slane %v601, 4
  %v603 = vadd.f32 %v601, %v602
  %v604 = vrot.slane %v603, 2
  %v605 = vadd.f32 %v603, %v604
  %v606 = vrot.slane %v605, 1
  %v607 = vadd.f32 %v605, %v606
  %v608 = vadd.f32 %v607, 0.0
  %v609 = vmul.f32 %v83, %v83
  %v610 = vmul.f32 %v86, %v86
  %v611 = vmul.f32 %v91, %v91
  %v612 = vmul.f32 %v94, %v94
  %v613 = vsel %vm37, %v609, 0.0
  %v614 = vsel %vm37, %v610, 0.0
  %v615 = vadd.f32 %v613, %v614
  %v616 = vsel %vm37, %v611, 0.0
  %v617 = vadd.f32 %v615, %v616
  %v618 = vsel %vm37, %v612, 0.0
  %v619 = vadd.f32 %v617, %v618
  %v620 = vrot.slane %v619, 4
  %v621 = vadd.f32 %v619, %v620
  %v622 = vrot.slane %v621, 2
  %v623 = vadd.f32 %v621, %v622
  %v624 = vrot.slane %v623, 1
  %v625 = vadd.f32 %v623, %v624
  %v626 = vadd.f32 %v625, 0.0
  %v627 = vsel %vm37, %v220, 0.0
  %v628 = vsel %vm37, %v221, 0.0
  %v629 = vadd.f32 %v627, %v628
  %v630 = vsel %vm37, %v222, 0.0
  %v631 = vadd.f32 %v629, %v630
  %v632 = vsel %vm37, %v223, 0.0
  %v633 = vadd.f32 %v631, %v632
  %v634 = vrot.slane %v633, 4
  %v635 = vadd.f32 %v633, %v634
  %v636 = vrot.slane %v635, 2
  %v637 = vadd.f32 %v635, %v636
  %v638 = vrot.slane %v637, 1
  %v639 = vadd.f32 %v637, %v638
  %v640 = vadd.f32 %v608, %v639
  %v641 = vmul.f32 %v220, %v220
  %v642 = vmul.f32 %v221, %v221
  %v643 = vmul.f32 %v222, %v222
  %v644 = vmul.f32 %v223, %v223
  %v645 = vsel %vm37, %v641, 0.0
  %v646 = vsel %vm37, %v642, 0.0
  %v647 = vadd.f32 %v645, %v646
  %v648 = vsel %vm37, %v643, 0.0
  %v649 = vadd.f32 %v647, %v648
  %v650 = vsel %vm37, %v644, 0.0
  %v651 = vadd.f32 %v649, %v650
  %v652 = vrot.slane %v651, 4
  %v653 = vadd.f32 %v651, %v652
  %v654 = vrot.slane %v653, 2
  %v655 = vadd.f32 %v653, %v654
  %v656 = vrot.slane %v655, 1
  %v657 = vadd.f32 %v655, %v656
  %v658 = vadd.f32 %v626, %v657
  %v659 = vsel %vm37, %v347, 0.0
  %v660 = vsel %vm37, %v348, 0.0
  %v661 = vadd.f32 %v659, %v660
  %v662 = vsel %vm37, %v349, 0.0
  %v663 = vadd.f32 %v661, %v662
  %v664 = vsel %vm37, %v350, 0.0
  %v665 = vadd.f32 %v663, %v664
  %v666 = vrot.slane %v665, 4
  %v667 = vadd.f32 %v665, %v666
  %v668 = vrot.slane %v667, 2
  %v669 = vadd.f32 %v667, %v668
  %v670 = vrot.slane %v669, 1
  %v671 = vadd.f32 %v669, %v670
  %v672 = vadd.f32 %v640, %v671
  %v673 = vmul.f32 %v347, %v347
  %v674 = vmul.f32 %v348, %v348
  %v675 = vmul.f32 %v349, %v349
  %v676 = vmul.f32 %v350, %v350
  %v677 = vsel %vm37, %v673, 0.0
  %v678 = vsel %vm37, %v674, 0.0
  %v679 = vadd.f32 %v677, %v678
  %v680 = vsel %vm37, %v675, 0.0
  %v681 = vadd.f32 %v679, %v680
  %v682 = vsel %vm37, %v676, 0.0
  %v683 = vadd.f32 %v681, %v682
  %v684 = vrot.slane %v683, 4
  %v685 = vadd.f32 %v683, %v684
  %v686 = vrot.slane %v685, 2
  %v687 = vadd.f32 %v685, %v686
  %v688 = vrot.slane %v687, 1
  %v689 = vadd.f32 %v687, %v688
  %v690 = vadd.f32 %v658, %v689
  %v691 = vsel %vm37, %v591, 0.0
  %v692 = vsel %vm37, %v592, 0.0
  %v693 = vadd.f32 %v691, %v692
  %v694 = vsel %vm37, %v593, 0.0
  %v695 = vadd.f32 %v693, %v694
  %v696 = vsel %vm37, %v594, 0.0
  %v697 = vadd.f32 %v695, %v696
  %v698 = vrot.slane %v697, 4
  %v699 = vadd.f32 %v697, %v698
  %v700 = vrot.slane %v699, 2
  %v701 = vadd.f32 %v699, %v700
  %v702 = vrot.slane %v701, 1
  %v703 = vadd.f32 %v701, %v702
  %v704 = vadd.f32 %v672, %v703
  %v705 = vmul.f32 %v591, %v591
  %v706 = vmul.f32 %v592, %v592
  %v707 = vmul.f32 %v593, %v593
  %v708 = vmul.f32 %v594, %v594
  %v709 = vsel %vm37, %v705, 0.0
  %v710 = vsel %vm37, %v706, 0.0
  %v711 = vadd.f32 %v709, %v710
  %v712 = vsel %vm37, %v707, 0.0
  %v713 = vadd.f32 %v711, %v712
  %v714 = vsel %vm37, %v708, 0.0
  %v715 = vadd.f32 %v713, %v714
  %v716 = vrot.slane %v715, 4
  %v717 = vadd.f32 %v715, %v716
  %v718 = vrot.slane %v717, 2
  %v719 = vadd.f32 %v717, %v718
  %v720 = vrot.slane %v719, 1
  %v721 = vadd.f32 %v719, %v720
  %v722 = vadd.f32 %v690, %v721
  %v723 = vmul.f32 %v704, 0.0078125
  %v724 = vmul.f32 %v722, 0.0078125
  %v725 = vmul.f32 %v723, %v723
  %v726 = vsub.f32 %v724, %v725
  %v727 = vmax.f32 %v726, 0.0
  %v728 = vld [vmem:[%s3] sm:$0x1]
  %v729 = vadd.f32 %v727, 1e-05
  %v730 = vrsqrt.pop %v729
  %v731 = vmul.f32 %v728, %v730
  %v732 = vld [vmem:[%s4] sm:$0x1]
  %v733 = vmul.f32 %v723, %v731
  %v734 = vsub.f32 %v732, %v733
  %v736 = vlaneseq
  %v737 = vshrl.u32 %v736, 7
  %v738 = vsub.s32 0, %v737
  %v739 = vrot.slane %v731, %v738
  %v741 = vmul.f32 %v83, %v739
  %v742 = vmul.f32 %v86, %v739
  %v743 = vmul.f32 %v91, %v739
  %v744 = vmul.f32 %v94, %v739
  %v746 = vlaneseq
  %v747 = vshrl.u32 %v746, 7
  %v748 = vsub.s32 0, %v747
  %v749 = vrot.slane %v734, %v748
  %v751 = vadd.f32 %v741, %v749
  %v752 = vadd.f32 %v742, %v749
  %v753 = vadd.f32 %v743, %v749
  %v754 = vadd.f32 %v744, %v749
  %vm755 = vcmp.gt.f32.partialorder %v751, 0.0
  %vm756 = vcmp.gt.f32.partialorder %v752, 0.0
  %vm757 = vcmp.gt.f32.partialorder %v753, 0.0
  %vm758 = vcmp.gt.f32.partialorder %v754, 0.0
  %v759 = vmul.f32 %v751, 0.01
  %v760 = vmul.f32 %v752, 0.01
  %v761 = vmul.f32 %v753, 0.01
  %v762 = vmul.f32 %v754, 0.01
  %v763 = vsel %vm755, %v751, %v759
  %v764 = vsel %vm756, %v752, %v760
  %v765 = vsel %vm757, %v753, %v761
  %v766 = vsel %vm758, %v754, %v762
  %767 = vst.msk [vmem:[%s5] sm:$0xff] %vm37, %v763
  %768 = vst.msk [vmem:[%s5 + $0x8] sm:$0xff] %vm37, %v764
  %769 = vst.msk [vmem:[%s5 + $0x10] sm:$0xff] %vm37, %v765
  %770 = vst.msk [vmem:[%s5 + $0x18] sm:$0xff] %vm37, %v766
  %v771 = vmul.f32 %v220, %v739
  %v772 = vmul.f32 %v221, %v739
  %v773 = vmul.f32 %v222, %v739
  %v774 = vmul.f32 %v223, %v739
  %v775 = vadd.f32 %v771, %v749
  %v776 = vadd.f32 %v772, %v749
  %v777 = vadd.f32 %v773, %v749
  %v778 = vadd.f32 %v774, %v749
  %vm779 = vcmp.gt.f32.partialorder %v775, 0.0
  %vm780 = vcmp.gt.f32.partialorder %v776, 0.0
  %vm781 = vcmp.gt.f32.partialorder %v777, 0.0
  %vm782 = vcmp.gt.f32.partialorder %v778, 0.0
  %v783 = vmul.f32 %v775, 0.01
  %v784 = vmul.f32 %v776, 0.01
  %v785 = vmul.f32 %v777, 0.01
  %v786 = vmul.f32 %v778, 0.01
  %v787 = vsel %vm779, %v775, %v783
  %v788 = vsel %vm780, %v776, %v784
  %v789 = vsel %vm781, %v777, %v785
  %v790 = vsel %vm782, %v778, %v786
  %s791 = scalar_lea.vmem %s5, 32
  %792 = vst.msk [vmem:[%s791] sm:$0xff] %vm37, %v787
  %793 = vst.msk [vmem:[%s791 + $0x8] sm:$0xff] %vm37, %v788
  %794 = vst.msk [vmem:[%s791 + $0x10] sm:$0xff] %vm37, %v789
  %795 = vst.msk [vmem:[%s791 + $0x18] sm:$0xff] %vm37, %v790
  %v796 = vmul.f32 %v347, %v739
  %v797 = vmul.f32 %v348, %v739
  %v798 = vmul.f32 %v349, %v739
  %v799 = vmul.f32 %v350, %v739
  %v800 = vadd.f32 %v796, %v749
  %v801 = vadd.f32 %v797, %v749
  %v802 = vadd.f32 %v798, %v749
  %v803 = vadd.f32 %v799, %v749
  %vm804 = vcmp.gt.f32.partialorder %v800, 0.0
  %vm805 = vcmp.gt.f32.partialorder %v801, 0.0
  %vm806 = vcmp.gt.f32.partialorder %v802, 0.0
  %vm807 = vcmp.gt.f32.partialorder %v803, 0.0
  %v808 = vmul.f32 %v800, 0.01
  %v809 = vmul.f32 %v801, 0.01
  %v810 = vmul.f32 %v802, 0.01
  %v811 = vmul.f32 %v803, 0.01
  %v812 = vsel %vm804, %v800, %v808
  %v813 = vsel %vm805, %v801, %v809
  %v814 = vsel %vm806, %v802, %v810
  %v815 = vsel %vm807, %v803, %v811
  %s816 = scalar_lea.vmem %s5, 64
  %817 = vst.msk [vmem:[%s816] sm:$0xff] %vm37, %v812
  %818 = vst.msk [vmem:[%s816 + $0x8] sm:$0xff] %vm37, %v813
  %819 = vst.msk [vmem:[%s816 + $0x10] sm:$0xff] %vm37, %v814
  %820 = vst.msk [vmem:[%s816 + $0x18] sm:$0xff] %vm37, %v815
  %v821 = vmul.f32 %v591, %v739
  %v822 = vmul.f32 %v592, %v739
  %v823 = vmul.f32 %v593, %v739
  %v824 = vmul.f32 %v594, %v739
  %v825 = vadd.f32 %v821, %v749
  %v826 = vadd.f32 %v822, %v749
  %v827 = vadd.f32 %v823, %v749
  %v828 = vadd.f32 %v824, %v749
  %vm829 = vcmp.gt.f32.partialorder %v825, 0.0
  %vm830 = vcmp.gt.f32.partialorder %v826, 0.0
  %vm831 = vcmp.gt.f32.partialorder %v827, 0.0
  %vm832 = vcmp.gt.f32.partialorder %v828, 0.0
  %v833 = vmul.f32 %v825, 0.01
  %v834 = vmul.f32 %v826, 0.01
  %v835 = vmul.f32 %v827, 0.01
  %v836 = vmul.f32 %v828, 0.01
  %v837 = vsel %vm829, %v825, %v833
  %v838 = vsel %vm830, %v826, %v834
  %v839 = vsel %vm831, %v827, %v835
  %v840 = vsel %vm832, %v828, %v836
  %s841 = scalar_lea.vmem %s5, 96
  %842 = vst.msk [vmem:[%s841] sm:$0xff] %vm37, %v837
  %843 = vst.msk [vmem:[%s841 + $0x8] sm:$0xff] %vm37, %v838
  %844 = vst.msk [vmem:[%s841 + $0x10] sm:$0xff] %vm37, %v839
  %845 = vst.msk [vmem:[%s841 + $0x18] sm:$0xff] %vm37, %v840
  // Predicated region
  $region22: #{vae_forward.10} parent=0 // pred_check
    _
  $region23: #{vae_forward.10} parent=0 // pred_check_branch
    %847 = sbr.rel (0) target = $region25
  $region24: #{vae_forward.10} parent=0 // pred_region
    _
  $region25: #{vae_forward.10} parent=0 // pred_fallthru
    _
  // Predicated region
  $region26: #{vae_forward.10} parent=0 // pred_check
    _
  $region27: #{vae_forward.10} parent=0 // pred_check_branch
    %849 = sbr.rel (0) target = $region29
  $region28: #{vae_forward.10} parent=0 // pred_region
    _
  $region29: #{vae_forward.10} parent=0 // pred_fallthru
    _

// kernel: vae_forward.11
$region0: #{vae_forward.11}
  #allocation0 [shape = 'u32[]', space=smem, size = 0x4, offset = 0x4, fixed_abs, tag = 'smem constant byte address 0x4 - core index']
  #allocation1 [shape = 'u32[144,128]{1,0:T(1,128)}', space=vmem, size = 0x12000, scoped, tag = 'internal scratch']
  %s0 = inlined_call_operand.vmem [shape: f32[128,72], index: 0, kind: input, shape index: {}]
  %s1 = inlined_call_operand.vmem [shape: f32[72,3], index: 1, kind: input, shape index: {}]
  %s2 = inlined_call_operand.vmem [shape: f32[1,3], index: 2, kind: input, shape index: {}]
  %s3 = inlined_call_operand.vmem [shape: f32[1,3], index: 3, kind: input, shape index: {}]
  %s4 = inlined_call_operand.vmem [shape: f32[1,3], index: 4, kind: input, shape index: {}]
  %s5 = inlined_call_operand.vmem [shape: f32[128,3], index: 5, kind: output, shape index: {}]
  %s6 = sld [smem:[#allocation0]]
  $region30: #{vae_forward.11} parent=0
    _
  %s8 = ssub.s32 1, %s6
  %s9 = scalar_select 0, %s8, %s6
  // Predicated region
  $region2: #{vae_forward.11} parent=0 // pred_check
    _
  $region3: #{vae_forward.11} parent=0 // pred_check_branch
    %11 = sbr.rel (0) target = $region5
  $region4: #{vae_forward.11} parent=0 // pred_region
    _
  $region5: #{vae_forward.11} parent=0 // pred_fallthru
    _
  // Predicated region
  $region6: #{vae_forward.11} parent=0 // pred_check
    _
  $region7: #{vae_forward.11} parent=0 // pred_check_branch
    %13 = sbr.rel (0) target = $region9
  $region8: #{vae_forward.11} parent=0 // pred_region
    _
  $region9: #{vae_forward.11} parent=0 // pred_fallthru
    _
  // Predicated region
  $region10: #{vae_forward.11} parent=0 // pred_check
    _
  $region11: #{vae_forward.11} parent=0 // pred_check_branch
    %15 = sbr.rel (0) target = $region13
  $region12: #{vae_forward.11} parent=0 // pred_region
    _
  $region13: #{vae_forward.11} parent=0 // pred_fallthru
    _
  // Predicated region
  $region14: #{vae_forward.11} parent=0 // pred_check
    _
  $region15: #{vae_forward.11} parent=0 // pred_check_branch
    %17 = sbr.rel (0) target = $region17
  $region16: #{vae_forward.11} parent=0 // pred_region
    _
  $region17: #{vae_forward.11} parent=0 // pred_fallthru
    _
  // Predicated region
  $region18: #{vae_forward.11} parent=0 // pred_check
    _
  $region19: #{vae_forward.11} parent=0 // pred_check_branch
    %19 = sbr.rel (0) target = $region21
  $region20: #{vae_forward.11} parent=0 // pred_region
    _
  $region21: #{vae_forward.11} parent=0 // pred_fallthru
    _
  %v21 = vld [vmem:[%s0] sm:$0xff]
  %v22 = vld [vmem:[%s0 + $0x8] sm:$0xff]
  %v23 = vld [vmem:[%s0 + $0x10] sm:$0xff]
  %v24 = vld [vmem:[%s0 + $0x18] sm:$0xff]
  %v25 = vld [vmem:[%s0 + $0x20] sm:$0xff]
  %v26 = vld [vmem:[%s0 + $0x28] sm:$0xff]
  %v27 = vld [vmem:[%s0 + $0x30] sm:$0xff]
  %v28 = vld [vmem:[%s0 + $0x38] sm:$0xff]
  %v29 = vld [vmem:[%s0 + $0x40] sm:$0xff]
  %v30 = vld [vmem:[%s0 + $0x48] sm:$0xff]
  %v31 = vld [vmem:[%s0 + $0x50] sm:$0xff]
  %v32 = vld [vmem:[%s0 + $0x58] sm:$0xff]
  %v33 = vld [vmem:[%s0 + $0x60] sm:$0xff]
  %v34 = vld [vmem:[%s0 + $0x68] sm:$0xff]
  %v35 = vld [vmem:[%s0 + $0x70] sm:$0xff]
  %v36 = vld [vmem:[%s0 + $0x78] sm:$0xff]
  %v37 = vpack.c.bf16 %v22, %v21
  %v38 = vpack.c.bf16 %v24, %v23
  %v39 = vpack.c.bf16 %v26, %v25
  %v40 = vpack.c.bf16 %v28, %v27
  %v41 = vpack.c.bf16 %v30, %v29
  %v42 = vpack.c.bf16 %v32, %v31
  %v43 = vpack.c.bf16 %v34, %v33
  %v44 = vpack.c.bf16 %v36, %v35
  %v45 = vld [vmem:[%s1] sm:$0xff]
  %v46 = vld [vmem:[%s1 + $0x8] sm:$0xff]
  %v47 = vld [vmem:[%s1 + $0x10] sm:$0xff]
  %v48 = vld [vmem:[%s1 + $0x18] sm:$0xff]
  %v49 = vld [vmem:[%s1 + $0x20] sm:$0xff]
  %v50 = vld [vmem:[%s1 + $0x28] sm:$0xff]
  %v51 = vld [vmem:[%s1 + $0x30] sm:$0xff]
  %v52 = vld [vmem:[%s1 + $0x38] sm:$0xff]
  %v53 = vld [vmem:[%s1 + $0x40] sm:$0xff]
  %v54 = vpack.c.bf16 %v46, %v45
  %v55 = vpack.c.bf16 %v48, %v47
  %v56 = vpack.c.bf16 %v50, %v49
  %v57 = vpack.c.bf16 %v52, %v51
  %v58 = vpack.c.bf16 %v53, %v53
  %v59 = vld [vmem:[%s2] sm:$0x1]
  %v61 = vlaneseq
  %v62 = vshrl.u32 %v61, 7
  %v63 = vsub.s32 0, %v62
  %v64 = vrot.slane %v59, %v63
  %vm66 = vcmask 588800
  %v68 = vsel %vm66, %v37, 0
  %v71 = vsel %vm66, %v38, 0
  %v74 = vsel %vm66, %v39, 0
  %v77 = vsel %vm66, %v40, 0
  %v80 = vsel %vm66, %v41, 0
  %v83 = vsel %vm66, %v42, 0
  %v86 = vsel %vm66, %v43, 0
  %v89 = vsel %vm66, %v44, 0
  %vm91 = vcmask 1043456
  %v93 = vsel %vm91, %v58, 0
  %95 = vmatprep.subr.bf16.mxu0 0
  %96 = vmatpush1.bf16.msra.mxu0 0
  %97 = vmatprep.subr.bf16.mxu0 0
  %98 = vmatpush1.bf16.msra.mxu0 0
  %99 = vmatprep.subr.bf16.mxu0 0
  %100 = vmatpush1.bf16.msra.mxu0 0
  %101 = vmatprep.subr.bf16.mxu0 0
  %102 = vmatpush1.bf16.msra.mxu0 %v93
  %103 = vmatprep.subr.bf16.mxu0 0
  %104 = vmatpush1.bf16.msra.mxu0 %v57
  %105 = vmatprep.subr.bf16.mxu0 0
  %106 = vmatpush1.bf16.msra.mxu0 %v56
  %107 = vmatprep.subr.bf16.mxu0 0
  %108 = vmatpush1.bf16.msra.mxu0 %v55
  %109 = vmatprep.subr.bf16.mxu0 0
  %110 = vmatpush1.bf16.msra.mxu0 %v54
  %111 = vmatprep.subr.bf16.mxu0 0
  %112 = vmatpush2.bf16.msra.mxu0 0
  %113 = vmatprep.subr.bf16.mxu0 0
  %114 = vmatpush2.bf16.msra.mxu0 0
  %115 = vmatprep.subr.bf16.mxu0 0
  %116 = vmatpush2.bf16.msra.mxu0 0
  %117 = vmatprep.subr.bf16.mxu0 0
  %118 = vmatpush2.bf16.msra.mxu0 0
  %119 = vmatprep.subr.bf16.mxu0 0
  %120 = vmatpush2.bf16.msra.mxu0 0
  %121 = vmatprep.subr.bf16.mxu0 0
  %122 = vmatpush2.bf16.msra.mxu0 0
  %123 = vmatprep.subr.bf16.mxu0 0
  %124 = vmatpush2.bf16.msra.mxu0 0
  %125 = vmatprep.subr.bf16.mxu0 0
  %126 = vmatpush2.bf16.msra.mxu0 0
  %127 = vmatprep.mubr.bf16.mxu0 0
  %128 = vmatmul.mubr.bf16.gmra.mxu0 %v68
  %v129 = vpop.f32.mrf.mxu0
  %v130 = vadd.f32 %v64, %v129
  %v131 = vpop.f32.mrf.mxu0
  %v132 = vpop.f32.mrf.mxu0
  %v133 = vadd.f32 %v64, %v132
  %v134 = vpop.f32.mrf.mxu0
  %135 = vmatprep.mubr.bf16.mxu0 0
  %136 = vmatmul.mubr.bf16.gmra.mxu0 %v71
  %v137 = vpop.f32.mrf.mxu0
  %v138 = vadd.f32 %v64, %v137
  %v139 = vpop.f32.mrf.mxu0
  %v140 = vpop.f32.mrf.mxu0
  %v141 = vadd.f32 %v64, %v140
  %v142 = vpop.f32.mrf.mxu0
  %143 = vmatprep.mubr.bf16.mxu0 0
  %144 = vmatmul.mubr.bf16.gmra.mxu0 %v74
  %v145 = vpop.f32.mrf.mxu0
  %v146 = vadd.f32 %v64, %v145
  %v147 = vpop.f32.mrf.mxu0
  %v148 = vpop.f32.mrf.mxu0
  %v149 = vadd.f32 %v64, %v148
  %v150 = vpop.f32.mrf.mxu0
  %151 = vmatprep.mubr.bf16.mxu0 0
  %152 = vmatmul.mubr.bf16.gmra.mxu0 %v77
  %v153 = vpop.f32.mrf.mxu0
  %v154 = vadd.f32 %v64, %v153
  %v155 = vpop.f32.mrf.mxu0
  %v156 = vpop.f32.mrf.mxu0
  %v157 = vadd.f32 %v64, %v156
  %v158 = vpop.f32.mrf.mxu0
  %159 = vmatprep.mubr.bf16.mxu0 0
  %160 = vmatmul.mubr.bf16.gmra.mxu0 %v80
  %v161 = vpop.f32.mrf.mxu0
  %v162 = vadd.f32 %v64, %v161
  %v163 = vpop.f32.mrf.mxu0
  %v164 = vpop.f32.mrf.mxu0
  %v165 = vadd.f32 %v64, %v164
  %v166 = vpop.f32.mrf.mxu0
  %167 = vmatprep.mubr.bf16.mxu0 0
  %168 = vmatmul.mubr.bf16.gmra.mxu0 %v83
  %v169 = vpop.f32.mrf.mxu0
  %v170 = vadd.f32 %v64, %v169
  %v171 = vpop.f32.mrf.mxu0
  %v172 = vpop.f32.mrf.mxu0
  %v173 = vadd.f32 %v64, %v172
  %v174 = vpop.f32.mrf.mxu0
  %175 = vmatprep.mubr.bf16.mxu0 0
  %176 = vmatmul.mubr.bf16.gmra.mxu0 %v86
  %v177 = vpop.f32.mrf.mxu0
  %v178 = vadd.f32 %v64, %v177
  %v179 = vpop.f32.mrf.mxu0
  %v180 = vpop.f32.mrf.mxu0
  %v181 = vadd.f32 %v64, %v180
  %v182 = vpop.f32.mrf.mxu0
  %183 = vmatprep.mubr.bf16.mxu0 0
  %184 = vmatmul.mubr.bf16.gmra.mxu0 %v89
  %v185 = vpop.f32.mrf.mxu0
  %v186 = vadd.f32 %v64, %v185
  %v187 = vpop.f32.mrf.mxu0
  %v188 = vpop.f32.mrf.mxu0
  %v189 = vadd.f32 %v64, %v188
  %v190 = vpop.f32.mrf.mxu0
  %191 = vdwg.mxu0
  %v192 = vtanh.pop %v130
  %v193 = vtanh.pop %v133
  %v194 = vtanh.pop %v138
  %v195 = vtanh.pop %v141
  %v196 = vtanh.pop %v146
  %v197 = vtanh.pop %v149
  %v198 = vtanh.pop %v154
  %v199 = vtanh.pop %v157
  %v200 = vtanh.pop %v162
  %v201 = vtanh.pop %v165
  %v202 = vtanh.pop %v170
  %v203 = vtanh.pop %v173
  %v204 = vtanh.pop %v178
  %v205 = vtanh.pop %v181
  %v206 = vtanh.pop %v186
  %v207 = vtanh.pop %v189
  %v208 = vmul.f32 %v192, 3.0
  %v209 = vmul.f32 %v193, 3.0
  %v210 = vmul.f32 %v194, 3.0
  %v211 = vmul.f32 %v195, 3.0
  %v212 = vmul.f32 %v196, 3.0
  %v213 = vmul.f32 %v197, 3.0
  %v214 = vmul.f32 %v198, 3.0
  %v215 = vmul.f32 %v199, 3.0
  %v216 = vmul.f32 %v200, 3.0
  %v217 = vmul.f32 %v201, 3.0
  %v218 = vmul.f32 %v202, 3.0
  %v219 = vmul.f32 %v203, 3.0
  %v220 = vmul.f32 %v204, 3.0
  %v221 = vmul.f32 %v205, 3.0
  %v222 = vmul.f32 %v206, 3.0
  %v223 = vmul.f32 %v207, 3.0
  %vm224 = vcmask 23552
  %225 = vst.msk [vmem:[%s5] sm:$0xff] %vm224, %v208
  %226 = vst.msk [vmem:[%s5 + $0x8] sm:$0xff] %vm224, %v209
  %227 = vst.msk [vmem:[%s5 + $0x10] sm:$0xff] %vm224, %v210
  %228 = vst.msk [vmem:[%s5 + $0x18] sm:$0xff] %vm224, %v211
  %229 = vst.msk [vmem:[%s5 + $0x20] sm:$0xff] %vm224, %v212
  %230 = vst.msk [vmem:[%s5 + $0x28] sm:$0xff] %vm224, %v213
  %231 = vst.msk [vmem:[%s5 + $0x30] sm:$0xff] %vm224, %v214
  %232 = vst.msk [vmem:[%s5 + $0x38] sm:$0xff] %vm224, %v215
  %233 = vst.msk [vmem:[%s5 + $0x40] sm:$0xff] %vm224, %v216
  %234 = vst.msk [vmem:[%s5 + $0x48] sm:$0xff] %vm224, %v217
  %235 = vst.msk [vmem:[%s5 + $0x50] sm:$0xff] %vm224, %v218
  %236 = vst.msk [vmem:[%s5 + $0x58] sm:$0xff] %vm224, %v219
  %237 = vst.msk [vmem:[%s5 + $0x60] sm:$0xff] %vm224, %v220
  %238 = vst.msk [vmem:[%s5 + $0x68] sm:$0xff] %vm224, %v221
  %239 = vst.msk [vmem:[%s5 + $0x70] sm:$0xff] %vm224, %v222
  %240 = vst.msk [vmem:[%s5 + $0x78] sm:$0xff] %vm224, %v223
  // Predicated region
  $region22: #{vae_forward.11} parent=0 // pred_check
    _
  $region23: #{vae_forward.11} parent=0 // pred_check_branch
    %242 = sbr.rel (0) target = $region25
  $region24: #{vae_forward.11} parent=0 // pred_region
    _
  $region25: #{vae_forward.11} parent=0 // pred_fallthru
    _
  // Predicated region
  $region26: #{vae_forward.11} parent=0 // pred_check
    _
  $region27: #{vae_forward.11} parent=0 // pred_check_branch
    %244 = sbr.rel (0) target = $region29
  $region28: #{vae_forward.11} parent=0 // pred_region
    _
  $region29: #{vae_forward.11} parent=0 // pred_fallthru
    _

</llo_original>
